<compile_context>
chip_gen: v5e
topology: v5e:2x2
jax: 0.10.0
libtpu: 0.0.40
codegen_flags: <defaults>
</compile_context>

<pallas_src>
import jax
import jax.numpy as jnp
from jax import lax
from jax.experimental import pallas as pl
from jax.experimental.pallas import tpu as pltpu

N_EMBD = 32
N_HEAD = 1
HEAD_SIZE = N_EMBD // N_HEAD
FF_HIDDEN = 4 * N_EMBD
LN_EPS = 1e-5


def _layernorm(x, gamma, beta):
    # x: (R, C) f32; gamma, beta: (1, C).  Single-pass biased variance
    # (var = E[x^2] - mean^2) -> halves the XLU reductions vs the two-pass form.
    mean = jnp.mean(x, axis=-1, keepdims=True)
    meansq = jnp.mean(x * x, axis=-1, keepdims=True)
    var = meansq - mean * mean
    inv = lax.rsqrt(var + LN_EPS)
    return (x - mean) * inv * gamma + beta


def block_kernel(
    x_ref,       # (R, C)   f32  R = G*T rows (G sequences of length T, flattened)
    mask_ref,    # (R, R)   f32  additive mask: 0 where attending allowed, -1e30 else
    wqkv_ref,    # (C, 3C)  bf16 fused [wq/sqrt(H), wk, wv@wproj]
    bproj_ref,   # (1, C)   f32
    ln1g_ref,    # (1, C)   f32
    ln1b_ref,    # (1, C)   f32
    w1_ref,      # (C, 4C)  bf16
    b1_ref,      # (1, 4C)  f32
    w2_ref,      # (4C, C)  bf16
    b2_ref,      # (1, C)   f32
    ln2g_ref,    # (1, C)   f32
    ln2b_ref,    # (1, C)   f32
    o_ref,       # (R, C)   f32
):
    x = x_ref[...]                                   # (R, C) f32 residual stream
    x_bf = x.astype(jnp.bfloat16)                    # bf16 copy for the MXU only

    # ---- fused q / k / (v@proj) projection: one bf16 MXU pass ----
    qkv = jnp.dot(x_bf, wqkv_ref[...],
                  preferred_element_type=jnp.float32)           # (R, 3C) f32
    q = qkv[:, :HEAD_SIZE].astype(jnp.bfloat16)
    k = qkv[:, HEAD_SIZE:2 * HEAD_SIZE].astype(jnp.bfloat16)
    vproj = qkv[:, 2 * HEAD_SIZE:].astype(jnp.bfloat16)         # value already projected

    # ---- block-diagonal causal attention over all R rows at once ----
    # One (R, R) MXU pass; no explicit transpose (contract last dims).
    # Scale 1/sqrt(H) is folded into the q weights.
    wei = lax.dot_general(q, k, (((1,), (1,)), ((), ())),
                          preferred_element_type=jnp.float32)   # (R, R) f32
    wei = wei + mask_ref[...]

    # Lane-dense softmax along the 128-wide last axis (all f32).
    m = jnp.max(wei, axis=-1, keepdims=True)
    e = jnp.exp(wei - m)
    denom = jnp.sum(e, axis=-1, keepdims=True)
    p = e * pl.reciprocal(denom, approx=True)        # EUP reciprocal + VPU multiply
    # (attention dropout is identity in eval mode)

    # attn @ (wv @ wproj) already folded -> directly the projected output.
    y = jnp.dot(p.astype(jnp.bfloat16), vproj,
                preferred_element_type=jnp.float32) + bproj_ref[...]   # (R, C)
    # (residual dropout is identity in eval mode)

    # ---- residual + LayerNorm 1 (f32) ----
    x1 = _layernorm(x + y, ln1g_ref[...], ln1b_ref[...])        # (R, C)

    # ---- feed-forward: Linear -> ReLU -> Linear (dropout = identity) ----
    h = jnp.dot(x1.astype(jnp.bfloat16), w1_ref[...],
                preferred_element_type=jnp.float32) + b1_ref[...]      # (R, 4C)
    h = jnp.maximum(h, 0.0)
    f = jnp.dot(h.astype(jnp.bfloat16), w2_ref[...],
                preferred_element_type=jnp.float32) + b2_ref[...]      # (R, C)

    # ---- residual + LayerNorm 2 (f32) ----
    # TODO(synk): lane-dense (R*C/128, 128) relayout of the final store was
    # skipped to avoid an in-kernel reshape across the lane dim.
    o_ref[...] = _layernorm(x1 + f, ln2g_ref[...], ln2b_ref[...])      # (R, C)


def transformer_block(x, params, rows_per_step=128):
    """x: (B, T, C) float32.  params: dict of weights (see init_params).

    rows_per_step: number of flattened rows (G*T) processed per grid step.
    Keep at 128: the masked-dense (R, R) attention grows O(R^2) while useful
    work is O(R*T), so larger R only adds masked softmax/exp filler.
    """
    B, T, C = x.shape
    assert C == N_EMBD

    G = max(1, rows_per_step // T)      # sequences per grid step
    n_steps = -(-B // G)                # ceil(B / G)
    B_pad = n_steps * G
    if B_pad != B:
        # Pad with zero sequences; the block-diagonal mask keeps them isolated
        # and padded outputs are sliced off below.
        x = jnp.pad(x, ((0, B_pad - B), (0, 0), (0, 0)))

    R = G * T
    x2d = x.reshape(B_pad * T, C).astype(jnp.float32)

    # Fused weight: fold the attention scale into q and the output projection
    # into v (exact: (P (X Wv)) Wp == P (X (Wv Wp))).  Cast weights to bf16
    # once here (halves weight DMA bytes; accumulation stays f32 in-kernel).
    wq_scaled = params["wq"] / (HEAD_SIZE ** 0.5)
    wv_proj = params["wv"] @ params["wproj"]                     # (C, C)
    wqkv = jnp.concatenate([wq_scaled, params["wk"], wv_proj],
                           axis=1).astype(jnp.bfloat16)          # (C, 3C)
    w1 = params["w1"].astype(jnp.bfloat16)
    w2 = params["w2"].astype(jnp.bfloat16)

    # Additive attention mask built once (not per grid step):
    # row i may attend to row j iff same sequence and pos(j) <= pos(i).
    idx = jnp.arange(R)
    seq = idx // T
    pos = idx % T
    allowed = (seq[:, None] == seq[None, :]) & (pos[None, :] <= pos[:, None])
    mask = jnp.where(allowed, 0.0, -1e30).astype(jnp.float32)

    consts = (
        mask, wqkv,
        params["bproj"], params["ln1_g"], params["ln1_b"],
        w1, params["b1"], w2, params["b2"],
        params["ln2_g"], params["ln2_b"],
    )

    def build(single_buffer_consts):
        def const_spec(shape):
            nd = len(shape)
            kwargs = {}
            if single_buffer_consts:
                # Block index never changes -> double buffering buys nothing.
                kwargs["pipeline_mode"] = pl.Buffered(1)
            return pl.BlockSpec(shape, lambda i, _nd=nd: (0,) * _nd, **kwargs)

        in_specs = [pl.BlockSpec((R, C), lambda i: (i, 0))]       # activations
        in_specs += [const_spec(c.shape) for c in consts]
        out_spec = pl.BlockSpec((R, C), lambda i: (i, 0))

        return pl.pallas_call(
            block_kernel,
            out_shape=jax.ShapeDtypeStruct((B_pad * T, C), jnp.float32),
            grid_spec=pltpu.PrefetchScalarGridSpec(
                num_scalar_prefetch=0,
                grid=(n_steps,),
                in_specs=in_specs,
                out_specs=out_spec,
            ),
            compiler_params=pltpu.CompilerParams(
                dimension_semantics=("parallel",),
            ),
        )

    try:
        out2d = build(single_buffer_consts=True)(x2d, *consts)
        out2d = jax.block_until_ready(out2d)
    except Exception:
        # pipeline_mode=pl.Buffered(1) not supported on this jax version:
        # fall back to default (double-buffered) constant specs.
        out2d = build(single_buffer_consts=False)(x2d, *consts)
        out2d = jax.block_until_ready(out2d)

    return out2d.reshape(B_pad, T, C)[:B]


def init_params(key):
    """Deterministic synthetic parameters matching Block(n_embd=32, n_head=1)."""
    ks = jax.random.split(key, 8)
    scale = 0.02
    p = {
        # Head: key/query/value linears, no bias; stored pre-transposed (in, out).
        "wq": scale * jax.random.normal(ks[0], (N_EMBD, HEAD_SIZE), jnp.float32),
        "wk": scale * jax.random.normal(ks[1], (N_EMBD, HEAD_SIZE), jnp.float32),
        "wv": scale * jax.random.normal(ks[2], (N_EMBD, HEAD_SIZE), jnp.float32),
        # MultiHeadAttention.proj
        "wproj": scale * jax.random.normal(ks[3], (HEAD_SIZE * N_HEAD, N_EMBD), jnp.float32),
        "bproj": scale * jax.random.normal(ks[4], (1, N_EMBD), jnp.float32),
        # LayerNorm 1 (default init: gamma=1, beta=0)
        "ln1_g": jnp.ones((1, N_EMBD), jnp.float32),
        "ln1_b": jnp.zeros((1, N_EMBD), jnp.float32),
        # FeedForward
        "w1": scale * jax.random.normal(ks[5], (N_EMBD, FF_HIDDEN), jnp.float32),
        "b1": scale * jax.random.normal(ks[6], (1, FF_HIDDEN), jnp.float32),
        "w2": scale * jax.random.normal(ks[7], (FF_HIDDEN, N_EMBD), jnp.float32),
        "b2": jnp.zeros((1, N_EMBD), jnp.float32),
        # LayerNorm 2
        "ln2_g": jnp.ones((1, N_EMBD), jnp.float32),
        "ln2_b": jnp.zeros((1, N_EMBD), jnp.float32),
    }
    return p


def _reference(x, p):
    """Pure-JAX f32 reference of the PyTorch forward (eval mode)."""
    B, T, C = x.shape
    q = x @ p["wq"]; k = x @ p["wk"]; v = x @ p["wv"]
    wei = jnp.einsum("btd,bsd->bts", q, k) / (HEAD_SIZE ** 0.5)
    mask = jnp.tril(jnp.ones((T, T), jnp.float32))[None]
    wei = jnp.where(mask == 0, -jnp.inf, wei)
    wei = jax.nn.softmax(wei, axis=-1)
    attn = jnp.einsum("bts,bsd->btd", wei, v)
    y = attn @ p["wproj"] + p["bproj"]

    def ln(z, g, b):
        mu = z.mean(-1, keepdims=True)
        var = ((z - mu) ** 2).mean(-1, keepdims=True)
        return (z - mu) / jnp.sqrt(var + LN_EPS) * g + b

    x1 = ln(x + y, p["ln1_g"], p["ln1_b"])
    h = jnp.maximum(x1 @ p["w1"] + p["b1"], 0.0)
    f = h @ p["w2"] + p["b2"]
    return ln(x1 + f, p["ln2_g"], p["ln2_b"])


if __name__ == "__main__":
    key = jax.random.PRNGKey(0)
    k_x, k_p = jax.random.split(key)

    # B=64, T=8 => 16 sequences (R=128 rows) per grid step, grid length 4,
    # so each v7x TensorCore gets multiple steps for pipeline overlap.
    # (block_size=32 max in the spec; T=8 is fine.)
    B, T = 64, 8
    x = jax.random.normal(k_x, (B, T, N_EMBD), jnp.float32)
    params = init_params(k_p)

    out = transformer_block(x, params)
    out = jax.block_until_ready(out)

    ref = _reference(x, params)
    assert out.shape == (B, T, N_EMBD)
    # Tolerance covers bf16 MXU operands, the EUP approximate reciprocal in the
    # softmax denominator, and MXU accumulation-order differences.
    err = jnp.max(jnp.abs(out - ref))
    assert jnp.allclose(out, ref, atol=2e-3, rtol=2e-3), f"max abs err {err}"

    print("KERNEL_OK")
</pallas_src>

<mosaic_0001>
module attributes {stable_mosaic.version = 11 : i64} {
  func.func @block_kernel(%arg0: i32, %arg1: memref<128x32xf32, #tpu.memory_space<vmem>>, %arg2: memref<128x128xf32, #tpu.memory_space<vmem>>, %arg3: memref<32x96xbf16, #tpu.memory_space<vmem>>, %arg4: memref<1x32xf32, #tpu.memory_space<vmem>>, %arg5: memref<1x32xf32, #tpu.memory_space<vmem>>, %arg6: memref<1x32xf32, #tpu.memory_space<vmem>>, %arg7: memref<32x128xbf16, #tpu.memory_space<vmem>>, %arg8: memref<1x128xf32, #tpu.memory_space<vmem>>, %arg9: memref<128x32xbf16, #tpu.memory_space<vmem>>, %arg10: memref<1x32xf32, #tpu.memory_space<vmem>>, %arg11: memref<1x32xf32, #tpu.memory_space<vmem>>, %arg12: memref<1x32xf32, #tpu.memory_space<vmem>>, %arg13: memref<128x32xf32, #tpu.memory_space<vmem>>) attributes {dimension_semantics = [#tpu.dimension_semantics<parallel>], iteration_bounds = array<i64: 4>, scalar_prefetch = 0 : i64, scratch_operands = 0 : i64, tpu.core_type = #tpu.core_type<tc>, window_params = [{transform_indices = @transform_0, window_bounds = array<i64: 128, 32>}, {pipeline_mode = #tpu.pipeline_mode<synchronous>, transform_indices = @transform_1, window_bounds = array<i64: 128, 128>}, {pipeline_mode = #tpu.pipeline_mode<synchronous>, transform_indices = @transform_2, window_bounds = array<i64: 32, 96>}, {pipeline_mode = #tpu.pipeline_mode<synchronous>, transform_indices = @transform_3, window_bounds = array<i64: 1, 32>}, {pipeline_mode = #tpu.pipeline_mode<synchronous>, transform_indices = @transform_4, window_bounds = array<i64: 1, 32>}, {pipeline_mode = #tpu.pipeline_mode<synchronous>, transform_indices = @transform_5, window_bounds = array<i64: 1, 32>}, {pipeline_mode = #tpu.pipeline_mode<synchronous>, transform_indices = @transform_6, window_bounds = array<i64: 32, 128>}, {pipeline_mode = #tpu.pipeline_mode<synchronous>, transform_indices = @transform_7, window_bounds = array<i64: 1, 128>}, {pipeline_mode = #tpu.pipeline_mode<synchronous>, transform_indices = @transform_8, window_bounds = array<i64: 128, 32>}, {pipeline_mode = #tpu.pipeline_mode<synchronous>, transform_indices = @transform_9, window_bounds = array<i64: 1, 32>}, {pipeline_mode = #tpu.pipeline_mode<synchronous>, transform_indices = @transform_10, window_bounds = array<i64: 1, 32>}, {pipeline_mode = #tpu.pipeline_mode<synchronous>, transform_indices = @transform_11, window_bounds = array<i64: 1, 32>}, {transform_indices = @transform_12, window_bounds = array<i64: 128, 32>}]} {
    %c0 = arith.constant 0 : index
    %c0_0 = arith.constant 0 : index
    %0 = vector.load %arg1[%c0, %c0_0] : memref<128x32xf32, #tpu.memory_space<vmem>>, vector<128x32xf32>
    %1 = arith.truncf %0 : vector<128x32xf32> to vector<128x32xbf16>
    %c0_1 = arith.constant 0 : index
    %c0_2 = arith.constant 0 : index
    %2 = vector.load %arg3[%c0_1, %c0_2] : memref<32x96xbf16, #tpu.memory_space<vmem>>, vector<32x96xbf16>
    %cst = arith.constant dense<0.000000e+00> : vector<128x96xf32>
    %3 = tpu.matmul %1, %2, %cst {dimension_numbers = #tpu.dot_dimension_numbers<[1], [0], [0], [1], [0, 0, 1, 1], [], []>} : vector<128x32xbf16>, vector<32x96xbf16>, vector<128x96xf32> -> vector<128x96xf32>
    %4 = vector.extract_strided_slice %3 {offsets = [0, 0], sizes = [128, 32], strides = [1, 1]} : vector<128x96xf32> to vector<128x32xf32>
    %5 = arith.truncf %4 : vector<128x32xf32> to vector<128x32xbf16>
    %6 = vector.extract_strided_slice %3 {offsets = [0, 32], sizes = [128, 32], strides = [1, 1]} : vector<128x96xf32> to vector<128x32xf32>
    %7 = arith.truncf %6 : vector<128x32xf32> to vector<128x32xbf16>
    %8 = vector.extract_strided_slice %3 {offsets = [0, 64], sizes = [128, 32], strides = [1, 1]} : vector<128x96xf32> to vector<128x32xf32>
    %9 = arith.truncf %8 : vector<128x32xf32> to vector<128x32xbf16>
    %cst_3 = arith.constant dense<0.000000e+00> : vector<128x128xf32>
    %10 = tpu.matmul %5, %7, %cst_3 {dimension_numbers = #tpu.dot_dimension_numbers<[1], [1], [0], [0], [0, 0, 1, 0], [], []>} : vector<128x32xbf16>, vector<128x32xbf16>, vector<128x128xf32> -> vector<128x128xf32>
    %c0_4 = arith.constant 0 : index
    %c0_5 = arith.constant 0 : index
    %11 = vector.load %arg2[%c0_4, %c0_5] : memref<128x128xf32, #tpu.memory_space<vmem>>, vector<128x128xf32>
    %12 = arith.addf %10, %11 : vector<128x128xf32>
    %cst_6 = arith.constant dense<0xFF800000> : vector<128xf32>
    %13 = vector.multi_reduction <maximumf>, %12, %cst_6 [1] : vector<128x128xf32> to vector<128xf32>
    %14 = vector.shape_cast %13 : vector<128xf32> to vector<128x1xf32>
    %15 = vector.broadcast %14 : vector<128x1xf32> to vector<128x128xf32>
    %16 = arith.subf %12, %15 : vector<128x128xf32>
    %17 = math.exp %16 : vector<128x128xf32>
    %cst_7 = arith.constant dense<0.000000e+00> : vector<128xf32>
    %18 = vector.multi_reduction <add>, %17, %cst_7 [1] : vector<128x128xf32> to vector<128xf32>
    %19 = vector.shape_cast %18 : vector<128xf32> to vector<128x1xf32>
    %20 = tpu.reciprocal %19 {approx = true} : vector<128x1xf32> -> vector<128x1xf32>
    %21 = vector.broadcast %20 : vector<128x1xf32> to vector<128x128xf32>
    %22 = arith.mulf %17, %21 : vector<128x128xf32>
    %23 = arith.truncf %22 : vector<128x128xf32> to vector<128x128xbf16>
    %cst_8 = arith.constant dense<0.000000e+00> : vector<128x32xf32>
    %24 = tpu.matmul %23, %9, %cst_8 {dimension_numbers = #tpu.dot_dimension_numbers<[1], [0], [0], [1], [0, 0, 1, 1], [], []>} : vector<128x128xbf16>, vector<128x32xbf16>, vector<128x32xf32> -> vector<128x32xf32>
    %c0_9 = arith.constant 0 : index
    %c0_10 = arith.constant 0 : index
    %25 = vector.load %arg4[%c0_9, %c0_10] : memref<1x32xf32, #tpu.memory_space<vmem>>, vector<1x32xf32>
    %26 = vector.broadcast %25 : vector<1x32xf32> to vector<128x32xf32>
    %27 = arith.addf %24, %26 : vector<128x32xf32>
    %28 = arith.addf %0, %27 : vector<128x32xf32>
    %c0_11 = arith.constant 0 : index
    %c0_12 = arith.constant 0 : index
    %29 = vector.load %arg5[%c0_11, %c0_12] : memref<1x32xf32, #tpu.memory_space<vmem>>, vector<1x32xf32>
    %c0_13 = arith.constant 0 : index
    %c0_14 = arith.constant 0 : index
    %30 = vector.load %arg6[%c0_13, %c0_14] : memref<1x32xf32, #tpu.memory_space<vmem>>, vector<1x32xf32>
    %cst_15 = arith.constant dense<0.000000e+00> : vector<128xf32>
    %31 = vector.multi_reduction <add>, %28, %cst_15 [1] : vector<128x32xf32> to vector<128xf32>
    %32 = vector.shape_cast %31 : vector<128xf32> to vector<128x1xf32>
    %cst_16 = arith.constant 3.200000e+01 : f32
    %33 = vector.broadcast %cst_16 : f32 to vector<128x1xf32>
    %34 = arith.divf %32, %33 : vector<128x1xf32>
    %35 = arith.mulf %28, %28 : vector<128x32xf32>
    %cst_17 = arith.constant dense<0.000000e+00> : vector<128xf32>
    %36 = vector.multi_reduction <add>, %35, %cst_17 [1] : vector<128x32xf32> to vector<128xf32>
    %37 = vector.shape_cast %36 : vector<128xf32> to vector<128x1xf32>
    %cst_18 = arith.constant 3.200000e+01 : f32
    %38 = vector.broadcast %cst_18 : f32 to vector<128x1xf32>
    %39 = arith.divf %37, %38 : vector<128x1xf32>
    %40 = arith.mulf %34, %34 : vector<128x1xf32>
    %41 = arith.subf %39, %40 : vector<128x1xf32>
    %cst_19 = arith.constant 9.99999974E-6 : f32
    %42 = vector.broadcast %cst_19 : f32 to vector<128x1xf32>
    %43 = arith.addf %41, %42 : vector<128x1xf32>
    %44 = math.rsqrt %43 : vector<128x1xf32>
    %45 = vector.broadcast %34 : vector<128x1xf32> to vector<128x32xf32>
    %46 = arith.subf %28, %45 : vector<128x32xf32>
    %47 = vector.broadcast %44 : vector<128x1xf32> to vector<128x32xf32>
    %48 = arith.mulf %46, %47 : vector<128x32xf32>
    %49 = vector.broadcast %29 : vector<1x32xf32> to vector<128x32xf32>
    %50 = arith.mulf %48, %49 : vector<128x32xf32>
    %51 = vector.broadcast %30 : vector<1x32xf32> to vector<128x32xf32>
    %52 = arith.addf %50, %51 : vector<128x32xf32>
    %53 = arith.truncf %52 : vector<128x32xf32> to vector<128x32xbf16>
    %c0_20 = arith.constant 0 : index
    %c0_21 = arith.constant 0 : index
    %54 = vector.load %arg7[%c0_20, %c0_21] : memref<32x128xbf16, #tpu.memory_space<vmem>>, vector<32x128xbf16>
    %cst_22 = arith.constant dense<0.000000e+00> : vector<128x128xf32>
    %55 = tpu.matmul %53, %54, %cst_22 {dimension_numbers = #tpu.dot_dimension_numbers<[1], [0], [0], [1], [0, 0, 1, 1], [], []>} : vector<128x32xbf16>, vector<32x128xbf16>, vector<128x128xf32> -> vector<128x128xf32>
    %c0_23 = arith.constant 0 : index
    %c0_24 = arith.constant 0 : index
    %56 = vector.load %arg8[%c0_23, %c0_24] : memref<1x128xf32, #tpu.memory_space<vmem>>, vector<1x128xf32>
    %57 = vector.broadcast %56 : vector<1x128xf32> to vector<128x128xf32>
    %58 = arith.addf %55, %57 : vector<128x128xf32>
    %cst_25 = arith.constant 0.000000e+00 : f32
    %59 = vector.broadcast %cst_25 : f32 to vector<128x128xf32>
    %60 = arith.maximumf %58, %59 : vector<128x128xf32>
    %61 = arith.truncf %60 : vector<128x128xf32> to vector<128x128xbf16>
    %c0_26 = arith.constant 0 : index
    %c0_27 = arith.constant 0 : index
    %62 = vector.load %arg9[%c0_26, %c0_27] : memref<128x32xbf16, #tpu.memory_space<vmem>>, vector<128x32xbf16>
    %cst_28 = arith.constant dense<0.000000e+00> : vector<128x32xf32>
    %63 = tpu.matmul %61, %62, %cst_28 {dimension_numbers = #tpu.dot_dimension_numbers<[1], [0], [0], [1], [0, 0, 1, 1], [], []>} : vector<128x128xbf16>, vector<128x32xbf16>, vector<128x32xf32> -> vector<128x32xf32>
    %c0_29 = arith.constant 0 : index
    %c0_30 = arith.constant 0 : index
    %64 = vector.load %arg10[%c0_29, %c0_30] : memref<1x32xf32, #tpu.memory_space<vmem>>, vector<1x32xf32>
    %65 = vector.broadcast %64 : vector<1x32xf32> to vector<128x32xf32>
    %66 = arith.addf %63, %65 : vector<128x32xf32>
    %67 = arith.addf %52, %66 : vector<128x32xf32>
    %c0_31 = arith.constant 0 : index
    %c0_32 = arith.constant 0 : index
    %68 = vector.load %arg11[%c0_31, %c0_32] : memref<1x32xf32, #tpu.memory_space<vmem>>, vector<1x32xf32>
    %c0_33 = arith.constant 0 : index
    %c0_34 = arith.constant 0 : index
    %69 = vector.load %arg12[%c0_33, %c0_34] : memref<1x32xf32, #tpu.memory_space<vmem>>, vector<1x32xf32>
    %cst_35 = arith.constant dense<0.000000e+00> : vector<128xf32>
    %70 = vector.multi_reduction <add>, %67, %cst_35 [1] : vector<128x32xf32> to vector<128xf32>
    %71 = vector.shape_cast %70 : vector<128xf32> to vector<128x1xf32>
    %cst_36 = arith.constant 3.200000e+01 : f32
    %72 = vector.broadcast %cst_36 : f32 to vector<128x1xf32>
    %73 = arith.divf %71, %72 : vector<128x1xf32>
    %74 = arith.mulf %67, %67 : vector<128x32xf32>
    %cst_37 = arith.constant dense<0.000000e+00> : vector<128xf32>
    %75 = vector.multi_reduction <add>, %74, %cst_37 [1] : vector<128x32xf32> to vector<128xf32>
    %76 = vector.shape_cast %75 : vector<128xf32> to vector<128x1xf32>
    %cst_38 = arith.constant 3.200000e+01 : f32
    %77 = vector.broadcast %cst_38 : f32 to vector<128x1xf32>
    %78 = arith.divf %76, %77 : vector<128x1xf32>
    %79 = arith.mulf %73, %73 : vector<128x1xf32>
    %80 = arith.subf %78, %79 : vector<128x1xf32>
    %cst_39 = arith.constant 9.99999974E-6 : f32
    %81 = vector.broadcast %cst_39 : f32 to vector<128x1xf32>
    %82 = arith.addf %80, %81 : vector<128x1xf32>
    %83 = math.rsqrt %82 : vector<128x1xf32>
    %84 = vector.broadcast %73 : vector<128x1xf32> to vector<128x32xf32>
    %85 = arith.subf %67, %84 : vector<128x32xf32>
    %86 = vector.broadcast %83 : vector<128x1xf32> to vector<128x32xf32>
    %87 = arith.mulf %85, %86 : vector<128x32xf32>
    %88 = vector.broadcast %68 : vector<1x32xf32> to vector<128x32xf32>
    %89 = arith.mulf %87, %88 : vector<128x32xf32>
    %90 = vector.broadcast %69 : vector<1x32xf32> to vector<128x32xf32>
    %91 = arith.addf %89, %90 : vector<128x32xf32>
    %c0_40 = arith.constant 0 : index
    %c0_41 = arith.constant 0 : index
    %92 = vector.load %arg13[%c0_40, %c0_41] : memref<128x32xf32, #tpu.memory_space<vmem>>, vector<128x32xf32>
    tpu.vector_store %arg13[%c0_40, %c0_41], %91 {strides = array<i32>} : memref<128x32xf32, #tpu.memory_space<vmem>>, vector<128x32xf32>,
    return
  }
  func.func @transform_0(%arg0: i32) -> (i32, i32) {
    %c0_i32 = arith.constant 0 : i32
    %c0_i32_0 = arith.constant 0 : i32
    return %arg0, %c0_i32 : i32, i32
  }
  func.func @transform_1(%arg0: i32) -> (i32, i32) {
    %c0_i32 = arith.constant 0 : i32
    %c0_i32_0 = arith.constant 0 : i32
    %c0_i32_1 = arith.constant 0 : i32
    return %c0_i32, %c0_i32_0 : i32, i32
  }
  func.func @transform_2(%arg0: i32) -> (i32, i32) {
    %c0_i32 = arith.constant 0 : i32
    %c0_i32_0 = arith.constant 0 : i32
    %c0_i32_1 = arith.constant 0 : i32
    return %c0_i32, %c0_i32_0 : i32, i32
  }
  func.func @transform_3(%arg0: i32) -> (i32, i32) {
    %c0_i32 = arith.constant 0 : i32
    %c0_i32_0 = arith.constant 0 : i32
    %c0_i32_1 = arith.constant 0 : i32
    return %c0_i32, %c0_i32_0 : i32, i32
  }
  func.func @transform_4(%arg0: i32) -> (i32, i32) {
    %c0_i32 = arith.constant 0 : i32
    %c0_i32_0 = arith.constant 0 : i32
    %c0_i32_1 = arith.constant 0 : i32
    return %c0_i32, %c0_i32_0 : i32, i32
  }
  func.func @transform_5(%arg0: i32) -> (i32, i32) {
    %c0_i32 = arith.constant 0 : i32
    %c0_i32_0 = arith.constant 0 : i32
    %c0_i32_1 = arith.constant 0 : i32
    return %c0_i32, %c0_i32_0 : i32, i32
  }
  func.func @transform_6(%arg0: i32) -> (i32, i32) {
    %c0_i32 = arith.constant 0 : i32
    %c0_i32_0 = arith.constant 0 : i32
    %c0_i32_1 = arith.constant 0 : i32
    return %c0_i32, %c0_i32_0 : i32, i32
  }
  func.func @transform_7(%arg0: i32) -> (i32, i32) {
    %c0_i32 = arith.constant 0 : i32
    %c0_i32_0 = arith.constant 0 : i32
    %c0_i32_1 = arith.constant 0 : i32
    return %c0_i32, %c0_i32_0 : i32, i32
  }
  func.func @transform_8(%arg0: i32) -> (i32, i32) {
    %c0_i32 = arith.constant 0 : i32
    %c0_i32_0 = arith.constant 0 : i32
    %c0_i32_1 = arith.constant 0 : i32
    return %c0_i32, %c0_i32_0 : i32, i32
  }
  func.func @transform_9(%arg0: i32) -> (i32, i32) {
    %c0_i32 = arith.constant 0 : i32
    %c0_i32_0 = arith.constant 0 : i32
    %c0_i32_1 = arith.constant 0 : i32
    return %c0_i32, %c0_i32_0 : i32, i32
  }
  func.func @transform_10(%arg0: i32) -> (i32, i32) {
    %c0_i32 = arith.constant 0 : i32
    %c0_i32_0 = arith.constant 0 : i32
    %c0_i32_1 = arith.constant 0 : i32
    return %c0_i32, %c0_i32_0 : i32, i32
  }
  func.func @transform_11(%arg0: i32) -> (i32, i32) {
    %c0_i32 = arith.constant 0 : i32
    %c0_i32_0 = arith.constant 0 : i32
    %c0_i32_1 = arith.constant 0 : i32
    return %c0_i32, %c0_i32_0 : i32, i32
  }
  func.func @transform_12(%arg0: i32) -> (i32, i32) {
    %c0_i32 = arith.constant 0 : i32
    %c0_i32_0 = arith.constant 0 : i32
    return %arg0, %c0_i32 : i32, i32
  }
}

module attributes {stable_mosaic.version = 11 : i64} {
  func.func @block_kernel(%arg0: i32, %arg1: memref<128x32xf32, #tpu.memory_space<vmem>>, %arg2: memref<128x128xf32, #tpu.memory_space<vmem>>, %arg3: memref<32x96xbf16, #tpu.memory_space<vmem>>, %arg4: memref<1x32xf32, #tpu.memory_space<vmem>>, %arg5: memref<1x32xf32, #tpu.memory_space<vmem>>, %arg6: memref<1x32xf32, #tpu.memory_space<vmem>>, %arg7: memref<32x128xbf16, #tpu.memory_space<vmem>>, %arg8: memref<1x128xf32, #tpu.memory_space<vmem>>, %arg9: memref<128x32xbf16, #tpu.memory_space<vmem>>, %arg10: memref<1x32xf32, #tpu.memory_space<vmem>>, %arg11: memref<1x32xf32, #tpu.memory_space<vmem>>, %arg12: memref<1x32xf32, #tpu.memory_space<vmem>>, %arg13: memref<128x32xf32, #tpu.memory_space<vmem>>) attributes {dimension_semantics = [#tpu.dimension_semantics<parallel>], iteration_bounds = array<i64: 4>, scalar_prefetch = 0 : i64, scratch_operands = 0 : i64, tpu.core_type = #tpu.core_type<tc>, window_params = [{transform_indices = @transform_0, window_bounds = array<i64: 128, 32>}, {pipeline_mode = #tpu.pipeline_mode<synchronous>, transform_indices = @transform_1, window_bounds = array<i64: 128, 128>}, {pipeline_mode = #tpu.pipeline_mode<synchronous>, transform_indices = @transform_2, window_bounds = array<i64: 32, 96>}, {pipeline_mode = #tpu.pipeline_mode<synchronous>, transform_indices = @transform_3, window_bounds = array<i64: 1, 32>}, {pipeline_mode = #tpu.pipeline_mode<synchronous>, transform_indices = @transform_4, window_bounds = array<i64: 1, 32>}, {pipeline_mode = #tpu.pipeline_mode<synchronous>, transform_indices = @transform_5, window_bounds = array<i64: 1, 32>}, {pipeline_mode = #tpu.pipeline_mode<synchronous>, transform_indices = @transform_6, window_bounds = array<i64: 32, 128>}, {pipeline_mode = #tpu.pipeline_mode<synchronous>, transform_indices = @transform_7, window_bounds = array<i64: 1, 128>}, {pipeline_mode = #tpu.pipeline_mode<synchronous>, transform_indices = @transform_8, window_bounds = array<i64: 128, 32>}, {pipeline_mode = #tpu.pipeline_mode<synchronous>, transform_indices = @transform_9, window_bounds = array<i64: 1, 32>}, {pipeline_mode = #tpu.pipeline_mode<synchronous>, transform_indices = @transform_10, window_bounds = array<i64: 1, 32>}, {pipeline_mode = #tpu.pipeline_mode<synchronous>, transform_indices = @transform_11, window_bounds = array<i64: 1, 32>}, {transform_indices = @transform_12, window_bounds = array<i64: 128, 32>}]} {
    %c0 = arith.constant 0 : index
    %c0_0 = arith.constant 0 : index
    %0 = vector.load %arg1[%c0, %c0_0] : memref<128x32xf32, #tpu.memory_space<vmem>>, vector<128x32xf32>
    %1 = arith.truncf %0 : vector<128x32xf32> to vector<128x32xbf16>
    %c0_1 = arith.constant 0 : index
    %c0_2 = arith.constant 0 : index
    %2 = vector.load %arg3[%c0_1, %c0_2] : memref<32x96xbf16, #tpu.memory_space<vmem>>, vector<32x96xbf16>
    %cst = arith.constant dense<0.000000e+00> : vector<128x96xf32>
    %3 = tpu.matmul %1, %2, %cst {dimension_numbers = #tpu.dot_dimension_numbers<[1], [0], [0], [1], [0, 0, 1, 1], [], []>} : vector<128x32xbf16>, vector<32x96xbf16>, vector<128x96xf32> -> vector<128x96xf32>
    %4 = vector.extract_strided_slice %3 {offsets = [0, 0], sizes = [128, 32], strides = [1, 1]} : vector<128x96xf32> to vector<128x32xf32>
    %5 = arith.truncf %4 : vector<128x32xf32> to vector<128x32xbf16>
    %6 = vector.extract_strided_slice %3 {offsets = [0, 32], sizes = [128, 32], strides = [1, 1]} : vector<128x96xf32> to vector<128x32xf32>
    %7 = arith.truncf %6 : vector<128x32xf32> to vector<128x32xbf16>
    %8 = vector.extract_strided_slice %3 {offsets = [0, 64], sizes = [128, 32], strides = [1, 1]} : vector<128x96xf32> to vector<128x32xf32>
    %9 = arith.truncf %8 : vector<128x32xf32> to vector<128x32xbf16>
    %cst_3 = arith.constant dense<0.000000e+00> : vector<128x128xf32>
    %10 = tpu.matmul %5, %7, %cst_3 {dimension_numbers = #tpu.dot_dimension_numbers<[1], [1], [0], [0], [0, 0, 1, 0], [], []>} : vector<128x32xbf16>, vector<128x32xbf16>, vector<128x128xf32> -> vector<128x128xf32>
    %c0_4 = arith.constant 0 : index
    %c0_5 = arith.constant 0 : index
    %11 = vector.load %arg2[%c0_4, %c0_5] : memref<128x128xf32, #tpu.memory_space<vmem>>, vector<128x128xf32>
    %12 = arith.addf %10, %11 : vector<128x128xf32>
    %cst_6 = arith.constant dense<0xFF800000> : vector<128xf32>
    %13 = vector.multi_reduction <maximumf>, %12, %cst_6 [1] : vector<128x128xf32> to vector<128xf32>
    %14 = vector.shape_cast %13 : vector<128xf32> to vector<128x1xf32>
    %15 = vector.broadcast %14 : vector<128x1xf32> to vector<128x128xf32>
    %16 = arith.subf %12, %15 : vector<128x128xf32>
    %17 = math.exp %16 : vector<128x128xf32>
    %cst_7 = arith.constant dense<0.000000e+00> : vector<128xf32>
    %18 = vector.multi_reduction <add>, %17, %cst_7 [1] : vector<128x128xf32> to vector<128xf32>
    %19 = vector.shape_cast %18 : vector<128xf32> to vector<128x1xf32>
    %20 = tpu.reciprocal %19 {approx = true} : vector<128x1xf32> -> vector<128x1xf32>
    %21 = vector.broadcast %20 : vector<128x1xf32> to vector<128x128xf32>
    %22 = arith.mulf %17, %21 : vector<128x128xf32>
    %23 = arith.truncf %22 : vector<128x128xf32> to vector<128x128xbf16>
    %cst_8 = arith.constant dense<0.000000e+00> : vector<128x32xf32>
    %24 = tpu.matmul %23, %9, %cst_8 {dimension_numbers = #tpu.dot_dimension_numbers<[1], [0], [0], [1], [0, 0, 1, 1], [], []>} : vector<128x128xbf16>, vector<128x32xbf16>, vector<128x32xf32> -> vector<128x32xf32>
    %c0_9 = arith.constant 0 : index
    %c0_10 = arith.constant 0 : index
    %25 = vector.load %arg4[%c0_9, %c0_10] : memref<1x32xf32, #tpu.memory_space<vmem>>, vector<1x32xf32>
    %26 = vector.broadcast %25 : vector<1x32xf32> to vector<128x32xf32>
    %27 = arith.addf %24, %26 : vector<128x32xf32>
    %28 = arith.addf %0, %27 : vector<128x32xf32>
    %c0_11 = arith.constant 0 : index
    %c0_12 = arith.constant 0 : index
    %29 = vector.load %arg5[%c0_11, %c0_12] : memref<1x32xf32, #tpu.memory_space<vmem>>, vector<1x32xf32>
    %c0_13 = arith.constant 0 : index
    %c0_14 = arith.constant 0 : index
    %30 = vector.load %arg6[%c0_13, %c0_14] : memref<1x32xf32, #tpu.memory_space<vmem>>, vector<1x32xf32>
    %cst_15 = arith.constant dense<0.000000e+00> : vector<128xf32>
    %31 = vector.multi_reduction <add>, %28, %cst_15 [1] : vector<128x32xf32> to vector<128xf32>
    %32 = vector.shape_cast %31 : vector<128xf32> to vector<128x1xf32>
    %cst_16 = arith.constant 3.200000e+01 : f32
    %33 = vector.broadcast %cst_16 : f32 to vector<128x1xf32>
    %34 = arith.divf %32, %33 : vector<128x1xf32>
    %35 = arith.mulf %28, %28 : vector<128x32xf32>
    %cst_17 = arith.constant dense<0.000000e+00> : vector<128xf32>
    %36 = vector.multi_reduction <add>, %35, %cst_17 [1] : vector<128x32xf32> to vector<128xf32>
    %37 = vector.shape_cast %36 : vector<128xf32> to vector<128x1xf32>
    %cst_18 = arith.constant 3.200000e+01 : f32
    %38 = vector.broadcast %cst_18 : f32 to vector<128x1xf32>
    %39 = arith.divf %37, %38 : vector<128x1xf32>
    %40 = arith.mulf %34, %34 : vector<128x1xf32>
    %41 = arith.subf %39, %40 : vector<128x1xf32>
    %cst_19 = arith.constant 9.99999974E-6 : f32
    %42 = vector.broadcast %cst_19 : f32 to vector<128x1xf32>
    %43 = arith.addf %41, %42 : vector<128x1xf32>
    %44 = math.rsqrt %43 : vector<128x1xf32>
    %45 = vector.broadcast %34 : vector<128x1xf32> to vector<128x32xf32>
    %46 = arith.subf %28, %45 : vector<128x32xf32>
    %47 = vector.broadcast %44 : vector<128x1xf32> to vector<128x32xf32>
    %48 = arith.mulf %46, %47 : vector<128x32xf32>
    %49 = vector.broadcast %29 : vector<1x32xf32> to vector<128x32xf32>
    %50 = arith.mulf %48, %49 : vector<128x32xf32>
    %51 = vector.broadcast %30 : vector<1x32xf32> to vector<128x32xf32>
    %52 = arith.addf %50, %51 : vector<128x32xf32>
    %53 = arith.truncf %52 : vector<128x32xf32> to vector<128x32xbf16>
    %c0_20 = arith.constant 0 : index
    %c0_21 = arith.constant 0 : index
    %54 = vector.load %arg7[%c0_20, %c0_21] : memref<32x128xbf16, #tpu.memory_space<vmem>>, vector<32x128xbf16>
    %cst_22 = arith.constant dense<0.000000e+00> : vector<128x128xf32>
    %55 = tpu.matmul %53, %54, %cst_22 {dimension_numbers = #tpu.dot_dimension_numbers<[1], [0], [0], [1], [0, 0, 1, 1], [], []>} : vector<128x32xbf16>, vector<32x128xbf16>, vector<128x128xf32> -> vector<128x128xf32>
    %c0_23 = arith.constant 0 : index
    %c0_24 = arith.constant 0 : index
    %56 = vector.load %arg8[%c0_23, %c0_24] : memref<1x128xf32, #tpu.memory_space<vmem>>, vector<1x128xf32>
    %57 = vector.broadcast %56 : vector<1x128xf32> to vector<128x128xf32>
    %58 = arith.addf %55, %57 : vector<128x128xf32>
    %cst_25 = arith.constant 0.000000e+00 : f32
    %59 = vector.broadcast %cst_25 : f32 to vector<128x128xf32>
    %60 = arith.maximumf %58, %59 : vector<128x128xf32>
    %61 = arith.truncf %60 : vector<128x128xf32> to vector<128x128xbf16>
    %c0_26 = arith.constant 0 : index
    %c0_27 = arith.constant 0 : index
    %62 = vector.load %arg9[%c0_26, %c0_27] : memref<128x32xbf16, #tpu.memory_space<vmem>>, vector<128x32xbf16>
    %cst_28 = arith.constant dense<0.000000e+00> : vector<128x32xf32>
    %63 = tpu.matmul %61, %62, %cst_28 {dimension_numbers = #tpu.dot_dimension_numbers<[1], [0], [0], [1], [0, 0, 1, 1], [], []>} : vector<128x128xbf16>, vector<128x32xbf16>, vector<128x32xf32> -> vector<128x32xf32>
    %c0_29 = arith.constant 0 : index
    %c0_30 = arith.constant 0 : index
    %64 = vector.load %arg10[%c0_29, %c0_30] : memref<1x32xf32, #tpu.memory_space<vmem>>, vector<1x32xf32>
    %65 = vector.broadcast %64 : vector<1x32xf32> to vector<128x32xf32>
    %66 = arith.addf %63, %65 : vector<128x32xf32>
    %67 = arith.addf %52, %66 : vector<128x32xf32>
    %c0_31 = arith.constant 0 : index
    %c0_32 = arith.constant 0 : index
    %68 = vector.load %arg11[%c0_31, %c0_32] : memref<1x32xf32, #tpu.memory_space<vmem>>, vector<1x32xf32>
    %c0_33 = arith.constant 0 : index
    %c0_34 = arith.constant 0 : index
    %69 = vector.load %arg12[%c0_33, %c0_34] : memref<1x32xf32, #tpu.memory_space<vmem>>, vector<1x32xf32>
    %cst_35 = arith.constant dense<0.000000e+00> : vector<128xf32>
    %70 = vector.multi_reduction <add>, %67, %cst_35 [1] : vector<128x32xf32> to vector<128xf32>
    %71 = vector.shape_cast %70 : vector<128xf32> to vector<128x1xf32>
    %cst_36 = arith.constant 3.200000e+01 : f32
    %72 = vector.broadcast %cst_36 : f32 to vector<128x1xf32>
    %73 = arith.divf %71, %72 : vector<128x1xf32>
    %74 = arith.mulf %67, %67 : vector<128x32xf32>
    %cst_37 = arith.constant dense<0.000000e+00> : vector<128xf32>
    %75 = vector.multi_reduction <add>, %74, %cst_37 [1] : vector<128x32xf32> to vector<128xf32>
    %76 = vector.shape_cast %75 : vector<128xf32> to vector<128x1xf32>
    %cst_38 = arith.constant 3.200000e+01 : f32
    %77 = vector.broadcast %cst_38 : f32 to vector<128x1xf32>
    %78 = arith.divf %76, %77 : vector<128x1xf32>
    %79 = arith.mulf %73, %73 : vector<128x1xf32>
    %80 = arith.subf %78, %79 : vector<128x1xf32>
    %cst_39 = arith.constant 9.99999974E-6 : f32
    %81 = vector.broadcast %cst_39 : f32 to vector<128x1xf32>
    %82 = arith.addf %80, %81 : vector<128x1xf32>
    %83 = math.rsqrt %82 : vector<128x1xf32>
    %84 = vector.broadcast %73 : vector<128x1xf32> to vector<128x32xf32>
    %85 = arith.subf %67, %84 : vector<128x32xf32>
    %86 = vector.broadcast %83 : vector<128x1xf32> to vector<128x32xf32>
    %87 = arith.mulf %85, %86 : vector<128x32xf32>
    %88 = vector.broadcast %68 : vector<1x32xf32> to vector<128x32xf32>
    %89 = arith.mulf %87, %88 : vector<128x32xf32>
    %90 = vector.broadcast %69 : vector<1x32xf32> to vector<128x32xf32>
    %91 = arith.addf %89, %90 : vector<128x32xf32>
    %c0_40 = arith.constant 0 : index
    %c0_41 = arith.constant 0 : index
    %92 = vector.load %arg13[%c0_40, %c0_41] : memref<128x32xf32, #tpu.memory_space<vmem>>, vector<128x32xf32>
    tpu.vector_store %arg13[%c0_40, %c0_41], %91 {strides = array<i32>} : memref<128x32xf32, #tpu.memory_space<vmem>>, vector<128x32xf32>,
    return
  }
  func.func @transform_0(%arg0: i32) -> (i32, i32) {
    %c0_i32 = arith.constant 0 : i32
    %c0_i32_0 = arith.constant 0 : i32
    return %arg0, %c0_i32 : i32, i32
  }
  func.func @transform_1(%arg0: i32) -> (i32, i32) {
    %c0_i32 = arith.constant 0 : i32
    %c0_i32_0 = arith.constant 0 : i32
    %c0_i32_1 = arith.constant 0 : i32
    return %c0_i32, %c0_i32_0 : i32, i32
  }
  func.func @transform_2(%arg0: i32) -> (i32, i32) {
    %c0_i32 = arith.constant 0 : i32
    %c0_i32_0 = arith.constant 0 : i32
    %c0_i32_1 = arith.constant 0 : i32
    return %c0_i32, %c0_i32_0 : i32, i32
  }
  func.func @transform_3(%arg0: i32) -> (i32, i32) {
    %c0_i32 = arith.constant 0 : i32
    %c0_i32_0 = arith.constant 0 : i32
    %c0_i32_1 = arith.constant 0 : i32
    return %c0_i32, %c0_i32_0 : i32, i32
  }
  func.func @transform_4(%arg0: i32) -> (i32, i32) {
    %c0_i32 = arith.constant 0 : i32
    %c0_i32_0 = arith.constant 0 : i32
    %c0_i32_1 = arith.constant 0 : i32
    return %c0_i32, %c0_i32_0 : i32, i32
  }
  func.func @transform_5(%arg0: i32) -> (i32, i32) {
    %c0_i32 = arith.constant 0 : i32
    %c0_i32_0 = arith.constant 0 : i32
    %c0_i32_1 = arith.constant 0 : i32
    return %c0_i32, %c0_i32_0 : i32, i32
  }
  func.func @transform_6(%arg0: i32) -> (i32, i32) {
    %c0_i32 = arith.constant 0 : i32
    %c0_i32_0 = arith.constant 0 : i32
    %c0_i32_1 = arith.constant 0 : i32
    return %c0_i32, %c0_i32_0 : i32, i32
  }
  func.func @transform_7(%arg0: i32) -> (i32, i32) {
    %c0_i32 = arith.constant 0 : i32
    %c0_i32_0 = arith.constant 0 : i32
    %c0_i32_1 = arith.constant 0 : i32
    return %c0_i32, %c0_i32_0 : i32, i32
  }
  func.func @transform_8(%arg0: i32) -> (i32, i32) {
    %c0_i32 = arith.constant 0 : i32
    %c0_i32_0 = arith.constant 0 : i32
    %c0_i32_1 = arith.constant 0 : i32
    return %c0_i32, %c0_i32_0 : i32, i32
  }
  func.func @transform_9(%arg0: i32) -> (i32, i32) {
    %c0_i32 = arith.constant 0 : i32
    %c0_i32_0 = arith.constant 0 : i32
    %c0_i32_1 = arith.constant 0 : i32
    return %c0_i32, %c0_i32_0 : i32, i32
  }
  func.func @transform_10(%arg0: i32) -> (i32, i32) {
    %c0_i32 = arith.constant 0 : i32
    %c0_i32_0 = arith.constant 0 : i32
    %c0_i32_1 = arith.constant 0 : i32
    return %c0_i32, %c0_i32_0 : i32, i32
  }
  func.func @transform_11(%arg0: i32) -> (i32, i32) {
    %c0_i32 = arith.constant 0 : i32
    %c0_i32_0 = arith.constant 0 : i32
    %c0_i32_1 = arith.constant 0 : i32
    return %c0_i32, %c0_i32_0 : i32, i32
  }
  func.func @transform_12(%arg0: i32) -> (i32, i32) {
    %c0_i32 = arith.constant 0 : i32
    %c0_i32_0 = arith.constant 0 : i32
    return %arg0, %c0_i32 : i32, i32
  }
}

</mosaic_0001>

<llo_original>
// kernel: tpu_custom_call.1
$region0: #{tpu_custom_call.1}
  #allocation0 [shape = 'u32[]', space=smem, size = 0x4, offset = 0x4, fixed_abs, tag = 'smem constant byte address 0x4 - core index']
  #allocation1 [shape = 'u32[72,128]{1,0:T(1,128)}', space=vmem, size = 0x9000, scoped, tag = 'internal scratch']
  %s0 = inlined_call_operand.vmem [shape: f32[512,32], index: 0, kind: input, shape index: {}]
  %s1 = inlined_call_operand.vmem [shape: f32[128,128], index: 1, kind: input, shape index: {}]
  %s2 = inlined_call_operand.vmem [shape: bf16[32,96], index: 2, kind: input, shape index: {}]
  %s3 = inlined_call_operand.vmem [shape: f32[1,32], index: 3, kind: input, shape index: {}]
  %s4 = inlined_call_operand.vmem [shape: f32[1,32], index: 4, kind: input, shape index: {}]
  %s5 = inlined_call_operand.vmem [shape: f32[1,32], index: 5, kind: input, shape index: {}]
  %s6 = inlined_call_operand.vmem [shape: bf16[32,128], index: 6, kind: input, shape index: {}]
  %s7 = inlined_call_operand.vmem [shape: f32[1,128], index: 7, kind: input, shape index: {}]
  %s8 = inlined_call_operand.vmem [shape: bf16[128,32], index: 8, kind: input, shape index: {}]
  %s9 = inlined_call_operand.vmem [shape: f32[1,32], index: 9, kind: input, shape index: {}]
  %s10 = inlined_call_operand.vmem [shape: f32[1,32], index: 10, kind: input, shape index: {}]
  %s11 = inlined_call_operand.vmem [shape: f32[1,32], index: 11, kind: input, shape index: {}]
  %s12 = inlined_call_operand.vmem [shape: f32[512,32], index: 12, kind: output, shape index: {}]
  %s13 = sld [smem:[#allocation0]]
  $region81: #{tpu_custom_call.1} parent=0
    _
  %s15 = ssub.s32 1, %s13
  %s16 = scalar_select 0, %s15, %s13
  loop: start=0, step=1, limit=6
  $region2: #{tpu_custom_call.1} parent=0 // loop_pre_header
    _
  $region3: #{tpu_custom_call.1} parent=0 // loop_header
    %s18 = sphi 0, %s22
    %p19 = scmp.ge.s32.totalorder %s18, 6
    %s28 = sphi 0, %s30
    %s31 = sphi 0, %s28
    %s32 = sphi 0, %s31
    %s48 = sphi 0, %s32
    %s52 = sphi 0, %s52
    %s54 = sphi 0, %s52
    %s55 = sphi 0, %s54
    %s69 = sphi 0, %s55
    %s73 = sphi 0, %s73
    %s75 = sphi 0, %s73
    %s76 = sphi 0, %s75
    %s90 = sphi 0, %s76
    %s94 = sphi 0, %s94
    %s96 = sphi 0, %s94
    %s97 = sphi 0, %s96
    %s111 = sphi 0, %s97
    %s115 = sphi 0, %s115
    %s117 = sphi 0, %s115
    %s118 = sphi 0, %s117
    %s132 = sphi 0, %s118
    %s136 = sphi 0, %s136
    %s138 = sphi 0, %s136
    %s139 = sphi 0, %s138
    %s153 = sphi 0, %s139
    %s157 = sphi 0, %s157
    %s159 = sphi 0, %s157
    %s160 = sphi 0, %s159
    %s174 = sphi 0, %s160
    %s178 = sphi 0, %s178
    %s180 = sphi 0, %s178
    %s181 = sphi 0, %s180
    %s195 = sphi 0, %s181
    %s199 = sphi 0, %s199
    %s201 = sphi 0, %s199
    %s202 = sphi 0, %s201
    %s216 = sphi 0, %s202
    %s220 = sphi 0, %s220
    %s222 = sphi 0, %s220
    %s223 = sphi 0, %s222
    %s237 = sphi 0, %s223
    %s241 = sphi 0, %s241
    %s243 = sphi 0, %s241
    %s244 = sphi 0, %s243
    %s258 = sphi 0, %s244
    %s262 = sphi 0, %s262
    %s264 = sphi 0, %s262
    %s265 = sphi 0, %s264
    %s279 = sphi 0, %s265
    %s285 = sphi 0, %s287
    %s288 = sphi 0, %s285
    %s289 = sphi 0, %s288
    %s305 = sphi 0, %s289
  $region4: #{tpu_custom_call.1} parent=0 // loop_header_branch
    %21 = sbr.rel (%p19) target = $region8
  $region5: #{tpu_custom_call.1} parent=0 // loop_body
    %s23 = ssub.s32 %s18, 1
    %s24 = ssub.s32 %s18, 2
    %s25 = sadd.s32 %s18, 1
    %s26 = ssub.s32 %s18, %s25
    %p27 = scmp.eq.s32.totalorder %s26, 0
    %s29 = sadd.s32 %s28, 1
    %s30 = scalar_select %p27, %s28, %s29
    %p33 = pneg %p27
    %p34 = scmp.eq.s32.totalorder %s18, 3
    %p35 = por %p33, %p34
    %p36 = scmp.ne.s32.totalorder %s28, %s31
    %p37 = scmp.eq.s32.totalorder %s18, 0
    %p38 = por %p36, %p37
    %p39 = scmp.ne.s32.totalorder %s28, %s31
    %p40 = scmp.eq.s32.totalorder %s23, 3
    %p41 = por %p39, %p40
    %p42 = scmp.ne.s32.totalorder %s31, %s32
    %p43 = scmp.eq.s32.totalorder %s23, 0
    %p44 = por %p42, %p43
    %p45 = scmp.ne.s32.totalorder %s31, %s32
    %p46 = scmp.eq.s32.totalorder %s24, 3
    %p47 = por %p45, %p46
    %p49 = scmp.ne.s32.totalorder %s32, %s48
    %p50 = scmp.eq.s32.totalorder %s24, 0
    %p51 = por %p49, %p50
    %s53 = sadd.s32 %s52, 1
    %p56 = scmp.eq.s32.totalorder %s18, 3
    %p57 = scmp.ne.s32.totalorder %s52, %s54
    %p58 = scmp.eq.s32.totalorder %s18, 0
    %p59 = por %p57, %p58
    %p60 = scmp.ne.s32.totalorder %s52, %s54
    %p61 = scmp.eq.s32.totalorder %s23, 3
    %p62 = por %p60, %p61
    %p63 = scmp.ne.s32.totalorder %s54, %s55
    %p64 = scmp.eq.s32.totalorder %s23, 0
    %p65 = por %p63, %p64
    %p66 = scmp.ne.s32.totalorder %s54, %s55
    %p67 = scmp.eq.s32.totalorder %s24, 3
    %p68 = por %p66, %p67
    %p70 = scmp.ne.s32.totalorder %s55, %s69
    %p71 = scmp.eq.s32.totalorder %s24, 0
    %p72 = por %p70, %p71
    %s74 = sadd.s32 %s73, 1
    %p77 = scmp.eq.s32.totalorder %s18, 3
    %p78 = scmp.ne.s32.totalorder %s73, %s75
    %p79 = scmp.eq.s32.totalorder %s18, 0
    %p80 = por %p78, %p79
    %p81 = scmp.ne.s32.totalorder %s73, %s75
    %p82 = scmp.eq.s32.totalorder %s23, 3
    %p83 = por %p81, %p82
    %p84 = scmp.ne.s32.totalorder %s75, %s76
    %p85 = scmp.eq.s32.totalorder %s23, 0
    %p86 = por %p84, %p85
    %p87 = scmp.ne.s32.totalorder %s75, %s76
    %p88 = scmp.eq.s32.totalorder %s24, 3
    %p89 = por %p87, %p88
    %p91 = scmp.ne.s32.totalorder %s76, %s90
    %p92 = scmp.eq.s32.totalorder %s24, 0
    %p93 = por %p91, %p92
    %s95 = sadd.s32 %s94, 1
    %p98 = scmp.eq.s32.totalorder %s18, 3
    %p99 = scmp.ne.s32.totalorder %s94, %s96
    %p100 = scmp.eq.s32.totalorder %s18, 0
    %p101 = por %p99, %p100
    %p102 = scmp.ne.s32.totalorder %s94, %s96
    %p103 = scmp.eq.s32.totalorder %s23, 3
    %p104 = por %p102, %p103
    %p105 = scmp.ne.s32.totalorder %s96, %s97
    %p106 = scmp.eq.s32.totalorder %s23, 0
    %p107 = por %p105, %p106
    %p108 = scmp.ne.s32.totalorder %s96, %s97
    %p109 = scmp.eq.s32.totalorder %s24, 3
    %p110 = por %p108, %p109
    %p112 = scmp.ne.s32.totalorder %s97, %s111
    %p113 = scmp.eq.s32.totalorder %s24, 0
    %p114 = por %p112, %p113
    %s116 = sadd.s32 %s115, 1
    %p119 = scmp.eq.s32.totalorder %s18, 3
    %p120 = scmp.ne.s32.totalorder %s115, %s117
    %p121 = scmp.eq.s32.totalorder %s18, 0
    %p122 = por %p120, %p121
    %p123 = scmp.ne.s32.totalorder %s115, %s117
    %p124 = scmp.eq.s32.totalorder %s23, 3
    %p125 = por %p123, %p124
    %p126 = scmp.ne.s32.totalorder %s117, %s118
    %p127 = scmp.eq.s32.totalorder %s23, 0
    %p128 = por %p126, %p127
    %p129 = scmp.ne.s32.totalorder %s117, %s118
    %p130 = scmp.eq.s32.totalorder %s24, 3
    %p131 = por %p129, %p130
    %p133 = scmp.ne.s32.totalorder %s118, %s132
    %p134 = scmp.eq.s32.totalorder %s24, 0
    %p135 = por %p133, %p134
    %s137 = sadd.s32 %s136, 1
    %p140 = scmp.eq.s32.totalorder %s18, 3
    %p141 = scmp.ne.s32.totalorder %s136, %s138
    %p142 = scmp.eq.s32.totalorder %s18, 0
    %p143 = por %p141, %p142
    %p144 = scmp.ne.s32.totalorder %s136, %s138
    %p145 = scmp.eq.s32.totalorder %s23, 3
    %p146 = por %p144, %p145
    %p147 = scmp.ne.s32.totalorder %s138, %s139
    %p148 = scmp.eq.s32.totalorder %s23, 0
    %p149 = por %p147, %p148
    %p150 = scmp.ne.s32.totalorder %s138, %s139
    %p151 = scmp.eq.s32.totalorder %s24, 3
    %p152 = por %p150, %p151
    %p154 = scmp.ne.s32.totalorder %s139, %s153
    %p155 = scmp.eq.s32.totalorder %s24, 0
    %p156 = por %p154, %p155
    %s158 = sadd.s32 %s157, 1
    %p161 = scmp.eq.s32.totalorder %s18, 3
    %p162 = scmp.ne.s32.totalorder %s157, %s159
    %p163 = scmp.eq.s32.totalorder %s18, 0
    %p164 = por %p162, %p163
    %p165 = scmp.ne.s32.totalorder %s157, %s159
    %p166 = scmp.eq.s32.totalorder %s23, 3
    %p167 = por %p165, %p166
    %p168 = scmp.ne.s32.totalorder %s159, %s160
    %p169 = scmp.eq.s32.totalorder %s23, 0
    %p170 = por %p168, %p169
    %p171 = scmp.ne.s32.totalorder %s159, %s160
    %p172 = scmp.eq.s32.totalorder %s24, 3
    %p173 = por %p171, %p172
    %p175 = scmp.ne.s32.totalorder %s160, %s174
    %p176 = scmp.eq.s32.totalorder %s24, 0
    %p177 = por %p175, %p176
    %s179 = sadd.s32 %s178, 1
    %p182 = scmp.eq.s32.totalorder %s18, 3
    %p183 = scmp.ne.s32.totalorder %s178, %s180
    %p184 = scmp.eq.s32.totalorder %s18, 0
    %p185 = por %p183, %p184
    %p186 = scmp.ne.s32.totalorder %s178, %s180
    %p187 = scmp.eq.s32.totalorder %s23, 3
    %p188 = por %p186, %p187
    %p189 = scmp.ne.s32.totalorder %s180, %s181
    %p190 = scmp.eq.s32.totalorder %s23, 0
    %p191 = por %p189, %p190
    %p192 = scmp.ne.s32.totalorder %s180, %s181
    %p193 = scmp.eq.s32.totalorder %s24, 3
    %p194 = por %p192, %p193
    %p196 = scmp.ne.s32.totalorder %s181, %s195
    %p197 = scmp.eq.s32.totalorder %s24, 0
    %p198 = por %p196, %p197
    %s200 = sadd.s32 %s199, 1
    %p203 = scmp.eq.s32.totalorder %s18, 3
    %p204 = scmp.ne.s32.totalorder %s199, %s201
    %p205 = scmp.eq.s32.totalorder %s18, 0
    %p206 = por %p204, %p205
    %p207 = scmp.ne.s32.totalorder %s199, %s201
    %p208 = scmp.eq.s32.totalorder %s23, 3
    %p209 = por %p207, %p208
    %p210 = scmp.ne.s32.totalorder %s201, %s202
    %p211 = scmp.eq.s32.totalorder %s23, 0
    %p212 = por %p210, %p211
    %p213 = scmp.ne.s32.totalorder %s201, %s202
    %p214 = scmp.eq.s32.totalorder %s24, 3
    %p215 = por %p213, %p214
    %p217 = scmp.ne.s32.totalorder %s202, %s216
    %p218 = scmp.eq.s32.totalorder %s24, 0
    %p219 = por %p217, %p218
    %s221 = sadd.s32 %s220, 1
    %p224 = scmp.eq.s32.totalorder %s18, 3
    %p225 = scmp.ne.s32.totalorder %s220, %s222
    %p226 = scmp.eq.s32.totalorder %s18, 0
    %p227 = por %p225, %p226
    %p228 = scmp.ne.s32.totalorder %s220, %s222
    %p229 = scmp.eq.s32.totalorder %s23, 3
    %p230 = por %p228, %p229
    %p231 = scmp.ne.s32.totalorder %s222, %s223
    %p232 = scmp.eq.s32.totalorder %s23, 0
    %p233 = por %p231, %p232
    %p234 = scmp.ne.s32.totalorder %s222, %s223
    %p235 = scmp.eq.s32.totalorder %s24, 3
    %p236 = por %p234, %p235
    %p238 = scmp.ne.s32.totalorder %s223, %s237
    %p239 = scmp.eq.s32.totalorder %s24, 0
    %p240 = por %p238, %p239
    %s242 = sadd.s32 %s241, 1
    %p245 = scmp.eq.s32.totalorder %s18, 3
    %p246 = scmp.ne.s32.totalorder %s241, %s243
    %p247 = scmp.eq.s32.totalorder %s18, 0
    %p248 = por %p246, %p247
    %p249 = scmp.ne.s32.totalorder %s241, %s243
    %p250 = scmp.eq.s32.totalorder %s23, 3
    %p251 = por %p249, %p250
    %p252 = scmp.ne.s32.totalorder %s243, %s244
    %p253 = scmp.eq.s32.totalorder %s23, 0
    %p254 = por %p252, %p253
    %p255 = scmp.ne.s32.totalorder %s243, %s244
    %p256 = scmp.eq.s32.totalorder %s24, 3
    %p257 = por %p255, %p256
    %p259 = scmp.ne.s32.totalorder %s244, %s258
    %p260 = scmp.eq.s32.totalorder %s24, 0
    %p261 = por %p259, %p260
    %s263 = sadd.s32 %s262, 1
    %p266 = scmp.eq.s32.totalorder %s18, 3
    %p267 = scmp.ne.s32.totalorder %s262, %s264
    %p268 = scmp.eq.s32.totalorder %s18, 0
    %p269 = por %p267, %p268
    %p270 = scmp.ne.s32.totalorder %s262, %s264
    %p271 = scmp.eq.s32.totalorder %s23, 3
    %p272 = por %p270, %p271
    %p273 = scmp.ne.s32.totalorder %s264, %s265
    %p274 = scmp.eq.s32.totalorder %s23, 0
    %p275 = por %p273, %p274
    %p276 = scmp.ne.s32.totalorder %s264, %s265
    %p277 = scmp.eq.s32.totalorder %s24, 3
    %p278 = por %p276, %p277
    %p280 = scmp.ne.s32.totalorder %s265, %s279
    %p281 = scmp.eq.s32.totalorder %s24, 0
    %p282 = por %p280, %p281
    %s283 = ssub.s32 %s18, %s25
    %p284 = scmp.eq.s32.totalorder %s283, 0
    %s286 = sadd.s32 %s285, 1
    %s287 = scalar_select %p284, %s285, %s286
    %p290 = pneg %p284
    %p291 = scmp.eq.s32.totalorder %s18, 3
    %p292 = por %p290, %p291
    %p293 = scmp.ne.s32.totalorder %s285, %s288
    %p294 = scmp.eq.s32.totalorder %s18, 0
    %p295 = por %p293, %p294
    %p296 = scmp.ne.s32.totalorder %s285, %s288
    %p297 = scmp.eq.s32.totalorder %s23, 3
    %p298 = por %p296, %p297
    %p299 = scmp.ne.s32.totalorder %s288, %s289
    %p300 = scmp.eq.s32.totalorder %s23, 0
    %p301 = por %p299, %p300
    %p302 = scmp.ne.s32.totalorder %s288, %s289
    %p303 = scmp.eq.s32.totalorder %s24, 3
    %p304 = por %p302, %p303
    %p306 = scmp.ne.s32.totalorder %s289, %s305
    %p307 = scmp.eq.s32.totalorder %s24, 0
    %p308 = por %p306, %p307
    %p309 = scmp.le.s32.totalorder 1, %s18
    %p310 = scmp.lt.s32.totalorder %s18, 5
    %p311 = pnand %p309, %p310
    %p312 = pneg %p311
    // Predicated region
    $region9: #{tpu_custom_call.1} parent=5 // pred_check
      _
    $region10: #{tpu_custom_call.1} parent=5 // pred_check_branch
      %314 = sbr.rel (%p311) target = $region12
    $region11: #{tpu_custom_call.1} parent=5 // pred_region
      %s315 = ssub.s32 %s18, 1
      // Predicated region
      $region13: #{tpu_custom_call.1} parent=11 // pred_check
        %p316 = pneg %p65
      $region14: #{tpu_custom_call.1} parent=11 // pred_check_branch
        %318 = sbr.rel (%p316) target = $region16
      $region15: #{tpu_custom_call.1} parent=11 // pred_region
        _
      $region16: #{tpu_custom_call.1} parent=11 // pred_fallthru
        _
      // Predicated region
      $region17: #{tpu_custom_call.1} parent=11 // pred_check
        %p319 = pneg %p86
      $region18: #{tpu_custom_call.1} parent=11 // pred_check_branch
        %321 = sbr.rel (%p319) target = $region20
      $region19: #{tpu_custom_call.1} parent=11 // pred_region
        _
      $region20: #{tpu_custom_call.1} parent=11 // pred_fallthru
        _
      // Predicated region
      $region21: #{tpu_custom_call.1} parent=11 // pred_check
        %p322 = pneg %p107
      $region22: #{tpu_custom_call.1} parent=11 // pred_check_branch
        %324 = sbr.rel (%p322) target = $region24
      $region23: #{tpu_custom_call.1} parent=11 // pred_region
        _
      $region24: #{tpu_custom_call.1} parent=11 // pred_fallthru
        _
      // Predicated region
      $region25: #{tpu_custom_call.1} parent=11 // pred_check
        %p325 = pneg %p128
      $region26: #{tpu_custom_call.1} parent=11 // pred_check_branch
        %327 = sbr.rel (%p325) target = $region28
      $region27: #{tpu_custom_call.1} parent=11 // pred_region
        _
      $region28: #{tpu_custom_call.1} parent=11 // pred_fallthru
        _
      // Predicated region
      $region29: #{tpu_custom_call.1} parent=11 // pred_check
        %p328 = pneg %p149
      $region30: #{tpu_custom_call.1} parent=11 // pred_check_branch
        %330 = sbr.rel (%p328) target = $region32
      $region31: #{tpu_custom_call.1} parent=11 // pred_region
        _
      $region32: #{tpu_custom_call.1} parent=11 // pred_fallthru
        _
      // Predicated region
      $region33: #{tpu_custom_call.1} parent=11 // pred_check
        %p331 = pneg %p170
      $region34: #{tpu_custom_call.1} parent=11 // pred_check_branch
        %333 = sbr.rel (%p331) target = $region36
      $region35: #{tpu_custom_call.1} parent=11 // pred_region
        _
      $region36: #{tpu_custom_call.1} parent=11 // pred_fallthru
        _
      // Predicated region
      $region37: #{tpu_custom_call.1} parent=11 // pred_check
        %p334 = pneg %p191
      $region38: #{tpu_custom_call.1} parent=11 // pred_check_branch
        %336 = sbr.rel (%p334) target = $region40
      $region39: #{tpu_custom_call.1} parent=11 // pred_region
        _
      $region40: #{tpu_custom_call.1} parent=11 // pred_fallthru
        _
      // Predicated region
      $region41: #{tpu_custom_call.1} parent=11 // pred_check
        %p337 = pneg %p212
      $region42: #{tpu_custom_call.1} parent=11 // pred_check_branch
        %339 = sbr.rel (%p337) target = $region44
      $region43: #{tpu_custom_call.1} parent=11 // pred_region
        _
      $region44: #{tpu_custom_call.1} parent=11 // pred_fallthru
        _
      // Predicated region
      $region45: #{tpu_custom_call.1} parent=11 // pred_check
        %p340 = pneg %p233
      $region46: #{tpu_custom_call.1} parent=11 // pred_check_branch
        %342 = sbr.rel (%p340) target = $region48
      $region47: #{tpu_custom_call.1} parent=11 // pred_region
        _
      $region48: #{tpu_custom_call.1} parent=11 // pred_fallthru
        _
      // Predicated region
      $region49: #{tpu_custom_call.1} parent=11 // pred_check
        %p343 = pneg %p254
      $region50: #{tpu_custom_call.1} parent=11 // pred_check_branch
        %345 = sbr.rel (%p343) target = $region52
      $region51: #{tpu_custom_call.1} parent=11 // pred_region
        _
      $region52: #{tpu_custom_call.1} parent=11 // pred_fallthru
        _
      // Predicated region
      $region53: #{tpu_custom_call.1} parent=11 // pred_check
        %p346 = pneg %p275
      $region54: #{tpu_custom_call.1} parent=11 // pred_check_branch
        %348 = sbr.rel (%p346) target = $region56
      $region55: #{tpu_custom_call.1} parent=11 // pred_region
        _
      $region56: #{tpu_custom_call.1} parent=11 // pred_fallthru
        _
    $region12: #{tpu_custom_call.1} parent=5 // pred_fallthru
      _
    %p349 = scmp.lt.s32.totalorder %s18, 4
    // Predicated region
    $region57: #{tpu_custom_call.1} parent=5 // pred_check
      %p350 = pneg %p349
    $region58: #{tpu_custom_call.1} parent=5 // pred_check_branch
      %352 = sbr.rel (%p350) target = $region60
    $region59: #{tpu_custom_call.1} parent=5 // pred_region
      // Predicated region
      $region61: #{tpu_custom_call.1} parent=59 // pred_check
        %p353 = pneg %p38
      $region62: #{tpu_custom_call.1} parent=59 // pred_check_branch
        %355 = sbr.rel (%p353) target = $region64
      $region63: #{tpu_custom_call.1} parent=59 // pred_region
        %s356 = smul.u32 16, %s18
        %p357 = scmp.lt.s32.totalorder %s356, 63
        %s358 = scalar_select %p357, %s356, 63
        %s359 = smul.addr %s358, 8
        %s360 = scalar_lea.vmem %s0, %s359
        %s361 = smul.u32 16, %s18
      $region64: #{tpu_custom_call.1} parent=59 // pred_fallthru
        _
    $region60: #{tpu_custom_call.1} parent=5 // pred_fallthru
      _
    %p362 = scmp.le.s32.totalorder 1, %s18
    %p363 = scmp.lt.s32.totalorder %s18, 5
    %p364 = pnand %p362, %p363
    %p365 = pneg %p364
    // Predicated region
    $region65: #{tpu_custom_call.1} parent=5 // pred_check
      _
    $region66: #{tpu_custom_call.1} parent=5 // pred_check_branch
      %367 = sbr.rel (%p364) target = $region68
    $region67: #{tpu_custom_call.1} parent=5 // pred_region
      %s368 = ssub.s32 %s18, 1
      %s369 = smul.u32 16, %s23
      %p370 = scmp.lt.s32.totalorder %s369, 63
      %s371 = scalar_select %p370, %s369, 63
      %s372 = smul.addr %s371, 8
      %s373 = scalar_lea.vmem %s0, %s372
      %p374 = pneg %p44
      %p375 = pneg %p41
      %p376 = pneg %p65
      %p377 = pneg %p62
      %p378 = pneg %p86
      %p379 = pneg %p83
      %p380 = pneg %p107
      %p381 = pneg %p104
      %p382 = pneg %p128
      %p383 = pneg %p125
      %p384 = pneg %p149
      %p385 = pneg %p146
      %p386 = pneg %p170
      %p387 = pneg %p167
      %p388 = pneg %p191
      %p389 = pneg %p188
      %p390 = pneg %p212
      %p391 = pneg %p209
      %p392 = pneg %p233
      %p393 = pneg %p230
      %p394 = pneg %p254
      %p395 = pneg %p251
      %p396 = pneg %p275
      %p397 = pneg %p272
      %p398 = pneg %p301
      %p399 = pneg %p298
      %s400 = smul.u32 16, %s23
      %p401 = scmp.lt.s32.totalorder %s400, 63
      %s402 = scalar_select %p401, %s400, 63
      %s403 = smul.addr %s402, 8
      %s404 = scalar_lea.vmem %s12, %s403
      %s405 = smul.u32 16, %s23
      %p406 = scmp.lt.s32.totalorder %s405, 63
      %s407 = scalar_select %p406, %s405, 63
      %s408 = smul.addr %s407, 8
      %s409 = scalar_lea.vmem %s0, %s408
      %s410 = smul.u32 16, %s23
      %s411 = smul.u32 16, %s23
      %p412 = scmp.lt.s32.totalorder %s411, 63
      %s413 = scalar_select %p412, %s411, 63
      %s414 = smul.addr %s413, 8
      %s415 = scalar_lea.vmem %s12, %s414
      %s416 = smul.u32 16, %s23
      %v418 = vld [vmem:[%s409] sm:$0xff]
      %v419 = vld [vmem:[%s409 + $0x8] sm:$0xff]
      %v420 = vld [vmem:[%s409 + $0x10] sm:$0xff]
      %v421 = vld [vmem:[%s409 + $0x18] sm:$0xff]
      %v422 = vld [vmem:[%s409 + $0x20] sm:$0xff]
      %v423 = vld [vmem:[%s409 + $0x28] sm:$0xff]
      %v424 = vld [vmem:[%s409 + $0x30] sm:$0xff]
      %v425 = vld [vmem:[%s409 + $0x38] sm:$0xff]
      %v426 = vld [vmem:[%s409 + $0x40] sm:$0xff]
      %v427 = vld [vmem:[%s409 + $0x48] sm:$0xff]
      %v428 = vld [vmem:[%s409 + $0x50] sm:$0xff]
      %v429 = vld [vmem:[%s409 + $0x58] sm:$0xff]
      %v430 = vld [vmem:[%s409 + $0x60] sm:$0xff]
      %v431 = vld [vmem:[%s409 + $0x68] sm:$0xff]
      %v432 = vld [vmem:[%s409 + $0x70] sm:$0xff]
      %v433 = vld [vmem:[%s409 + $0x78] sm:$0xff]
      %v434 = vpack.c.bf16 %v419, %v418
      %v435 = vpack.c.bf16 %v421, %v420
      %v436 = vpack.c.bf16 %v423, %v422
      %v437 = vpack.c.bf16 %v425, %v424
      %v438 = vpack.c.bf16 %v427, %v426
      %v439 = vpack.c.bf16 %v429, %v428
      %v440 = vpack.c.bf16 %v431, %v430
      %v441 = vpack.c.bf16 %v433, %v432
      %v442 = vld [vmem:[%s2] sm:$0xf]
      %v443 = vld [vmem:[%s2 + $0x4] sm:$0xf]
      %v444 = vld [vmem:[%s2 + $0x8] sm:$0xf]
      %v445 = vld [vmem:[%s2 + $0xc] sm:$0xf]
      %v450 = vunpack.c.l.b16 %v442
      %v451 = vunpack.c.l.b16 %v443
      %v452 = vunpack.c.l.b16 %v444
      %v453 = vunpack.c.l.b16 %v445
      %v454 = vpack.c.b16 %v451, %v450
      %v455 = vpack.c.b16 %v453, %v452
      %vm458 = vcmask 261120
      %v460 = vsel %vm458, %v434, 0
      %v463 = vsel %vm458, %v435, 0
      %v466 = vsel %vm458, %v436, 0
      %v469 = vsel %vm458, %v437, 0
      %v472 = vsel %vm458, %v438, 0
      %v475 = vsel %vm458, %v439, 0
      %v478 = vsel %vm458, %v440, 0
      %v481 = vsel %vm458, %v441, 0
      %483 = vmatpush.bf16.msra.mxu0 0
      %484 = vmatpush.bf16.msra.mxu0 0
      %485 = vmatpush.bf16.msra.mxu0 0
      %486 = vmatpush.bf16.msra.mxu0 0
      %487 = vmatpush.bf16.msra.mxu0 0
      %488 = vmatpush.bf16.msra.mxu0 0
      %489 = vmatpush.bf16.msra.mxu0 %v455
      %490 = vmatpush.bf16.msra.mxu0 %v454
      %491 = vmatmul.bf16.gmra.mxu0 %v460
      %v492 = vpop.f32.mrf.mxu0
      %v493 = vadd.f32 0.0, %v492
      %v494 = vpop.f32.mrf.mxu0
      %v495 = vadd.f32 0.0, %v494
      %496 = vmatmul.bf16.gmra.mxu0 %v463
      %v497 = vpop.f32.mrf.mxu0
      %v498 = vadd.f32 0.0, %v497
      %v499 = vpop.f32.mrf.mxu0
      %v500 = vadd.f32 0.0, %v499
      %501 = vmatmul.bf16.gmra.mxu0 %v466
      %v502 = vpop.f32.mrf.mxu0
      %v503 = vadd.f32 0.0, %v502
      %v504 = vpop.f32.mrf.mxu0
      %v505 = vadd.f32 0.0, %v504
      %506 = vmatmul.bf16.gmra.mxu0 %v469
      %v507 = vpop.f32.mrf.mxu0
      %v508 = vadd.f32 0.0, %v507
      %v509 = vpop.f32.mrf.mxu0
      %v510 = vadd.f32 0.0, %v509
      %511 = vmatmul.bf16.gmra.mxu0 %v472
      %v512 = vpop.f32.mrf.mxu0
      %v513 = vadd.f32 0.0, %v512
      %v514 = vpop.f32.mrf.mxu0
      %v515 = vadd.f32 0.0, %v514
      %516 = vmatmul.bf16.gmra.mxu0 %v475
      %v517 = vpop.f32.mrf.mxu0
      %v518 = vadd.f32 0.0, %v517
      %v519 = vpop.f32.mrf.mxu0
      %v520 = vadd.f32 0.0, %v519
      %521 = vmatmul.bf16.gmra.mxu0 %v478
      %v522 = vpop.f32.mrf.mxu0
      %v523 = vadd.f32 0.0, %v522
      %v524 = vpop.f32.mrf.mxu0
      %v525 = vadd.f32 0.0, %v524
      %526 = vmatmul.bf16.gmra.mxu0 %v481
      %v527 = vpop.f32.mrf.mxu0
      %v528 = vadd.f32 0.0, %v527
      %v529 = vpop.f32.mrf.mxu0
      %v530 = vadd.f32 0.0, %v529
      %531 = vdwg.mxu0
      %v532 = vpack.c.bf16 %v495, %v493
      %v533 = vpack.c.bf16 %v500, %v498
      %v534 = vpack.c.bf16 %v505, %v503
      %v535 = vpack.c.bf16 %v510, %v508
      %v536 = vpack.c.bf16 %v515, %v513
      %v537 = vpack.c.bf16 %v520, %v518
      %v538 = vpack.c.bf16 %v525, %v523
      %v539 = vpack.c.bf16 %v530, %v528
      %v540 = vld [vmem:[%s1] sm:$0xff]
      %v541 = vld [vmem:[%s1 + $0x8] sm:$0xff]
      %v542 = vld [vmem:[%s1 + $0x10] sm:$0xff]
      %v543 = vld [vmem:[%s1 + $0x18] sm:$0xff]
      %v544 = vld [vmem:[%s1 + $0x20] sm:$0xff]
      %v545 = vld [vmem:[%s1 + $0x28] sm:$0xff]
      %v546 = vld [vmem:[%s1 + $0x30] sm:$0xff]
      %v547 = vld [vmem:[%s1 + $0x38] sm:$0xff]
      %v548 = vld [vmem:[%s1 + $0x40] sm:$0xff]
      %v549 = vld [vmem:[%s1 + $0x48] sm:$0xff]
      %v550 = vld [vmem:[%s1 + $0x50] sm:$0xff]
      %v551 = vld [vmem:[%s1 + $0x58] sm:$0xff]
      %v552 = vld [vmem:[%s1 + $0x60] sm:$0xff]
      %v553 = vld [vmem:[%s1 + $0x68] sm:$0xff]
      %v554 = vld [vmem:[%s1 + $0x70] sm:$0xff]
      %v555 = vld [vmem:[%s1 + $0x78] sm:$0xff]
      %564 = vrot.lane.b32.xlu0 %v532, 96
      %v565 = vpop.permute.xlu0 %564
      %566 = vrot.lane.b32.xlu0 %v533, 96
      %v567 = vpop.permute.xlu0 %566
      %568 = vrot.lane.b32.xlu0 %v534, 96
      %v569 = vpop.permute.xlu0 %568
      %570 = vrot.lane.b32.xlu0 %v535, 96
      %v571 = vpop.permute.xlu0 %570
      %572 = vrot.lane.b32.xlu0 %v536, 96
      %v573 = vpop.permute.xlu0 %572
      %574 = vrot.lane.b32.xlu0 %v537, 96
      %v575 = vpop.permute.xlu0 %574
      %576 = vrot.lane.b32.xlu0 %v538, 96
      %v577 = vpop.permute.xlu0 %576
      %578 = vrot.lane.b32.xlu0 %v539, 96
      %v579 = vpop.permute.xlu0 %578
      %v581 = vsel %vm458, %v532, 0
      %v584 = vsel %vm458, %v533, 0
      %v587 = vsel %vm458, %v534, 0
      %v590 = vsel %vm458, %v535, 0
      %v593 = vsel %vm458, %v536, 0
      %v596 = vsel %vm458, %v537, 0
      %v599 = vsel %vm458, %v538, 0
      %v602 = vsel %vm458, %v539, 0
      %v605 = vsel %vm458, %v565, 0
      %v608 = vsel %vm458, %v567, 0
      %v611 = vsel %vm458, %v569, 0
      %v614 = vsel %vm458, %v571, 0
      %v617 = vsel %vm458, %v573, 0
      %v620 = vsel %vm458, %v575, 0
      %v623 = vsel %vm458, %v577, 0
      %v626 = vsel %vm458, %v579, 0
      %628 = vmatpush.bf16.xpose.msra.mxu0 %v626
      %629 = vmatpush.bf16.xpose.msra.mxu0 %v623
      %630 = vmatpush.bf16.xpose.msra.mxu0 %v620
      %631 = vmatpush.bf16.xpose.msra.mxu0 %v617
      %632 = vmatpush.bf16.xpose.msra.mxu0 %v614
      %633 = vmatpush.bf16.xpose.msra.mxu0 %v611
      %634 = vmatpush.bf16.xpose.msra.mxu0 %v608
      %635 = vmatpush.bf16.xpose.msra.mxu0 %v605
      %636 = vmatmul.bf16.gmra.mxu0 %v581
      %v637 = vpop.f32.mrf.mxu0
      %v638 = vadd.f32 %v540, %v637
      %v639 = vpop.f32.mrf.mxu0
      %v640 = vadd.f32 %v541, %v639
      %641 = vmatmul.bf16.gmra.mxu0 %v584
      %v642 = vpop.f32.mrf.mxu0
      %v643 = vadd.f32 %v542, %v642
      %v644 = vpop.f32.mrf.mxu0
      %v645 = vadd.f32 %v543, %v644
      %646 = vmatmul.bf16.gmra.mxu0 %v587
      %v647 = vpop.f32.mrf.mxu0
      %v648 = vadd.f32 %v544, %v647
      %v649 = vpop.f32.mrf.mxu0
      %v650 = vadd.f32 %v545, %v649
      %651 = vmatmul.bf16.gmra.mxu0 %v590
      %v652 = vpop.f32.mrf.mxu0
      %v653 = vadd.f32 %v546, %v652
      %v654 = vpop.f32.mrf.mxu0
      %v655 = vadd.f32 %v547, %v654
      %656 = vmatmul.bf16.gmra.mxu0 %v593
      %v657 = vpop.f32.mrf.mxu0
      %v658 = vadd.f32 %v548, %v657
      %v659 = vpop.f32.mrf.mxu0
      %v660 = vadd.f32 %v549, %v659
      %661 = vmatmul.bf16.gmra.mxu0 %v596
      %v662 = vpop.f32.mrf.mxu0
      %v663 = vadd.f32 %v550, %v662
      %v664 = vpop.f32.mrf.mxu0
      %v665 = vadd.f32 %v551, %v664
      %666 = vmatmul.bf16.gmra.mxu0 %v599
      %v667 = vpop.f32.mrf.mxu0
      %v668 = vadd.f32 %v552, %v667
      %v669 = vpop.f32.mrf.mxu0
      %v670 = vadd.f32 %v553, %v669
      %671 = vmatmul.bf16.gmra.mxu0 %v602
      %v672 = vpop.f32.mrf.mxu0
      %v673 = vadd.f32 %v554, %v672
      %v674 = vpop.f32.mrf.mxu0
      %v675 = vadd.f32 %v555, %v674
      %676 = vdwg.mxu0
      %677 = vmax.xlane.f32.xlu0 %v638
      %v678 = vpop.xlane.xlu0 %677
      %679 = vmax.xlane.f32.xlu0 %v640
      %v680 = vpop.xlane.xlu0 %679
      %681 = vmax.xlane.f32.xlu0 %v643
      %v682 = vpop.xlane.xlu0 %681
      %683 = vmax.xlane.f32.xlu0 %v645
      %v684 = vpop.xlane.xlu0 %683
      %685 = vmax.xlane.f32.xlu0 %v648
      %v686 = vpop.xlane.xlu0 %685
      %687 = vmax.xlane.f32.xlu0 %v650
      %v688 = vpop.xlane.xlu0 %687
      %689 = vmax.xlane.f32.xlu0 %v653
      %v690 = vpop.xlane.xlu0 %689
      %691 = vmax.xlane.f32.xlu0 %v655
      %v692 = vpop.xlane.xlu0 %691
      %693 = vmax.xlane.f32.xlu0 %v658
      %v694 = vpop.xlane.xlu0 %693
      %695 = vmax.xlane.f32.xlu0 %v660
      %v696 = vpop.xlane.xlu0 %695
      %697 = vmax.xlane.f32.xlu0 %v663
      %v698 = vpop.xlane.xlu0 %697
      %699 = vmax.xlane.f32.xlu0 %v665
      %v700 = vpop.xlane.xlu0 %699
      %701 = vmax.xlane.f32.xlu0 %v668
      %v702 = vpop.xlane.xlu0 %701
      %703 = vmax.xlane.f32.xlu0 %v670
      %v704 = vpop.xlane.xlu0 %703
      %705 = vmax.xlane.f32.xlu0 %v673
      %v706 = vpop.xlane.xlu0 %705
      %707 = vmax.xlane.f32.xlu0 %v675
      %v708 = vpop.xlane.xlu0 %707
      %v709 = vsub.f32 %v638, %v678
      %v710 = vsub.f32 %v640, %v680
      %v711 = vsub.f32 %v643, %v682
      %v712 = vsub.f32 %v645, %v684
      %v713 = vsub.f32 %v648, %v686
      %v714 = vsub.f32 %v650, %v688
      %v715 = vsub.f32 %v653, %v690
      %v716 = vsub.f32 %v655, %v692
      %v717 = vsub.f32 %v658, %v694
      %v718 = vsub.f32 %v660, %v696
      %v719 = vsub.f32 %v663, %v698
      %v720 = vsub.f32 %v665, %v700
      %v721 = vsub.f32 %v668, %v702
      %v722 = vsub.f32 %v670, %v704
      %v723 = vsub.f32 %v673, %v706
      %v724 = vsub.f32 %v675, %v708
      %v725 = vmul.f32 %v709, 1.442695
      %v726 = vpow.pop %v725
      %v727 = vmul.f32 %v710, 1.442695
      %v728 = vpow.pop %v727
      %v729 = vmul.f32 %v711, 1.442695
      %v730 = vpow.pop %v729
      %v731 = vmul.f32 %v712, 1.442695
      %v732 = vpow.pop %v731
      %v733 = vmul.f32 %v713, 1.442695
      %v734 = vpow.pop %v733
      %v735 = vmul.f32 %v714, 1.442695
      %v736 = vpow.pop %v735
      %v737 = vmul.f32 %v715, 1.442695
      %v738 = vpow.pop %v737
      %v739 = vmul.f32 %v716, 1.442695
      %v740 = vpow.pop %v739
      %v741 = vmul.f32 %v717, 1.442695
      %v742 = vpow.pop %v741
      %v743 = vmul.f32 %v718, 1.442695
      %v744 = vpow.pop %v743
      %v745 = vmul.f32 %v719, 1.442695
      %v746 = vpow.pop %v745
      %v747 = vmul.f32 %v720, 1.442695
      %v748 = vpow.pop %v747
      %v749 = vmul.f32 %v721, 1.442695
      %v750 = vpow.pop %v749
      %v751 = vmul.f32 %v722, 1.442695
      %v752 = vpow.pop %v751
      %v753 = vmul.f32 %v723, 1.442695
      %v754 = vpow.pop %v753
      %v755 = vmul.f32 %v724, 1.442695
      %v756 = vpow.pop %v755
      %757 = vadd.xlane.f32.xlu0 %v726
      %v758 = vpop.xlane.xlu0 %757
      %759 = vadd.xlane.f32.xlu0 %v728
      %v760 = vpop.xlane.xlu0 %759
      %761 = vadd.xlane.f32.xlu0 %v730
      %v762 = vpop.xlane.xlu0 %761
      %763 = vadd.xlane.f32.xlu0 %v732
      %v764 = vpop.xlane.xlu0 %763
      %765 = vadd.xlane.f32.xlu0 %v734
      %v766 = vpop.xlane.xlu0 %765
      %767 = vadd.xlane.f32.xlu0 %v736
      %v768 = vpop.xlane.xlu0 %767
      %769 = vadd.xlane.f32.xlu0 %v738
      %v770 = vpop.xlane.xlu0 %769
      %771 = vadd.xlane.f32.xlu0 %v740
      %v772 = vpop.xlane.xlu0 %771
      %773 = vadd.xlane.f32.xlu0 %v742
      %v774 = vpop.xlane.xlu0 %773
      %775 = vadd.xlane.f32.xlu0 %v744
      %v776 = vpop.xlane.xlu0 %775
      %777 = vadd.xlane.f32.xlu0 %v746
      %v778 = vpop.xlane.xlu0 %777
      %779 = vadd.xlane.f32.xlu0 %v748
      %v780 = vpop.xlane.xlu0 %779
      %781 = vadd.xlane.f32.xlu0 %v750
      %v782 = vpop.xlane.xlu0 %781
      %783 = vadd.xlane.f32.xlu0 %v752
      %v784 = vpop.xlane.xlu0 %783
      %785 = vadd.xlane.f32.xlu0 %v754
      %v786 = vpop.xlane.xlu0 %785
      %787 = vadd.xlane.f32.xlu0 %v756
      %v788 = vpop.xlane.xlu0 %787
      %v789 = vrcp.pop %v758
      %v790 = vrcp.pop %v760
      %v791 = vrcp.pop %v762
      %v792 = vrcp.pop %v764
      %v793 = vrcp.pop %v766
      %v794 = vrcp.pop %v768
      %v795 = vrcp.pop %v770
      %v796 = vrcp.pop %v772
      %v797 = vrcp.pop %v774
      %v798 = vrcp.pop %v776
      %v799 = vrcp.pop %v778
      %v800 = vrcp.pop %v780
      %v801 = vrcp.pop %v782
      %v802 = vrcp.pop %v784
      %v803 = vrcp.pop %v786
      %v804 = vrcp.pop %v788
      %v805 = vmul.f32 %v726, %v789
      %v806 = vmul.f32 %v728, %v790
      %v807 = vmul.f32 %v730, %v791
      %v808 = vmul.f32 %v732, %v792
      %v809 = vmul.f32 %v734, %v793
      %v810 = vmul.f32 %v736, %v794
      %v811 = vmul.f32 %v738, %v795
      %v812 = vmul.f32 %v740, %v796
      %v813 = vmul.f32 %v742, %v797
      %v814 = vmul.f32 %v744, %v798
      %v815 = vmul.f32 %v746, %v799
      %v816 = vmul.f32 %v748, %v800
      %v817 = vmul.f32 %v750, %v801
      %v818 = vmul.f32 %v752, %v802
      %v819 = vmul.f32 %v754, %v803
      %v820 = vmul.f32 %v756, %v804
      %v821 = vpack.c.bf16 %v806, %v805
      %v822 = vpack.c.bf16 %v808, %v807
      %v823 = vpack.c.bf16 %v810, %v809
      %v824 = vpack.c.bf16 %v812, %v811
      %v825 = vpack.c.bf16 %v814, %v813
      %v826 = vpack.c.bf16 %v816, %v815
      %v827 = vpack.c.bf16 %v818, %v817
      %v828 = vpack.c.bf16 %v820, %v819
      %v829 = vld [vmem:[%s3] sm:$0x1]
      %v831 = vperm.slane %v829, 0
      %833 = vrot.lane.b32.xlu0 %v532, 64
      %v834 = vpop.permute.xlu0 %833
      %835 = vrot.lane.b32.xlu0 %v533, 64
      %v836 = vpop.permute.xlu0 %835
      %837 = vrot.lane.b32.xlu0 %v534, 64
      %v838 = vpop.permute.xlu0 %837
      %839 = vrot.lane.b32.xlu0 %v535, 64
      %v840 = vpop.permute.xlu0 %839
      %841 = vrot.lane.b32.xlu0 %v536, 64
      %v842 = vpop.permute.xlu0 %841
      %843 = vrot.lane.b32.xlu0 %v537, 64
      %v844 = vpop.permute.xlu0 %843
      %845 = vrot.lane.b32.xlu0 %v538, 64
      %v846 = vpop.permute.xlu0 %845
      %847 = vrot.lane.b32.xlu0 %v539, 64
      %v848 = vpop.permute.xlu0 %847
      %857 = vmatpush.bf16.msra.mxu0 %v848
      %858 = vmatpush.bf16.msra.mxu0 %v846
      %859 = vmatpush.bf16.msra.mxu0 %v844
      %860 = vmatpush.bf16.msra.mxu0 %v842
      %861 = vmatpush.bf16.msra.mxu0 %v840
      %862 = vmatpush.bf16.msra.mxu0 %v838
      %863 = vmatpush.bf16.msra.mxu0 %v836
      %864 = vmatpush.bf16.msra.mxu0 %v834
      %865 = vmatmul.bf16.gmra.mxu0 %v821
      %v866 = vpop.f32.mrf.mxu0
      %v867 = vadd.f32 %v831, %v866
      %v868 = vpop.f32.mrf.mxu0
      %v869 = vadd.f32 %v831, %v868
      %870 = vmatmul.bf16.gmra.mxu0 %v822
      %v871 = vpop.f32.mrf.mxu0
      %v872 = vadd.f32 %v831, %v871
      %v873 = vpop.f32.mrf.mxu0
      %v874 = vadd.f32 %v831, %v873
      %875 = vmatmul.bf16.gmra.mxu0 %v823
      %v876 = vpop.f32.mrf.mxu0
      %v877 = vadd.f32 %v831, %v876
      %v878 = vpop.f32.mrf.mxu0
      %v879 = vadd.f32 %v831, %v878
      %880 = vmatmul.bf16.gmra.mxu0 %v824
      %v881 = vpop.f32.mrf.mxu0
      %v882 = vadd.f32 %v831, %v881
      %v883 = vpop.f32.mrf.mxu0
      %v884 = vadd.f32 %v831, %v883
      %885 = vmatmul.bf16.gmra.mxu0 %v825
      %v886 = vpop.f32.mrf.mxu0
      %v887 = vadd.f32 %v831, %v886
      %v888 = vpop.f32.mrf.mxu0
      %v889 = vadd.f32 %v831, %v888
      %890 = vmatmul.bf16.gmra.mxu0 %v826
      %v891 = vpop.f32.mrf.mxu0
      %v892 = vadd.f32 %v831, %v891
      %v893 = vpop.f32.mrf.mxu0
      %v894 = vadd.f32 %v831, %v893
      %895 = vmatmul.bf16.gmra.mxu0 %v827
      %v896 = vpop.f32.mrf.mxu0
      %v897 = vadd.f32 %v831, %v896
      %v898 = vpop.f32.mrf.mxu0
      %v899 = vadd.f32 %v831, %v898
      %900 = vmatmul.bf16.gmra.mxu0 %v828
      %v901 = vpop.f32.mrf.mxu0
      %v902 = vadd.f32 %v831, %v901
      %v903 = vpop.f32.mrf.mxu0
      %v904 = vadd.f32 %v831, %v903
      %905 = vdwg.mxu0
      %v906 = vadd.f32 %v418, %v867
      %v907 = vadd.f32 %v419, %v869
      %v908 = vadd.f32 %v420, %v872
      %v909 = vadd.f32 %v421, %v874
      %v910 = vadd.f32 %v422, %v877
      %v911 = vadd.f32 %v423, %v879
      %v912 = vadd.f32 %v424, %v882
      %v913 = vadd.f32 %v425, %v884
      %v914 = vadd.f32 %v426, %v887
      %v915 = vadd.f32 %v427, %v889
      %v916 = vadd.f32 %v428, %v892
      %v917 = vadd.f32 %v429, %v894
      %v918 = vadd.f32 %v430, %v897
      %v919 = vadd.f32 %v431, %v899
      %v920 = vadd.f32 %v432, %v902
      %v921 = vadd.f32 %v433, %v904
      %v922 = vld [vmem:[%s4] sm:$0x1]
      %v923 = vld [vmem:[%s5] sm:$0x1]
      %v924 = vsel %vm458, %v906, 0.0
      %925 = vadd.xlane.f32.xlu0 %v924
      %v926 = vpop.xlane.xlu0 %925
      %v927 = vsel %vm458, %v907, 0.0
      %928 = vadd.xlane.f32.xlu0 %v927
      %v929 = vpop.xlane.xlu0 %928
      %v930 = vsel %vm458, %v908, 0.0
      %931 = vadd.xlane.f32.xlu0 %v930
      %v932 = vpop.xlane.xlu0 %931
      %v933 = vsel %vm458, %v909, 0.0
      %934 = vadd.xlane.f32.xlu0 %v933
      %v935 = vpop.xlane.xlu0 %934
      %v936 = vsel %vm458, %v910, 0.0
      %937 = vadd.xlane.f32.xlu0 %v936
      %v938 = vpop.xlane.xlu0 %937
      %v939 = vsel %vm458, %v911, 0.0
      %940 = vadd.xlane.f32.xlu0 %v939
      %v941 = vpop.xlane.xlu0 %940
      %v942 = vsel %vm458, %v912, 0.0
      %943 = vadd.xlane.f32.xlu0 %v942
      %v944 = vpop.xlane.xlu0 %943
      %v945 = vsel %vm458, %v913, 0.0
      %946 = vadd.xlane.f32.xlu0 %v945
      %v947 = vpop.xlane.xlu0 %946
      %v948 = vsel %vm458, %v914, 0.0
      %949 = vadd.xlane.f32.xlu0 %v948
      %v950 = vpop.xlane.xlu0 %949
      %v951 = vsel %vm458, %v915, 0.0
      %952 = vadd.xlane.f32.xlu0 %v951
      %v953 = vpop.xlane.xlu0 %952
      %v954 = vsel %vm458, %v916, 0.0
      %955 = vadd.xlane.f32.xlu0 %v954
      %v956 = vpop.xlane.xlu0 %955
      %v957 = vsel %vm458, %v917, 0.0
      %958 = vadd.xlane.f32.xlu0 %v957
      %v959 = vpop.xlane.xlu0 %958
      %v960 = vsel %vm458, %v918, 0.0
      %961 = vadd.xlane.f32.xlu0 %v960
      %v962 = vpop.xlane.xlu0 %961
      %v963 = vsel %vm458, %v919, 0.0
      %964 = vadd.xlane.f32.xlu0 %v963
      %v965 = vpop.xlane.xlu0 %964
      %v966 = vsel %vm458, %v920, 0.0
      %967 = vadd.xlane.f32.xlu0 %v966
      %v968 = vpop.xlane.xlu0 %967
      %v969 = vsel %vm458, %v921, 0.0
      %970 = vadd.xlane.f32.xlu0 %v969
      %v971 = vpop.xlane.xlu0 %970
      %v972 = vrcp.pop 32.0
      %v973 = vmul.f32 32.0, %v972
      %v974 = vsub.f32 1.0, %v973
      %v975 = vmul.f32 %v972, %v974
      %v976 = vadd.f32 %v972, %v975
      %vm977 = vweird.f32 %v972
      %v978 = vsel %vm977, %v972, %v976
      %v979 = vmul.f32 %v926, %v978
      %v980 = vmul.f32 %v929, %v978
      %v981 = vmul.f32 %v932, %v978
      %v982 = vmul.f32 %v935, %v978
      %v983 = vmul.f32 %v938, %v978
      %v984 = vmul.f32 %v941, %v978
      %v985 = vmul.f32 %v944, %v978
      %v986 = vmul.f32 %v947, %v978
      %v987 = vmul.f32 %v950, %v978
      %v988 = vmul.f32 %v953, %v978
      %v989 = vmul.f32 %v956, %v978
      %v990 = vmul.f32 %v959, %v978
      %v991 = vmul.f32 %v962, %v978
      %v992 = vmul.f32 %v965, %v978
      %v993 = vmul.f32 %v968, %v978
      %v994 = vmul.f32 %v971, %v978
      %v995 = vmul.f32 %v906, %v906
      %v996 = vmul.f32 %v907, %v907
      %v997 = vmul.f32 %v908, %v908
      %v998 = vmul.f32 %v909, %v909
      %v999 = vmul.f32 %v910, %v910
      %v1000 = vmul.f32 %v911, %v911
      %v1001 = vmul.f32 %v912, %v912
      %v1002 = vmul.f32 %v913, %v913
      %v1003 = vmul.f32 %v914, %v914
      %v1004 = vmul.f32 %v915, %v915
      %v1005 = vmul.f32 %v916, %v916
      %v1006 = vmul.f32 %v917, %v917
      %v1007 = vmul.f32 %v918, %v918
      %v1008 = vmul.f32 %v919, %v919
      %v1009 = vmul.f32 %v920, %v920
      %v1010 = vmul.f32 %v921, %v921
      %v1011 = vsel %vm458, %v995, 0.0
      %1012 = vadd.xlane.f32.xlu0 %v1011
      %v1013 = vpop.xlane.xlu0 %1012
      %v1014 = vsel %vm458, %v996, 0.0
      %1015 = vadd.xlane.f32.xlu0 %v1014
      %v1016 = vpop.xlane.xlu0 %1015
      %v1017 = vsel %vm458, %v997, 0.0
      %1018 = vadd.xlane.f32.xlu0 %v1017
      %v1019 = vpop.xlane.xlu0 %1018
      %v1020 = vsel %vm458, %v998, 0.0
      %1021 = vadd.xlane.f32.xlu0 %v1020
      %v1022 = vpop.xlane.xlu0 %1021
      %v1023 = vsel %vm458, %v999, 0.0
      %1024 = vadd.xlane.f32.xlu0 %v1023
      %v1025 = vpop.xlane.xlu0 %1024
      %v1026 = vsel %vm458, %v1000, 0.0
      %1027 = vadd.xlane.f32.xlu0 %v1026
      %v1028 = vpop.xlane.xlu0 %1027
      %v1029 = vsel %vm458, %v1001, 0.0
      %1030 = vadd.xlane.f32.xlu0 %v1029
      %v1031 = vpop.xlane.xlu0 %1030
      %v1032 = vsel %vm458, %v1002, 0.0
      %1033 = vadd.xlane.f32.xlu0 %v1032
      %v1034 = vpop.xlane.xlu0 %1033
      %v1035 = vsel %vm458, %v1003, 0.0
      %1036 = vadd.xlane.f32.xlu0 %v1035
      %v1037 = vpop.xlane.xlu0 %1036
      %v1038 = vsel %vm458, %v1004, 0.0
      %1039 = vadd.xlane.f32.xlu0 %v1038
      %v1040 = vpop.xlane.xlu0 %1039
      %v1041 = vsel %vm458, %v1005, 0.0
      %1042 = vadd.xlane.f32.xlu0 %v1041
      %v1043 = vpop.xlane.xlu0 %1042
      %v1044 = vsel %vm458, %v1006, 0.0
      %1045 = vadd.xlane.f32.xlu0 %v1044
      %v1046 = vpop.xlane.xlu0 %1045
      %v1047 = vsel %vm458, %v1007, 0.0
      %1048 = vadd.xlane.f32.xlu0 %v1047
      %v1049 = vpop.xlane.xlu0 %1048
      %v1050 = vsel %vm458, %v1008, 0.0
      %1051 = vadd.xlane.f32.xlu0 %v1050
      %v1052 = vpop.xlane.xlu0 %1051
      %v1053 = vsel %vm458, %v1009, 0.0
      %1054 = vadd.xlane.f32.xlu0 %v1053
      %v1055 = vpop.xlane.xlu0 %1054
      %v1056 = vsel %vm458, %v1010, 0.0
      %1057 = vadd.xlane.f32.xlu0 %v1056
      %v1058 = vpop.xlane.xlu0 %1057
      %v1059 = vmul.f32 %v1013, %v978
      %v1060 = vmul.f32 %v1016, %v978
      %v1061 = vmul.f32 %v1019, %v978
      %v1062 = vmul.f32 %v1022, %v978
      %v1063 = vmul.f32 %v1025, %v978
      %v1064 = vmul.f32 %v1028, %v978
      %v1065 = vmul.f32 %v1031, %v978
      %v1066 = vmul.f32 %v1034, %v978
      %v1067 = vmul.f32 %v1037, %v978
      %v1068 = vmul.f32 %v1040, %v978
      %v1069 = vmul.f32 %v1043, %v978
      %v1070 = vmul.f32 %v1046, %v978
      %v1071 = vmul.f32 %v1049, %v978
      %v1072 = vmul.f32 %v1052, %v978
      %v1073 = vmul.f32 %v1055, %v978
      %v1074 = vmul.f32 %v1058, %v978
      %v1075 = vmul.f32 %v979, %v979
      %v1076 = vmul.f32 %v980, %v980
      %v1077 = vmul.f32 %v981, %v981
      %v1078 = vmul.f32 %v982, %v982
      %v1079 = vmul.f32 %v983, %v983
      %v1080 = vmul.f32 %v984, %v984
      %v1081 = vmul.f32 %v985, %v985
      %v1082 = vmul.f32 %v986, %v986
      %v1083 = vmul.f32 %v987, %v987
      %v1084 = vmul.f32 %v988, %v988
      %v1085 = vmul.f32 %v989, %v989
      %v1086 = vmul.f32 %v990, %v990
      %v1087 = vmul.f32 %v991, %v991
      %v1088 = vmul.f32 %v992, %v992
      %v1089 = vmul.f32 %v993, %v993
      %v1090 = vmul.f32 %v994, %v994
      %v1091 = vsub.f32 %v1059, %v1075
      %v1092 = vsub.f32 %v1060, %v1076
      %v1093 = vsub.f32 %v1061, %v1077
      %v1094 = vsub.f32 %v1062, %v1078
      %v1095 = vsub.f32 %v1063, %v1079
      %v1096 = vsub.f32 %v1064, %v1080
      %v1097 = vsub.f32 %v1065, %v1081
      %v1098 = vsub.f32 %v1066, %v1082
      %v1099 = vsub.f32 %v1067, %v1083
      %v1100 = vsub.f32 %v1068, %v1084
      %v1101 = vsub.f32 %v1069, %v1085
      %v1102 = vsub.f32 %v1070, %v1086
      %v1103 = vsub.f32 %v1071, %v1087
      %v1104 = vsub.f32 %v1072, %v1088
      %v1105 = vsub.f32 %v1073, %v1089
      %v1106 = vsub.f32 %v1074, %v1090
      %v1107 = vadd.f32 %v1091, 1e-05
      %v1108 = vadd.f32 %v1092, 1e-05
      %v1109 = vadd.f32 %v1093, 1e-05
      %v1110 = vadd.f32 %v1094, 1e-05
      %v1111 = vadd.f32 %v1095, 1e-05
      %v1112 = vadd.f32 %v1096, 1e-05
      %v1113 = vadd.f32 %v1097, 1e-05
      %v1114 = vadd.f32 %v1098, 1e-05
      %v1115 = vadd.f32 %v1099, 1e-05
      %v1116 = vadd.f32 %v1100, 1e-05
      %v1117 = vadd.f32 %v1101, 1e-05
      %v1118 = vadd.f32 %v1102, 1e-05
      %v1119 = vadd.f32 %v1103, 1e-05
      %v1120 = vadd.f32 %v1104, 1e-05
      %v1121 = vadd.f32 %v1105, 1e-05
      %v1122 = vadd.f32 %v1106, 1e-05
      %v1123 = vrsqrt.pop %v1107
      %v1124 = vmul.f32 %v1123, %v1107
      %v1125 = vmul.f32 %v1124, %v1123
      %v1126 = vmul.f32 0.5, %v1125
      %v1127 = vsub.f32 1.5, %v1126
      %v1128 = vmul.f32 %v1123, %v1127
      %vm1129 = vweird.f32 %v1107
      %vm1130 = vweird.f32 %v1123
      %vm1131 = vmor %vm1129, %vm1130
      %v1132 = vsel %vm1131, %v1123, %v1128
      %v1133 = vrsqrt.pop %v1108
      %v1134 = vmul.f32 %v1133, %v1108
      %v1135 = vmul.f32 %v1134, %v1133
      %v1136 = vmul.f32 0.5, %v1135
      %v1137 = vsub.f32 1.5, %v1136
      %v1138 = vmul.f32 %v1133, %v1137
      %vm1139 = vweird.f32 %v1108
      %vm1140 = vweird.f32 %v1133
      %vm1141 = vmor %vm1139, %vm1140
      %v1142 = vsel %vm1141, %v1133, %v1138
      %v1143 = vrsqrt.pop %v1109
      %v1144 = vmul.f32 %v1143, %v1109
      %v1145 = vmul.f32 %v1144, %v1143
      %v1146 = vmul.f32 0.5, %v1145
      %v1147 = vsub.f32 1.5, %v1146
      %v1148 = vmul.f32 %v1143, %v1147
      %vm1149 = vweird.f32 %v1109
      %vm1150 = vweird.f32 %v1143
      %vm1151 = vmor %vm1149, %vm1150
      %v1152 = vsel %vm1151, %v1143, %v1148
      %v1153 = vrsqrt.pop %v1110
      %v1154 = vmul.f32 %v1153, %v1110
      %v1155 = vmul.f32 %v1154, %v1153
      %v1156 = vmul.f32 0.5, %v1155
      %v1157 = vsub.f32 1.5, %v1156
      %v1158 = vmul.f32 %v1153, %v1157
      %vm1159 = vweird.f32 %v1110
      %vm1160 = vweird.f32 %v1153
      %vm1161 = vmor %vm1159, %vm1160
      %v1162 = vsel %vm1161, %v1153, %v1158
      %v1163 = vrsqrt.pop %v1111
      %v1164 = vmul.f32 %v1163, %v1111
      %v1165 = vmul.f32 %v1164, %v1163
      %v1166 = vmul.f32 0.5, %v1165
      %v1167 = vsub.f32 1.5, %v1166
      %v1168 = vmul.f32 %v1163, %v1167
      %vm1169 = vweird.f32 %v1111
      %vm1170 = vweird.f32 %v1163
      %vm1171 = vmor %vm1169, %vm1170
      %v1172 = vsel %vm1171, %v1163, %v1168
      %v1173 = vrsqrt.pop %v1112
      %v1174 = vmul.f32 %v1173, %v1112
      %v1175 = vmul.f32 %v1174, %v1173
      %v1176 = vmul.f32 0.5, %v1175
      %v1177 = vsub.f32 1.5, %v1176
      %v1178 = vmul.f32 %v1173, %v1177
      %vm1179 = vweird.f32 %v1112
      %vm1180 = vweird.f32 %v1173
      %vm1181 = vmor %vm1179, %vm1180
      %v1182 = vsel %vm1181, %v1173, %v1178
      %v1183 = vrsqrt.pop %v1113
      %v1184 = vmul.f32 %v1183, %v1113
      %v1185 = vmul.f32 %v1184, %v1183
      %v1186 = vmul.f32 0.5, %v1185
      %v1187 = vsub.f32 1.5, %v1186
      %v1188 = vmul.f32 %v1183, %v1187
      %vm1189 = vweird.f32 %v1113
      %vm1190 = vweird.f32 %v1183
      %vm1191 = vmor %vm1189, %vm1190
      %v1192 = vsel %vm1191, %v1183, %v1188
      %v1193 = vrsqrt.pop %v1114
      %v1194 = vmul.f32 %v1193, %v1114
      %v1195 = vmul.f32 %v1194, %v1193
      %v1196 = vmul.f32 0.5, %v1195
      %v1197 = vsub.f32 1.5, %v1196
      %v1198 = vmul.f32 %v1193, %v1197
      %vm1199 = vweird.f32 %v1114
      %vm1200 = vweird.f32 %v1193
      %vm1201 = vmor %vm1199, %vm1200
      %v1202 = vsel %vm1201, %v1193, %v1198
      %v1203 = vrsqrt.pop %v1115
      %v1204 = vmul.f32 %v1203, %v1115
      %v1205 = vmul.f32 %v1204, %v1203
      %v1206 = vmul.f32 0.5, %v1205
      %v1207 = vsub.f32 1.5, %v1206
      %v1208 = vmul.f32 %v1203, %v1207
      %vm1209 = vweird.f32 %v1115
      %vm1210 = vweird.f32 %v1203
      %vm1211 = vmor %vm1209, %vm1210
      %v1212 = vsel %vm1211, %v1203, %v1208
      %v1213 = vrsqrt.pop %v1116
      %v1214 = vmul.f32 %v1213, %v1116
      %v1215 = vmul.f32 %v1214, %v1213
      %v1216 = vmul.f32 0.5, %v1215
      %v1217 = vsub.f32 1.5, %v1216
      %v1218 = vmul.f32 %v1213, %v1217
      %vm1219 = vweird.f32 %v1116
      %vm1220 = vweird.f32 %v1213
      %vm1221 = vmor %vm1219, %vm1220
      %v1222 = vsel %vm1221, %v1213, %v1218
      %v1223 = vrsqrt.pop %v1117
      %v1224 = vmul.f32 %v1223, %v1117
      %v1225 = vmul.f32 %v1224, %v1223
      %v1226 = vmul.f32 0.5, %v1225
      %v1227 = vsub.f32 1.5, %v1226
      %v1228 = vmul.f32 %v1223, %v1227
      %vm1229 = vweird.f32 %v1117
      %vm1230 = vweird.f32 %v1223
      %vm1231 = vmor %vm1229, %vm1230
      %v1232 = vsel %vm1231, %v1223, %v1228
      %v1233 = vrsqrt.pop %v1118
      %v1234 = vmul.f32 %v1233, %v1118
      %v1235 = vmul.f32 %v1234, %v1233
      %v1236 = vmul.f32 0.5, %v1235
      %v1237 = vsub.f32 1.5, %v1236
      %v1238 = vmul.f32 %v1233, %v1237
      %vm1239 = vweird.f32 %v1118
      %vm1240 = vweird.f32 %v1233
      %vm1241 = vmor %vm1239, %vm1240
      %v1242 = vsel %vm1241, %v1233, %v1238
      %v1243 = vrsqrt.pop %v1119
      %v1244 = vmul.f32 %v1243, %v1119
      %v1245 = vmul.f32 %v1244, %v1243
      %v1246 = vmul.f32 0.5, %v1245
      %v1247 = vsub.f32 1.5, %v1246
      %v1248 = vmul.f32 %v1243, %v1247
      %vm1249 = vweird.f32 %v1119
      %vm1250 = vweird.f32 %v1243
      %vm1251 = vmor %vm1249, %vm1250
      %v1252 = vsel %vm1251, %v1243, %v1248
      %v1253 = vrsqrt.pop %v1120
      %v1254 = vmul.f32 %v1253, %v1120
      %v1255 = vmul.f32 %v1254, %v1253
      %v1256 = vmul.f32 0.5, %v1255
      %v1257 = vsub.f32 1.5, %v1256
      %v1258 = vmul.f32 %v1253, %v1257
      %vm1259 = vweird.f32 %v1120
      %vm1260 = vweird.f32 %v1253
      %vm1261 = vmor %vm1259, %vm1260
      %v1262 = vsel %vm1261, %v1253, %v1258
      %v1263 = vrsqrt.pop %v1121
      %v1264 = vmul.f32 %v1263, %v1121
      %v1265 = vmul.f32 %v1264, %v1263
      %v1266 = vmul.f32 0.5, %v1265
      %v1267 = vsub.f32 1.5, %v1266
      %v1268 = vmul.f32 %v1263, %v1267
      %vm1269 = vweird.f32 %v1121
      %vm1270 = vweird.f32 %v1263
      %vm1271 = vmor %vm1269, %vm1270
      %v1272 = vsel %vm1271, %v1263, %v1268
      %v1273 = vrsqrt.pop %v1122
      %v1274 = vmul.f32 %v1273, %v1122
      %v1275 = vmul.f32 %v1274, %v1273
      %v1276 = vmul.f32 0.5, %v1275
      %v1277 = vsub.f32 1.5, %v1276
      %v1278 = vmul.f32 %v1273, %v1277
      %vm1279 = vweird.f32 %v1122
      %vm1280 = vweird.f32 %v1273
      %vm1281 = vmor %vm1279, %vm1280
      %v1282 = vsel %vm1281, %v1273, %v1278
      %v1283 = vsub.f32 %v906, %v979
      %v1284 = vsub.f32 %v907, %v980
      %v1285 = vsub.f32 %v908, %v981
      %v1286 = vsub.f32 %v909, %v982
      %v1287 = vsub.f32 %v910, %v983
      %v1288 = vsub.f32 %v911, %v984
      %v1289 = vsub.f32 %v912, %v985
      %v1290 = vsub.f32 %v913, %v986
      %v1291 = vsub.f32 %v914, %v987
      %v1292 = vsub.f32 %v915, %v988
      %v1293 = vsub.f32 %v916, %v989
      %v1294 = vsub.f32 %v917, %v990
      %v1295 = vsub.f32 %v918, %v991
      %v1296 = vsub.f32 %v919, %v992
      %v1297 = vsub.f32 %v920, %v993
      %v1298 = vsub.f32 %v921, %v994
      %v1299 = vmul.f32 %v1283, %v1132
      %v1300 = vmul.f32 %v1284, %v1142
      %v1301 = vmul.f32 %v1285, %v1152
      %v1302 = vmul.f32 %v1286, %v1162
      %v1303 = vmul.f32 %v1287, %v1172
      %v1304 = vmul.f32 %v1288, %v1182
      %v1305 = vmul.f32 %v1289, %v1192
      %v1306 = vmul.f32 %v1290, %v1202
      %v1307 = vmul.f32 %v1291, %v1212
      %v1308 = vmul.f32 %v1292, %v1222
      %v1309 = vmul.f32 %v1293, %v1232
      %v1310 = vmul.f32 %v1294, %v1242
      %v1311 = vmul.f32 %v1295, %v1252
      %v1312 = vmul.f32 %v1296, %v1262
      %v1313 = vmul.f32 %v1297, %v1272
      %v1314 = vmul.f32 %v1298, %v1282
      %v1316 = vperm.slane %v922, 0
      %v1318 = vmul.f32 %v1299, %v1316
      %v1319 = vmul.f32 %v1300, %v1316
      %v1320 = vmul.f32 %v1301, %v1316
      %v1321 = vmul.f32 %v1302, %v1316
      %v1322 = vmul.f32 %v1303, %v1316
      %v1323 = vmul.f32 %v1304, %v1316
      %v1324 = vmul.f32 %v1305, %v1316
      %v1325 = vmul.f32 %v1306, %v1316
      %v1326 = vmul.f32 %v1307, %v1316
      %v1327 = vmul.f32 %v1308, %v1316
      %v1328 = vmul.f32 %v1309, %v1316
      %v1329 = vmul.f32 %v1310, %v1316
      %v1330 = vmul.f32 %v1311, %v1316
      %v1331 = vmul.f32 %v1312, %v1316
      %v1332 = vmul.f32 %v1313, %v1316
      %v1333 = vmul.f32 %v1314, %v1316
      %v1335 = vperm.slane %v923, 0
      %v1337 = vadd.f32 %v1318, %v1335
      %v1338 = vadd.f32 %v1319, %v1335
      %v1339 = vadd.f32 %v1320, %v1335
      %v1340 = vadd.f32 %v1321, %v1335
      %v1341 = vadd.f32 %v1322, %v1335
      %v1342 = vadd.f32 %v1323, %v1335
      %v1343 = vadd.f32 %v1324, %v1335
      %v1344 = vadd.f32 %v1325, %v1335
      %v1345 = vadd.f32 %v1326, %v1335
      %v1346 = vadd.f32 %v1327, %v1335
      %v1347 = vadd.f32 %v1328, %v1335
      %v1348 = vadd.f32 %v1329, %v1335
      %v1349 = vadd.f32 %v1330, %v1335
      %v1350 = vadd.f32 %v1331, %v1335
      %v1351 = vadd.f32 %v1332, %v1335
      %v1352 = vadd.f32 %v1333, %v1335
      %v1353 = vpack.c.bf16 %v1338, %v1337
      %v1354 = vpack.c.bf16 %v1340, %v1339
      %v1355 = vpack.c.bf16 %v1342, %v1341
      %v1356 = vpack.c.bf16 %v1344, %v1343
      %v1357 = vpack.c.bf16 %v1346, %v1345
      %v1358 = vpack.c.bf16 %v1348, %v1347
      %v1359 = vpack.c.bf16 %v1350, %v1349
      %v1360 = vpack.c.bf16 %v1352, %v1351
      %v1361 = vld [vmem:[%s6] sm:$0xf]
      %v1362 = vld [vmem:[%s6 + $0x4] sm:$0xf]
      %v1363 = vld [vmem:[%s6 + $0x8] sm:$0xf]
      %v1364 = vld [vmem:[%s6 + $0xc] sm:$0xf]
      %v1365 = vld [vmem:[%s7] sm:$0x1]
      %v1367 = vperm.slane %v1365, 0
      %v1373 = vunpack.c.l.b16 %v1361
      %v1374 = vunpack.c.l.b16 %v1362
      %v1375 = vunpack.c.l.b16 %v1363
      %v1376 = vunpack.c.l.b16 %v1364
      %v1377 = vpack.c.b16 %v1374, %v1373
      %v1378 = vpack.c.b16 %v1376, %v1375
      %v1382 = vsel %vm458, %v1353, 0
      %v1385 = vsel %vm458, %v1354, 0
      %v1388 = vsel %vm458, %v1355, 0
      %v1391 = vsel %vm458, %v1356, 0
      %v1394 = vsel %vm458, %v1357, 0
      %v1397 = vsel %vm458, %v1358, 0
      %v1400 = vsel %vm458, %v1359, 0
      %v1403 = vsel %vm458, %v1360, 0
      %1405 = vmatpush.bf16.msra.mxu0 0
      %1406 = vmatpush.bf16.msra.mxu0 0
      %1407 = vmatpush.bf16.msra.mxu0 0
      %1408 = vmatpush.bf16.msra.mxu0 0
      %1409 = vmatpush.bf16.msra.mxu0 0
      %1410 = vmatpush.bf16.msra.mxu0 0
      %1411 = vmatpush.bf16.msra.mxu0 %v1378
      %1412 = vmatpush.bf16.msra.mxu0 %v1377
      %1413 = vmatmul.bf16.gmra.mxu0 %v1382
      %v1414 = vpop.f32.mrf.mxu0
      %v1415 = vadd.f32 %v1367, %v1414
      %v1416 = vpop.f32.mrf.mxu0
      %v1417 = vadd.f32 %v1367, %v1416
      %1418 = vmatmul.bf16.gmra.mxu0 %v1385
      %v1419 = vpop.f32.mrf.mxu0
      %v1420 = vadd.f32 %v1367, %v1419
      %v1421 = vpop.f32.mrf.mxu0
      %v1422 = vadd.f32 %v1367, %v1421
      %1423 = vmatmul.bf16.gmra.mxu0 %v1388
      %v1424 = vpop.f32.mrf.mxu0
      %v1425 = vadd.f32 %v1367, %v1424
      %v1426 = vpop.f32.mrf.mxu0
      %v1427 = vadd.f32 %v1367, %v1426
      %1428 = vmatmul.bf16.gmra.mxu0 %v1391
      %v1429 = vpop.f32.mrf.mxu0
      %v1430 = vadd.f32 %v1367, %v1429
      %v1431 = vpop.f32.mrf.mxu0
      %v1432 = vadd.f32 %v1367, %v1431
      %1433 = vmatmul.bf16.gmra.mxu0 %v1394
      %v1434 = vpop.f32.mrf.mxu0
      %v1435 = vadd.f32 %v1367, %v1434
      %v1436 = vpop.f32.mrf.mxu0
      %v1437 = vadd.f32 %v1367, %v1436
      %1438 = vmatmul.bf16.gmra.mxu0 %v1397
      %v1439 = vpop.f32.mrf.mxu0
      %v1440 = vadd.f32 %v1367, %v1439
      %v1441 = vpop.f32.mrf.mxu0
      %v1442 = vadd.f32 %v1367, %v1441
      %1443 = vmatmul.bf16.gmra.mxu0 %v1400
      %v1444 = vpop.f32.mrf.mxu0
      %v1445 = vadd.f32 %v1367, %v1444
      %v1446 = vpop.f32.mrf.mxu0
      %v1447 = vadd.f32 %v1367, %v1446
      %1448 = vmatmul.bf16.gmra.mxu0 %v1403
      %v1449 = vpop.f32.mrf.mxu0
      %v1450 = vadd.f32 %v1367, %v1449
      %v1451 = vpop.f32.mrf.mxu0
      %v1452 = vadd.f32 %v1367, %v1451
      %1453 = vdwg.mxu0
      %v1454 = vmax.f32 %v1415, 0.0
      %v1455 = vmax.f32 %v1417, 0.0
      %v1456 = vmax.f32 %v1420, 0.0
      %v1457 = vmax.f32 %v1422, 0.0
      %v1458 = vmax.f32 %v1425, 0.0
      %v1459 = vmax.f32 %v1427, 0.0
      %v1460 = vmax.f32 %v1430, 0.0
      %v1461 = vmax.f32 %v1432, 0.0
      %v1462 = vmax.f32 %v1435, 0.0
      %v1463 = vmax.f32 %v1437, 0.0
      %v1464 = vmax.f32 %v1440, 0.0
      %v1465 = vmax.f32 %v1442, 0.0
      %v1466 = vmax.f32 %v1445, 0.0
      %v1467 = vmax.f32 %v1447, 0.0
      %v1468 = vmax.f32 %v1450, 0.0
      %v1469 = vmax.f32 %v1452, 0.0
      %v1470 = vpack.c.bf16 %v1455, %v1454
      %v1471 = vpack.c.bf16 %v1457, %v1456
      %v1472 = vpack.c.bf16 %v1459, %v1458
      %v1473 = vpack.c.bf16 %v1461, %v1460
      %v1474 = vpack.c.bf16 %v1463, %v1462
      %v1475 = vpack.c.bf16 %v1465, %v1464
      %v1476 = vpack.c.bf16 %v1467, %v1466
      %v1477 = vpack.c.bf16 %v1469, %v1468
      %v1478 = vld [vmem:[%s8] sm:$0xf]
      %v1479 = vld [vmem:[%s8 + $0x4] sm:$0xf]
      %v1480 = vld [vmem:[%s8 + $0x8] sm:$0xf]
      %v1481 = vld [vmem:[%s8 + $0xc] sm:$0xf]
      %v1482 = vld [vmem:[%s8 + $0x10] sm:$0xf]
      %v1483 = vld [vmem:[%s8 + $0x14] sm:$0xf]
      %v1484 = vld [vmem:[%s8 + $0x18] sm:$0xf]
      %v1485 = vld [vmem:[%s8 + $0x1c] sm:$0xf]
      %v1486 = vld [vmem:[%s8 + $0x20] sm:$0xf]
      %v1487 = vld [vmem:[%s8 + $0x24] sm:$0xf]
      %v1488 = vld [vmem:[%s8 + $0x28] sm:$0xf]
      %v1489 = vld [vmem:[%s8 + $0x2c] sm:$0xf]
      %v1490 = vld [vmem:[%s8 + $0x30] sm:$0xf]
      %v1491 = vld [vmem:[%s8 + $0x34] sm:$0xf]
      %v1492 = vld [vmem:[%s8 + $0x38] sm:$0xf]
      %v1493 = vld [vmem:[%s8 + $0x3c] sm:$0xf]
      %v1494 = vld [vmem:[%s9] sm:$0x1]
      %v1496 = vperm.slane %v1494, 0
      %v1514 = vunpack.c.l.b16 %v1478
      %v1515 = vunpack.c.l.b16 %v1479
      %v1516 = vunpack.c.l.b16 %v1480
      %v1517 = vunpack.c.l.b16 %v1481
      %v1518 = vunpack.c.l.b16 %v1482
      %v1519 = vunpack.c.l.b16 %v1483
      %v1520 = vunpack.c.l.b16 %v1484
      %v1521 = vunpack.c.l.b16 %v1485
      %v1522 = vunpack.c.l.b16 %v1486
      %v1523 = vunpack.c.l.b16 %v1487
      %v1524 = vunpack.c.l.b16 %v1488
      %v1525 = vunpack.c.l.b16 %v1489
      %v1526 = vunpack.c.l.b16 %v1490
      %v1527 = vunpack.c.l.b16 %v1491
      %v1528 = vunpack.c.l.b16 %v1492
      %v1529 = vunpack.c.l.b16 %v1493
      %v1530 = vpack.c.b16 %v1515, %v1514
      %v1531 = vpack.c.b16 %v1517, %v1516
      %v1532 = vpack.c.b16 %v1519, %v1518
      %v1533 = vpack.c.b16 %v1521, %v1520
      %v1534 = vpack.c.b16 %v1523, %v1522
      %v1535 = vpack.c.b16 %v1525, %v1524
      %v1536 = vpack.c.b16 %v1527, %v1526
      %v1537 = vpack.c.b16 %v1529, %v1528
      %1546 = vmatpush.bf16.msra.mxu0 %v1537
      %1547 = vmatpush.bf16.msra.mxu0 %v1536
      %1548 = vmatpush.bf16.msra.mxu0 %v1535
      %1549 = vmatpush.bf16.msra.mxu0 %v1534
      %1550 = vmatpush.bf16.msra.mxu0 %v1533
      %1551 = vmatpush.bf16.msra.mxu0 %v1532
      %1552 = vmatpush.bf16.msra.mxu0 %v1531
      %1553 = vmatpush.bf16.msra.mxu0 %v1530
      %1554 = vmatmul.bf16.gmra.mxu0 %v1470
      %v1555 = vpop.f32.mrf.mxu0
      %v1556 = vadd.f32 %v1496, %v1555
      %v1557 = vpop.f32.mrf.mxu0
      %v1558 = vadd.f32 %v1496, %v1557
      %1559 = vmatmul.bf16.gmra.mxu0 %v1471
      %v1560 = vpop.f32.mrf.mxu0
      %v1561 = vadd.f32 %v1496, %v1560
      %v1562 = vpop.f32.mrf.mxu0
      %v1563 = vadd.f32 %v1496, %v1562
      %1564 = vmatmul.bf16.gmra.mxu0 %v1472
      %v1565 = vpop.f32.mrf.mxu0
      %v1566 = vadd.f32 %v1496, %v1565
      %v1567 = vpop.f32.mrf.mxu0
      %v1568 = vadd.f32 %v1496, %v1567
      %1569 = vmatmul.bf16.gmra.mxu0 %v1473
      %v1570 = vpop.f32.mrf.mxu0
      %v1571 = vadd.f32 %v1496, %v1570
      %v1572 = vpop.f32.mrf.mxu0
      %v1573 = vadd.f32 %v1496, %v1572
      %1574 = vmatmul.bf16.gmra.mxu0 %v1474
      %v1575 = vpop.f32.mrf.mxu0
      %v1576 = vadd.f32 %v1496, %v1575
      %v1577 = vpop.f32.mrf.mxu0
      %v1578 = vadd.f32 %v1496, %v1577
      %1579 = vmatmul.bf16.gmra.mxu0 %v1475
      %v1580 = vpop.f32.mrf.mxu0
      %v1581 = vadd.f32 %v1496, %v1580
      %v1582 = vpop.f32.mrf.mxu0
      %v1583 = vadd.f32 %v1496, %v1582
      %1584 = vmatmul.bf16.gmra.mxu0 %v1476
      %v1585 = vpop.f32.mrf.mxu0
      %v1586 = vadd.f32 %v1496, %v1585
      %v1587 = vpop.f32.mrf.mxu0
      %v1588 = vadd.f32 %v1496, %v1587
      %1589 = vmatmul.bf16.gmra.mxu0 %v1477
      %v1590 = vpop.f32.mrf.mxu0
      %v1591 = vadd.f32 %v1496, %v1590
      %v1592 = vpop.f32.mrf.mxu0
      %v1593 = vadd.f32 %v1496, %v1592
      %1594 = vdwg.mxu0
      %v1595 = vadd.f32 %v1337, %v1556
      %v1596 = vadd.f32 %v1338, %v1558
      %v1597 = vadd.f32 %v1339, %v1561
      %v1598 = vadd.f32 %v1340, %v1563
      %v1599 = vadd.f32 %v1341, %v1566
      %v1600 = vadd.f32 %v1342, %v1568
      %v1601 = vadd.f32 %v1343, %v1571
      %v1602 = vadd.f32 %v1344, %v1573
      %v1603 = vadd.f32 %v1345, %v1576
      %v1604 = vadd.f32 %v1346, %v1578
      %v1605 = vadd.f32 %v1347, %v1581
      %v1606 = vadd.f32 %v1348, %v1583
      %v1607 = vadd.f32 %v1349, %v1586
      %v1608 = vadd.f32 %v1350, %v1588
      %v1609 = vadd.f32 %v1351, %v1591
      %v1610 = vadd.f32 %v1352, %v1593
      %v1611 = vld [vmem:[%s10] sm:$0x1]
      %v1612 = vld [vmem:[%s11] sm:$0x1]
      %v1613 = vsel %vm458, %v1595, 0.0
      %1614 = vadd.xlane.f32.xlu0 %v1613
      %v1615 = vpop.xlane.xlu0 %1614
      %v1616 = vsel %vm458, %v1596, 0.0
      %1617 = vadd.xlane.f32.xlu0 %v1616
      %v1618 = vpop.xlane.xlu0 %1617
      %v1619 = vsel %vm458, %v1597, 0.0
      %1620 = vadd.xlane.f32.xlu0 %v1619
      %v1621 = vpop.xlane.xlu0 %1620
      %v1622 = vsel %vm458, %v1598, 0.0
      %1623 = vadd.xlane.f32.xlu0 %v1622
      %v1624 = vpop.xlane.xlu0 %1623
      %v1625 = vsel %vm458, %v1599, 0.0
      %1626 = vadd.xlane.f32.xlu0 %v1625
      %v1627 = vpop.xlane.xlu0 %1626
      %v1628 = vsel %vm458, %v1600, 0.0
      %1629 = vadd.xlane.f32.xlu0 %v1628
      %v1630 = vpop.xlane.xlu0 %1629
      %v1631 = vsel %vm458, %v1601, 0.0
      %1632 = vadd.xlane.f32.xlu0 %v1631
      %v1633 = vpop.xlane.xlu0 %1632
      %v1634 = vsel %vm458, %v1602, 0.0
      %1635 = vadd.xlane.f32.xlu0 %v1634
      %v1636 = vpop.xlane.xlu0 %1635
      %v1637 = vsel %vm458, %v1603, 0.0
      %1638 = vadd.xlane.f32.xlu0 %v1637
      %v1639 = vpop.xlane.xlu0 %1638
      %v1640 = vsel %vm458, %v1604, 0.0
      %1641 = vadd.xlane.f32.xlu0 %v1640
      %v1642 = vpop.xlane.xlu0 %1641
      %v1643 = vsel %vm458, %v1605, 0.0
      %1644 = vadd.xlane.f32.xlu0 %v1643
      %v1645 = vpop.xlane.xlu0 %1644
      %v1646 = vsel %vm458, %v1606, 0.0
      %1647 = vadd.xlane.f32.xlu0 %v1646
      %v1648 = vpop.xlane.xlu0 %1647
      %v1649 = vsel %vm458, %v1607, 0.0
      %1650 = vadd.xlane.f32.xlu0 %v1649
      %v1651 = vpop.xlane.xlu0 %1650
      %v1652 = vsel %vm458, %v1608, 0.0
      %1653 = vadd.xlane.f32.xlu0 %v1652
      %v1654 = vpop.xlane.xlu0 %1653
      %v1655 = vsel %vm458, %v1609, 0.0
      %1656 = vadd.xlane.f32.xlu0 %v1655
      %v1657 = vpop.xlane.xlu0 %1656
      %v1658 = vsel %vm458, %v1610, 0.0
      %1659 = vadd.xlane.f32.xlu0 %v1658
      %v1660 = vpop.xlane.xlu0 %1659
      %v1661 = vmul.f32 %v1615, %v978
      %v1662 = vmul.f32 %v1618, %v978
      %v1663 = vmul.f32 %v1621, %v978
      %v1664 = vmul.f32 %v1624, %v978
      %v1665 = vmul.f32 %v1627, %v978
      %v1666 = vmul.f32 %v1630, %v978
      %v1667 = vmul.f32 %v1633, %v978
      %v1668 = vmul.f32 %v1636, %v978
      %v1669 = vmul.f32 %v1639, %v978
      %v1670 = vmul.f32 %v1642, %v978
      %v1671 = vmul.f32 %v1645, %v978
      %v1672 = vmul.f32 %v1648, %v978
      %v1673 = vmul.f32 %v1651, %v978
      %v1674 = vmul.f32 %v1654, %v978
      %v1675 = vmul.f32 %v1657, %v978
      %v1676 = vmul.f32 %v1660, %v978
      %v1677 = vmul.f32 %v1595, %v1595
      %v1678 = vmul.f32 %v1596, %v1596
      %v1679 = vmul.f32 %v1597, %v1597
      %v1680 = vmul.f32 %v1598, %v1598
      %v1681 = vmul.f32 %v1599, %v1599
      %v1682 = vmul.f32 %v1600, %v1600
      %v1683 = vmul.f32 %v1601, %v1601
      %v1684 = vmul.f32 %v1602, %v1602
      %v1685 = vmul.f32 %v1603, %v1603
      %v1686 = vmul.f32 %v1604, %v1604
      %v1687 = vmul.f32 %v1605, %v1605
      %v1688 = vmul.f32 %v1606, %v1606
      %v1689 = vmul.f32 %v1607, %v1607
      %v1690 = vmul.f32 %v1608, %v1608
      %v1691 = vmul.f32 %v1609, %v1609
      %v1692 = vmul.f32 %v1610, %v1610
      %v1693 = vsel %vm458, %v1677, 0.0
      %1694 = vadd.xlane.f32.xlu0 %v1693
      %v1695 = vpop.xlane.xlu0 %1694
      %v1696 = vsel %vm458, %v1678, 0.0
      %1697 = vadd.xlane.f32.xlu0 %v1696
      %v1698 = vpop.xlane.xlu0 %1697
      %v1699 = vsel %vm458, %v1679, 0.0
      %1700 = vadd.xlane.f32.xlu0 %v1699
      %v1701 = vpop.xlane.xlu0 %1700
      %v1702 = vsel %vm458, %v1680, 0.0
      %1703 = vadd.xlane.f32.xlu0 %v1702
      %v1704 = vpop.xlane.xlu0 %1703
      %v1705 = vsel %vm458, %v1681, 0.0
      %1706 = vadd.xlane.f32.xlu0 %v1705
      %v1707 = vpop.xlane.xlu0 %1706
      %v1708 = vsel %vm458, %v1682, 0.0
      %1709 = vadd.xlane.f32.xlu0 %v1708
      %v1710 = vpop.xlane.xlu0 %1709
      %v1711 = vsel %vm458, %v1683, 0.0
      %1712 = vadd.xlane.f32.xlu0 %v1711
      %v1713 = vpop.xlane.xlu0 %1712
      %v1714 = vsel %vm458, %v1684, 0.0
      %1715 = vadd.xlane.f32.xlu0 %v1714
      %v1716 = vpop.xlane.xlu0 %1715
      %v1717 = vsel %vm458, %v1685, 0.0
      %1718 = vadd.xlane.f32.xlu0 %v1717
      %v1719 = vpop.xlane.xlu0 %1718
      %v1720 = vsel %vm458, %v1686, 0.0
      %1721 = vadd.xlane.f32.xlu0 %v1720
      %v1722 = vpop.xlane.xlu0 %1721
      %v1723 = vsel %vm458, %v1687, 0.0
      %1724 = vadd.xlane.f32.xlu0 %v1723
      %v1725 = vpop.xlane.xlu0 %1724
      %v1726 = vsel %vm458, %v1688, 0.0
      %1727 = vadd.xlane.f32.xlu0 %v1726
      %v1728 = vpop.xlane.xlu0 %1727
      %v1729 = vsel %vm458, %v1689, 0.0
      %1730 = vadd.xlane.f32.xlu0 %v1729
      %v1731 = vpop.xlane.xlu0 %1730
      %v1732 = vsel %vm458, %v1690, 0.0
      %1733 = vadd.xlane.f32.xlu0 %v1732
      %v1734 = vpop.xlane.xlu0 %1733
      %v1735 = vsel %vm458, %v1691, 0.0
      %1736 = vadd.xlane.f32.xlu0 %v1735
      %v1737 = vpop.xlane.xlu0 %1736
      %v1738 = vsel %vm458, %v1692, 0.0
      %1739 = vadd.xlane.f32.xlu0 %v1738
      %v1740 = vpop.xlane.xlu0 %1739
      %v1741 = vmul.f32 %v1695, %v978
      %v1742 = vmul.f32 %v1698, %v978
      %v1743 = vmul.f32 %v1701, %v978
      %v1744 = vmul.f32 %v1704, %v978
      %v1745 = vmul.f32 %v1707, %v978
      %v1746 = vmul.f32 %v1710, %v978
      %v1747 = vmul.f32 %v1713, %v978
      %v1748 = vmul.f32 %v1716, %v978
      %v1749 = vmul.f32 %v1719, %v978
      %v1750 = vmul.f32 %v1722, %v978
      %v1751 = vmul.f32 %v1725, %v978
      %v1752 = vmul.f32 %v1728, %v978
      %v1753 = vmul.f32 %v1731, %v978
      %v1754 = vmul.f32 %v1734, %v978
      %v1755 = vmul.f32 %v1737, %v978
      %v1756 = vmul.f32 %v1740, %v978
      %v1757 = vmul.f32 %v1661, %v1661
      %v1758 = vmul.f32 %v1662, %v1662
      %v1759 = vmul.f32 %v1663, %v1663
      %v1760 = vmul.f32 %v1664, %v1664
      %v1761 = vmul.f32 %v1665, %v1665
      %v1762 = vmul.f32 %v1666, %v1666
      %v1763 = vmul.f32 %v1667, %v1667
      %v1764 = vmul.f32 %v1668, %v1668
      %v1765 = vmul.f32 %v1669, %v1669
      %v1766 = vmul.f32 %v1670, %v1670
      %v1767 = vmul.f32 %v1671, %v1671
      %v1768 = vmul.f32 %v1672, %v1672
      %v1769 = vmul.f32 %v1673, %v1673
      %v1770 = vmul.f32 %v1674, %v1674
      %v1771 = vmul.f32 %v1675, %v1675
      %v1772 = vmul.f32 %v1676, %v1676
      %v1773 = vsub.f32 %v1741, %v1757
      %v1774 = vsub.f32 %v1742, %v1758
      %v1775 = vsub.f32 %v1743, %v1759
      %v1776 = vsub.f32 %v1744, %v1760
      %v1777 = vsub.f32 %v1745, %v1761
      %v1778 = vsub.f32 %v1746, %v1762
      %v1779 = vsub.f32 %v1747, %v1763
      %v1780 = vsub.f32 %v1748, %v1764
      %v1781 = vsub.f32 %v1749, %v1765
      %v1782 = vsub.f32 %v1750, %v1766
      %v1783 = vsub.f32 %v1751, %v1767
      %v1784 = vsub.f32 %v1752, %v1768
      %v1785 = vsub.f32 %v1753, %v1769
      %v1786 = vsub.f32 %v1754, %v1770
      %v1787 = vsub.f32 %v1755, %v1771
      %v1788 = vsub.f32 %v1756, %v1772
      %v1789 = vadd.f32 %v1773, 1e-05
      %v1790 = vadd.f32 %v1774, 1e-05
      %v1791 = vadd.f32 %v1775, 1e-05
      %v1792 = vadd.f32 %v1776, 1e-05
      %v1793 = vadd.f32 %v1777, 1e-05
      %v1794 = vadd.f32 %v1778, 1e-05
      %v1795 = vadd.f32 %v1779, 1e-05
      %v1796 = vadd.f32 %v1780, 1e-05
      %v1797 = vadd.f32 %v1781, 1e-05
      %v1798 = vadd.f32 %v1782, 1e-05
      %v1799 = vadd.f32 %v1783, 1e-05
      %v1800 = vadd.f32 %v1784, 1e-05
      %v1801 = vadd.f32 %v1785, 1e-05
      %v1802 = vadd.f32 %v1786, 1e-05
      %v1803 = vadd.f32 %v1787, 1e-05
      %v1804 = vadd.f32 %v1788, 1e-05
      %v1805 = vrsqrt.pop %v1789
      %v1806 = vmul.f32 %v1805, %v1789
      %v1807 = vmul.f32 %v1806, %v1805
      %v1808 = vmul.f32 0.5, %v1807
      %v1809 = vsub.f32 1.5, %v1808
      %v1810 = vmul.f32 %v1805, %v1809
      %vm1811 = vweird.f32 %v1789
      %vm1812 = vweird.f32 %v1805
      %vm1813 = vmor %vm1811, %vm1812
      %v1814 = vsel %vm1813, %v1805, %v1810
      %v1815 = vrsqrt.pop %v1790
      %v1816 = vmul.f32 %v1815, %v1790
      %v1817 = vmul.f32 %v1816, %v1815
      %v1818 = vmul.f32 0.5, %v1817
      %v1819 = vsub.f32 1.5, %v1818
      %v1820 = vmul.f32 %v1815, %v1819
      %vm1821 = vweird.f32 %v1790
      %vm1822 = vweird.f32 %v1815
      %vm1823 = vmor %vm1821, %vm1822
      %v1824 = vsel %vm1823, %v1815, %v1820
      %v1825 = vrsqrt.pop %v1791
      %v1826 = vmul.f32 %v1825, %v1791
      %v1827 = vmul.f32 %v1826, %v1825
      %v1828 = vmul.f32 0.5, %v1827
      %v1829 = vsub.f32 1.5, %v1828
      %v1830 = vmul.f32 %v1825, %v1829
      %vm1831 = vweird.f32 %v1791
      %vm1832 = vweird.f32 %v1825
      %vm1833 = vmor %vm1831, %vm1832
      %v1834 = vsel %vm1833, %v1825, %v1830
      %v1835 = vrsqrt.pop %v1792
      %v1836 = vmul.f32 %v1835, %v1792
      %v1837 = vmul.f32 %v1836, %v1835
      %v1838 = vmul.f32 0.5, %v1837
      %v1839 = vsub.f32 1.5, %v1838
      %v1840 = vmul.f32 %v1835, %v1839
      %vm1841 = vweird.f32 %v1792
      %vm1842 = vweird.f32 %v1835
      %vm1843 = vmor %vm1841, %vm1842
      %v1844 = vsel %vm1843, %v1835, %v1840
      %v1845 = vrsqrt.pop %v1793
      %v1846 = vmul.f32 %v1845, %v1793
      %v1847 = vmul.f32 %v1846, %v1845
      %v1848 = vmul.f32 0.5, %v1847
      %v1849 = vsub.f32 1.5, %v1848
      %v1850 = vmul.f32 %v1845, %v1849
      %vm1851 = vweird.f32 %v1793
      %vm1852 = vweird.f32 %v1845
      %vm1853 = vmor %vm1851, %vm1852
      %v1854 = vsel %vm1853, %v1845, %v1850
      %v1855 = vrsqrt.pop %v1794
      %v1856 = vmul.f32 %v1855, %v1794
      %v1857 = vmul.f32 %v1856, %v1855
      %v1858 = vmul.f32 0.5, %v1857
      %v1859 = vsub.f32 1.5, %v1858
      %v1860 = vmul.f32 %v1855, %v1859
      %vm1861 = vweird.f32 %v1794
      %vm1862 = vweird.f32 %v1855
      %vm1863 = vmor %vm1861, %vm1862
      %v1864 = vsel %vm1863, %v1855, %v1860
      %v1865 = vrsqrt.pop %v1795
      %v1866 = vmul.f32 %v1865, %v1795
      %v1867 = vmul.f32 %v1866, %v1865
      %v1868 = vmul.f32 0.5, %v1867
      %v1869 = vsub.f32 1.5, %v1868
      %v1870 = vmul.f32 %v1865, %v1869
      %vm1871 = vweird.f32 %v1795
      %vm1872 = vweird.f32 %v1865
      %vm1873 = vmor %vm1871, %vm1872
      %v1874 = vsel %vm1873, %v1865, %v1870
      %v1875 = vrsqrt.pop %v1796
      %v1876 = vmul.f32 %v1875, %v1796
      %v1877 = vmul.f32 %v1876, %v1875
      %v1878 = vmul.f32 0.5, %v1877
      %v1879 = vsub.f32 1.5, %v1878
      %v1880 = vmul.f32 %v1875, %v1879
      %vm1881 = vweird.f32 %v1796
      %vm1882 = vweird.f32 %v1875
      %vm1883 = vmor %vm1881, %vm1882
      %v1884 = vsel %vm1883, %v1875, %v1880
      %v1885 = vrsqrt.pop %v1797
      %v1886 = vmul.f32 %v1885, %v1797
      %v1887 = vmul.f32 %v1886, %v1885
      %v1888 = vmul.f32 0.5, %v1887
      %v1889 = vsub.f32 1.5, %v1888
      %v1890 = vmul.f32 %v1885, %v1889
      %vm1891 = vweird.f32 %v1797
      %vm1892 = vweird.f32 %v1885
      %vm1893 = vmor %vm1891, %vm1892
      %v1894 = vsel %vm1893, %v1885, %v1890
      %v1895 = vrsqrt.pop %v1798
      %v1896 = vmul.f32 %v1895, %v1798
      %v1897 = vmul.f32 %v1896, %v1895
      %v1898 = vmul.f32 0.5, %v1897
      %v1899 = vsub.f32 1.5, %v1898
      %v1900 = vmul.f32 %v1895, %v1899
      %vm1901 = vweird.f32 %v1798
      %vm1902 = vweird.f32 %v1895
      %vm1903 = vmor %vm1901, %vm1902
      %v1904 = vsel %vm1903, %v1895, %v1900
      %v1905 = vrsqrt.pop %v1799
      %v1906 = vmul.f32 %v1905, %v1799
      %v1907 = vmul.f32 %v1906, %v1905
      %v1908 = vmul.f32 0.5, %v1907
      %v1909 = vsub.f32 1.5, %v1908
      %v1910 = vmul.f32 %v1905, %v1909
      %vm1911 = vweird.f32 %v1799
      %vm1912 = vweird.f32 %v1905
      %vm1913 = vmor %vm1911, %vm1912
      %v1914 = vsel %vm1913, %v1905, %v1910
      %v1915 = vrsqrt.pop %v1800
      %v1916 = vmul.f32 %v1915, %v1800
      %v1917 = vmul.f32 %v1916, %v1915
      %v1918 = vmul.f32 0.5, %v1917
      %v1919 = vsub.f32 1.5, %v1918
      %v1920 = vmul.f32 %v1915, %v1919
      %vm1921 = vweird.f32 %v1800
      %vm1922 = vweird.f32 %v1915
      %vm1923 = vmor %vm1921, %vm1922
      %v1924 = vsel %vm1923, %v1915, %v1920
      %v1925 = vrsqrt.pop %v1801
      %v1926 = vmul.f32 %v1925, %v1801
      %v1927 = vmul.f32 %v1926, %v1925
      %v1928 = vmul.f32 0.5, %v1927
      %v1929 = vsub.f32 1.5, %v1928
      %v1930 = vmul.f32 %v1925, %v1929
      %vm1931 = vweird.f32 %v1801
      %vm1932 = vweird.f32 %v1925
      %vm1933 = vmor %vm1931, %vm1932
      %v1934 = vsel %vm1933, %v1925, %v1930
      %v1935 = vrsqrt.pop %v1802
      %v1936 = vmul.f32 %v1935, %v1802
      %v1937 = vmul.f32 %v1936, %v1935
      %v1938 = vmul.f32 0.5, %v1937
      %v1939 = vsub.f32 1.5, %v1938
      %v1940 = vmul.f32 %v1935, %v1939
      %vm1941 = vweird.f32 %v1802
      %vm1942 = vweird.f32 %v1935
      %vm1943 = vmor %vm1941, %vm1942
      %v1944 = vsel %vm1943, %v1935, %v1940
      %v1945 = vrsqrt.pop %v1803
      %v1946 = vmul.f32 %v1945, %v1803
      %v1947 = vmul.f32 %v1946, %v1945
      %v1948 = vmul.f32 0.5, %v1947
      %v1949 = vsub.f32 1.5, %v1948
      %v1950 = vmul.f32 %v1945, %v1949
      %vm1951 = vweird.f32 %v1803
      %vm1952 = vweird.f32 %v1945
      %vm1953 = vmor %vm1951, %vm1952
      %v1954 = vsel %vm1953, %v1945, %v1950
      %v1955 = vrsqrt.pop %v1804
      %v1956 = vmul.f32 %v1955, %v1804
      %v1957 = vmul.f32 %v1956, %v1955
      %v1958 = vmul.f32 0.5, %v1957
      %v1959 = vsub.f32 1.5, %v1958
      %v1960 = vmul.f32 %v1955, %v1959
      %vm1961 = vweird.f32 %v1804
      %vm1962 = vweird.f32 %v1955
      %vm1963 = vmor %vm1961, %vm1962
      %v1964 = vsel %vm1963, %v1955, %v1960
      %v1965 = vsub.f32 %v1595, %v1661
      %v1966 = vsub.f32 %v1596, %v1662
      %v1967 = vsub.f32 %v1597, %v1663
      %v1968 = vsub.f32 %v1598, %v1664
      %v1969 = vsub.f32 %v1599, %v1665
      %v1970 = vsub.f32 %v1600, %v1666
      %v1971 = vsub.f32 %v1601, %v1667
      %v1972 = vsub.f32 %v1602, %v1668
      %v1973 = vsub.f32 %v1603, %v1669
      %v1974 = vsub.f32 %v1604, %v1670
      %v1975 = vsub.f32 %v1605, %v1671
      %v1976 = vsub.f32 %v1606, %v1672
      %v1977 = vsub.f32 %v1607, %v1673
      %v1978 = vsub.f32 %v1608, %v1674
      %v1979 = vsub.f32 %v1609, %v1675
      %v1980 = vsub.f32 %v1610, %v1676
      %v1981 = vmul.f32 %v1965, %v1814
      %v1982 = vmul.f32 %v1966, %v1824
      %v1983 = vmul.f32 %v1967, %v1834
      %v1984 = vmul.f32 %v1968, %v1844
      %v1985 = vmul.f32 %v1969, %v1854
      %v1986 = vmul.f32 %v1970, %v1864
      %v1987 = vmul.f32 %v1971, %v1874
      %v1988 = vmul.f32 %v1972, %v1884
      %v1989 = vmul.f32 %v1973, %v1894
      %v1990 = vmul.f32 %v1974, %v1904
      %v1991 = vmul.f32 %v1975, %v1914
      %v1992 = vmul.f32 %v1976, %v1924
      %v1993 = vmul.f32 %v1977, %v1934
      %v1994 = vmul.f32 %v1978, %v1944
      %v1995 = vmul.f32 %v1979, %v1954
      %v1996 = vmul.f32 %v1980, %v1964
      %v1998 = vperm.slane %v1611, 0
      %v2000 = vmul.f32 %v1981, %v1998
      %v2001 = vmul.f32 %v1982, %v1998
      %v2002 = vmul.f32 %v1983, %v1998
      %v2003 = vmul.f32 %v1984, %v1998
      %v2004 = vmul.f32 %v1985, %v1998
      %v2005 = vmul.f32 %v1986, %v1998
      %v2006 = vmul.f32 %v1987, %v1998
      %v2007 = vmul.f32 %v1988, %v1998
      %v2008 = vmul.f32 %v1989, %v1998
      %v2009 = vmul.f32 %v1990, %v1998
      %v2010 = vmul.f32 %v1991, %v1998
      %v2011 = vmul.f32 %v1992, %v1998
      %v2012 = vmul.f32 %v1993, %v1998
      %v2013 = vmul.f32 %v1994, %v1998
      %v2014 = vmul.f32 %v1995, %v1998
      %v2015 = vmul.f32 %v1996, %v1998
      %v2017 = vperm.slane %v1612, 0
      %v2019 = vadd.f32 %v2000, %v2017
      %v2020 = vadd.f32 %v2001, %v2017
      %v2021 = vadd.f32 %v2002, %v2017
      %v2022 = vadd.f32 %v2003, %v2017
      %v2023 = vadd.f32 %v2004, %v2017
      %v2024 = vadd.f32 %v2005, %v2017
      %v2025 = vadd.f32 %v2006, %v2017
      %v2026 = vadd.f32 %v2007, %v2017
      %v2027 = vadd.f32 %v2008, %v2017
      %v2028 = vadd.f32 %v2009, %v2017
      %v2029 = vadd.f32 %v2010, %v2017
      %v2030 = vadd.f32 %v2011, %v2017
      %v2031 = vadd.f32 %v2012, %v2017
      %v2032 = vadd.f32 %v2013, %v2017
      %v2033 = vadd.f32 %v2014, %v2017
      %v2034 = vadd.f32 %v2015, %v2017
      %2035 = vst.msk [vmem:[%s415] sm:$0xff] %vm458, %v2019
      %2036 = vst.msk [vmem:[%s415 + $0x8] sm:$0xff] %vm458, %v2020
      %2037 = vst.msk [vmem:[%s415 + $0x10] sm:$0xff] %vm458, %v2021
      %2038 = vst.msk [vmem:[%s415 + $0x18] sm:$0xff] %vm458, %v2022
      %2039 = vst.msk [vmem:[%s415 + $0x20] sm:$0xff] %vm458, %v2023
      %2040 = vst.msk [vmem:[%s415 + $0x28] sm:$0xff] %vm458, %v2024
      %2041 = vst.msk [vmem:[%s415 + $0x30] sm:$0xff] %vm458, %v2025
      %2042 = vst.msk [vmem:[%s415 + $0x38] sm:$0xff] %vm458, %v2026
      %2043 = vst.msk [vmem:[%s415 + $0x40] sm:$0xff] %vm458, %v2027
      %2044 = vst.msk [vmem:[%s415 + $0x48] sm:$0xff] %vm458, %v2028
      %2045 = vst.msk [vmem:[%s415 + $0x50] sm:$0xff] %vm458, %v2029
      %2046 = vst.msk [vmem:[%s415 + $0x58] sm:$0xff] %vm458, %v2030
      %2047 = vst.msk [vmem:[%s415 + $0x60] sm:$0xff] %vm458, %v2031
      %2048 = vst.msk [vmem:[%s415 + $0x68] sm:$0xff] %vm458, %v2032
      %2049 = vst.msk [vmem:[%s415 + $0x70] sm:$0xff] %vm458, %v2033
      %2050 = vst.msk [vmem:[%s415 + $0x78] sm:$0xff] %vm458, %v2034
      %s2051 = smul.u32 16, %s23
      %p2052 = scmp.lt.s32.totalorder %s2051, 63
      %s2053 = scalar_select %p2052, %s2051, 63
      %s2054 = smul.addr %s2053, 8
      %s2055 = scalar_lea.vmem %s12, %s2054
      // Predicated region
      $region69: #{tpu_custom_call.1} parent=67 // pred_check
        %p2056 = pneg %p298
      $region70: #{tpu_custom_call.1} parent=67 // pred_check_branch
        %2058 = sbr.rel (%p2056) target = $region72
      $region71: #{tpu_custom_call.1} parent=67 // pred_region
        %s2059 = smul.u32 16, %s23
      $region72: #{tpu_custom_call.1} parent=67 // pred_fallthru
        _
    $region68: #{tpu_custom_call.1} parent=5 // pred_fallthru
      _
    %p2060 = scmp.le.s32.totalorder 2, %s18
    // Predicated region
    $region73: #{tpu_custom_call.1} parent=5 // pred_check
      %p2061 = pneg %p2060
    $region74: #{tpu_custom_call.1} parent=5 // pred_check_branch
      %2063 = sbr.rel (%p2061) target = $region76
    $region75: #{tpu_custom_call.1} parent=5 // pred_region
      %s2064 = ssub.s32 %s18, 2
      // Predicated region
      $region77: #{tpu_custom_call.1} parent=75 // pred_check
        %p2065 = pneg %p304
      $region78: #{tpu_custom_call.1} parent=75 // pred_check_branch
        %2067 = sbr.rel (%p2065) target = $region80
      $region79: #{tpu_custom_call.1} parent=75 // pred_region
        %s2068 = smul.u32 16, %s24
        %p2069 = scmp.lt.s32.totalorder %s2068, 63
        %s2070 = scalar_select %p2069, %s2068, 63
        %s2071 = smul.addr %s2070, 8
        %s2072 = scalar_lea.vmem %s12, %s2071
      $region80: #{tpu_custom_call.1} parent=75 // pred_fallthru
        _
    $region76: #{tpu_custom_call.1} parent=5 // pred_fallthru
      _
  $region6: #{tpu_custom_call.1} parent=0 // loop_footer
    %s22 = sadd.s32 1, %s18
  $region7: #{tpu_custom_call.1} parent=0 // loop_footer_branch
    %17 = sbr.rel target = $region3
  $region8: #{tpu_custom_call.1} parent=0 // loop_exit
    _

// kernel: tpu_custom_call.1
$region0: #{tpu_custom_call.1}
  #allocation0 [shape = 'u32[]', space=smem, size = 0x4, offset = 0x4, fixed_abs, tag = 'smem constant byte address 0x4 - core index']
  #allocation1 [shape = 'u32[72,128]{1,0:T(1,128)}', space=vmem, size = 0x9000, scoped, tag = 'internal scratch']
  %s0 = inlined_call_operand.vmem [shape: f32[512,32], index: 0, kind: input, shape index: {}]
  %s1 = inlined_call_operand.vmem [shape: f32[128,128], index: 1, kind: input, shape index: {}]
  %s2 = inlined_call_operand.vmem [shape: bf16[32,96], index: 2, kind: input, shape index: {}]
  %s3 = inlined_call_operand.vmem [shape: f32[1,32], index: 3, kind: input, shape index: {}]
  %s4 = inlined_call_operand.vmem [shape: f32[1,32], index: 4, kind: input, shape index: {}]
  %s5 = inlined_call_operand.vmem [shape: f32[1,32], index: 5, kind: input, shape index: {}]
  %s6 = inlined_call_operand.vmem [shape: bf16[32,128], index: 6, kind: input, shape index: {}]
  %s7 = inlined_call_operand.vmem [shape: f32[1,128], index: 7, kind: input, shape index: {}]
  %s8 = inlined_call_operand.vmem [shape: bf16[128,32], index: 8, kind: input, shape index: {}]
  %s9 = inlined_call_operand.vmem [shape: f32[1,32], index: 9, kind: input, shape index: {}]
  %s10 = inlined_call_operand.vmem [shape: f32[1,32], index: 10, kind: input, shape index: {}]
  %s11 = inlined_call_operand.vmem [shape: f32[1,32], index: 11, kind: input, shape index: {}]
  %s12 = inlined_call_operand.vmem [shape: f32[512,32], index: 12, kind: output, shape index: {}]
  %s13 = sld [smem:[#allocation0]]
  $region81: #{tpu_custom_call.1} parent=0
    _
  %s15 = ssub.s32 1, %s13
  %s16 = scalar_select 0, %s15, %s13
  loop: start=0, step=1, limit=6
  $region2: #{tpu_custom_call.1} parent=0 // loop_pre_header
    _
  $region3: #{tpu_custom_call.1} parent=0 // loop_header
    %s18 = sphi 0, %s22
    %p19 = scmp.ge.s32.totalorder %s18, 6
    %s28 = sphi 0, %s30
    %s31 = sphi 0, %s28
    %s32 = sphi 0, %s31
    %s48 = sphi 0, %s32
    %s52 = sphi 0, %s52
    %s54 = sphi 0, %s52
    %s55 = sphi 0, %s54
    %s69 = sphi 0, %s55
    %s73 = sphi 0, %s73
    %s75 = sphi 0, %s73
    %s76 = sphi 0, %s75
    %s90 = sphi 0, %s76
    %s94 = sphi 0, %s94
    %s96 = sphi 0, %s94
    %s97 = sphi 0, %s96
    %s111 = sphi 0, %s97
    %s115 = sphi 0, %s115
    %s117 = sphi 0, %s115
    %s118 = sphi 0, %s117
    %s132 = sphi 0, %s118
    %s136 = sphi 0, %s136
    %s138 = sphi 0, %s136
    %s139 = sphi 0, %s138
    %s153 = sphi 0, %s139
    %s157 = sphi 0, %s157
    %s159 = sphi 0, %s157
    %s160 = sphi 0, %s159
    %s174 = sphi 0, %s160
    %s178 = sphi 0, %s178
    %s180 = sphi 0, %s178
    %s181 = sphi 0, %s180
    %s195 = sphi 0, %s181
    %s199 = sphi 0, %s199
    %s201 = sphi 0, %s199
    %s202 = sphi 0, %s201
    %s216 = sphi 0, %s202
    %s220 = sphi 0, %s220
    %s222 = sphi 0, %s220
    %s223 = sphi 0, %s222
    %s237 = sphi 0, %s223
    %s241 = sphi 0, %s241
    %s243 = sphi 0, %s241
    %s244 = sphi 0, %s243
    %s258 = sphi 0, %s244
    %s262 = sphi 0, %s262
    %s264 = sphi 0, %s262
    %s265 = sphi 0, %s264
    %s279 = sphi 0, %s265
    %s285 = sphi 0, %s287
    %s288 = sphi 0, %s285
    %s289 = sphi 0, %s288
    %s305 = sphi 0, %s289
  $region4: #{tpu_custom_call.1} parent=0 // loop_header_branch
    %21 = sbr.rel (%p19) target = $region8
  $region5: #{tpu_custom_call.1} parent=0 // loop_body
    %s23 = ssub.s32 %s18, 1
    %s24 = ssub.s32 %s18, 2
    %s25 = sadd.s32 %s18, 1
    %s26 = ssub.s32 %s18, %s25
    %p27 = scmp.eq.s32.totalorder %s26, 0
    %s29 = sadd.s32 %s28, 1
    %s30 = scalar_select %p27, %s28, %s29
    %p33 = pneg %p27
    %p34 = scmp.eq.s32.totalorder %s18, 3
    %p35 = por %p33, %p34
    %p36 = scmp.ne.s32.totalorder %s28, %s31
    %p37 = scmp.eq.s32.totalorder %s18, 0
    %p38 = por %p36, %p37
    %p39 = scmp.ne.s32.totalorder %s28, %s31
    %p40 = scmp.eq.s32.totalorder %s23, 3
    %p41 = por %p39, %p40
    %p42 = scmp.ne.s32.totalorder %s31, %s32
    %p43 = scmp.eq.s32.totalorder %s23, 0
    %p44 = por %p42, %p43
    %p45 = scmp.ne.s32.totalorder %s31, %s32
    %p46 = scmp.eq.s32.totalorder %s24, 3
    %p47 = por %p45, %p46
    %p49 = scmp.ne.s32.totalorder %s32, %s48
    %p50 = scmp.eq.s32.totalorder %s24, 0
    %p51 = por %p49, %p50
    %s53 = sadd.s32 %s52, 1
    %p56 = scmp.eq.s32.totalorder %s18, 3
    %p57 = scmp.ne.s32.totalorder %s52, %s54
    %p58 = scmp.eq.s32.totalorder %s18, 0
    %p59 = por %p57, %p58
    %p60 = scmp.ne.s32.totalorder %s52, %s54
    %p61 = scmp.eq.s32.totalorder %s23, 3
    %p62 = por %p60, %p61
    %p63 = scmp.ne.s32.totalorder %s54, %s55
    %p64 = scmp.eq.s32.totalorder %s23, 0
    %p65 = por %p63, %p64
    %p66 = scmp.ne.s32.totalorder %s54, %s55
    %p67 = scmp.eq.s32.totalorder %s24, 3
    %p68 = por %p66, %p67
    %p70 = scmp.ne.s32.totalorder %s55, %s69
    %p71 = scmp.eq.s32.totalorder %s24, 0
    %p72 = por %p70, %p71
    %s74 = sadd.s32 %s73, 1
    %p77 = scmp.eq.s32.totalorder %s18, 3
    %p78 = scmp.ne.s32.totalorder %s73, %s75
    %p79 = scmp.eq.s32.totalorder %s18, 0
    %p80 = por %p78, %p79
    %p81 = scmp.ne.s32.totalorder %s73, %s75
    %p82 = scmp.eq.s32.totalorder %s23, 3
    %p83 = por %p81, %p82
    %p84 = scmp.ne.s32.totalorder %s75, %s76
    %p85 = scmp.eq.s32.totalorder %s23, 0
    %p86 = por %p84, %p85
    %p87 = scmp.ne.s32.totalorder %s75, %s76
    %p88 = scmp.eq.s32.totalorder %s24, 3
    %p89 = por %p87, %p88
    %p91 = scmp.ne.s32.totalorder %s76, %s90
    %p92 = scmp.eq.s32.totalorder %s24, 0
    %p93 = por %p91, %p92
    %s95 = sadd.s32 %s94, 1
    %p98 = scmp.eq.s32.totalorder %s18, 3
    %p99 = scmp.ne.s32.totalorder %s94, %s96
    %p100 = scmp.eq.s32.totalorder %s18, 0
    %p101 = por %p99, %p100
    %p102 = scmp.ne.s32.totalorder %s94, %s96
    %p103 = scmp.eq.s32.totalorder %s23, 3
    %p104 = por %p102, %p103
    %p105 = scmp.ne.s32.totalorder %s96, %s97
    %p106 = scmp.eq.s32.totalorder %s23, 0
    %p107 = por %p105, %p106
    %p108 = scmp.ne.s32.totalorder %s96, %s97
    %p109 = scmp.eq.s32.totalorder %s24, 3
    %p110 = por %p108, %p109
    %p112 = scmp.ne.s32.totalorder %s97, %s111
    %p113 = scmp.eq.s32.totalorder %s24, 0
    %p114 = por %p112, %p113
    %s116 = sadd.s32 %s115, 1
    %p119 = scmp.eq.s32.totalorder %s18, 3
    %p120 = scmp.ne.s32.totalorder %s115, %s117
    %p121 = scmp.eq.s32.totalorder %s18, 0
    %p122 = por %p120, %p121
    %p123 = scmp.ne.s32.totalorder %s115, %s117
    %p124 = scmp.eq.s32.totalorder %s23, 3
    %p125 = por %p123, %p124
    %p126 = scmp.ne.s32.totalorder %s117, %s118
    %p127 = scmp.eq.s32.totalorder %s23, 0
    %p128 = por %p126, %p127
    %p129 = scmp.ne.s32.totalorder %s117, %s118
    %p130 = scmp.eq.s32.totalorder %s24, 3
    %p131 = por %p129, %p130
    %p133 = scmp.ne.s32.totalorder %s118, %s132
    %p134 = scmp.eq.s32.totalorder %s24, 0
    %p135 = por %p133, %p134
    %s137 = sadd.s32 %s136, 1
    %p140 = scmp.eq.s32.totalorder %s18, 3
    %p141 = scmp.ne.s32.totalorder %s136, %s138
    %p142 = scmp.eq.s32.totalorder %s18, 0
    %p143 = por %p141, %p142
    %p144 = scmp.ne.s32.totalorder %s136, %s138
    %p145 = scmp.eq.s32.totalorder %s23, 3
    %p146 = por %p144, %p145
    %p147 = scmp.ne.s32.totalorder %s138, %s139
    %p148 = scmp.eq.s32.totalorder %s23, 0
    %p149 = por %p147, %p148
    %p150 = scmp.ne.s32.totalorder %s138, %s139
    %p151 = scmp.eq.s32.totalorder %s24, 3
    %p152 = por %p150, %p151
    %p154 = scmp.ne.s32.totalorder %s139, %s153
    %p155 = scmp.eq.s32.totalorder %s24, 0
    %p156 = por %p154, %p155
    %s158 = sadd.s32 %s157, 1
    %p161 = scmp.eq.s32.totalorder %s18, 3
    %p162 = scmp.ne.s32.totalorder %s157, %s159
    %p163 = scmp.eq.s32.totalorder %s18, 0
    %p164 = por %p162, %p163
    %p165 = scmp.ne.s32.totalorder %s157, %s159
    %p166 = scmp.eq.s32.totalorder %s23, 3
    %p167 = por %p165, %p166
    %p168 = scmp.ne.s32.totalorder %s159, %s160
    %p169 = scmp.eq.s32.totalorder %s23, 0
    %p170 = por %p168, %p169
    %p171 = scmp.ne.s32.totalorder %s159, %s160
    %p172 = scmp.eq.s32.totalorder %s24, 3
    %p173 = por %p171, %p172
    %p175 = scmp.ne.s32.totalorder %s160, %s174
    %p176 = scmp.eq.s32.totalorder %s24, 0
    %p177 = por %p175, %p176
    %s179 = sadd.s32 %s178, 1
    %p182 = scmp.eq.s32.totalorder %s18, 3
    %p183 = scmp.ne.s32.totalorder %s178, %s180
    %p184 = scmp.eq.s32.totalorder %s18, 0
    %p185 = por %p183, %p184
    %p186 = scmp.ne.s32.totalorder %s178, %s180
    %p187 = scmp.eq.s32.totalorder %s23, 3
    %p188 = por %p186, %p187
    %p189 = scmp.ne.s32.totalorder %s180, %s181
    %p190 = scmp.eq.s32.totalorder %s23, 0
    %p191 = por %p189, %p190
    %p192 = scmp.ne.s32.totalorder %s180, %s181
    %p193 = scmp.eq.s32.totalorder %s24, 3
    %p194 = por %p192, %p193
    %p196 = scmp.ne.s32.totalorder %s181, %s195
    %p197 = scmp.eq.s32.totalorder %s24, 0
    %p198 = por %p196, %p197
    %s200 = sadd.s32 %s199, 1
    %p203 = scmp.eq.s32.totalorder %s18, 3
    %p204 = scmp.ne.s32.totalorder %s199, %s201
    %p205 = scmp.eq.s32.totalorder %s18, 0
    %p206 = por %p204, %p205
    %p207 = scmp.ne.s32.totalorder %s199, %s201
    %p208 = scmp.eq.s32.totalorder %s23, 3
    %p209 = por %p207, %p208
    %p210 = scmp.ne.s32.totalorder %s201, %s202
    %p211 = scmp.eq.s32.totalorder %s23, 0
    %p212 = por %p210, %p211
    %p213 = scmp.ne.s32.totalorder %s201, %s202
    %p214 = scmp.eq.s32.totalorder %s24, 3
    %p215 = por %p213, %p214
    %p217 = scmp.ne.s32.totalorder %s202, %s216
    %p218 = scmp.eq.s32.totalorder %s24, 0
    %p219 = por %p217, %p218
    %s221 = sadd.s32 %s220, 1
    %p224 = scmp.eq.s32.totalorder %s18, 3
    %p225 = scmp.ne.s32.totalorder %s220, %s222
    %p226 = scmp.eq.s32.totalorder %s18, 0
    %p227 = por %p225, %p226
    %p228 = scmp.ne.s32.totalorder %s220, %s222
    %p229 = scmp.eq.s32.totalorder %s23, 3
    %p230 = por %p228, %p229
    %p231 = scmp.ne.s32.totalorder %s222, %s223
    %p232 = scmp.eq.s32.totalorder %s23, 0
    %p233 = por %p231, %p232
    %p234 = scmp.ne.s32.totalorder %s222, %s223
    %p235 = scmp.eq.s32.totalorder %s24, 3
    %p236 = por %p234, %p235
    %p238 = scmp.ne.s32.totalorder %s223, %s237
    %p239 = scmp.eq.s32.totalorder %s24, 0
    %p240 = por %p238, %p239
    %s242 = sadd.s32 %s241, 1
    %p245 = scmp.eq.s32.totalorder %s18, 3
    %p246 = scmp.ne.s32.totalorder %s241, %s243
    %p247 = scmp.eq.s32.totalorder %s18, 0
    %p248 = por %p246, %p247
    %p249 = scmp.ne.s32.totalorder %s241, %s243
    %p250 = scmp.eq.s32.totalorder %s23, 3
    %p251 = por %p249, %p250
    %p252 = scmp.ne.s32.totalorder %s243, %s244
    %p253 = scmp.eq.s32.totalorder %s23, 0
    %p254 = por %p252, %p253
    %p255 = scmp.ne.s32.totalorder %s243, %s244
    %p256 = scmp.eq.s32.totalorder %s24, 3
    %p257 = por %p255, %p256
    %p259 = scmp.ne.s32.totalorder %s244, %s258
    %p260 = scmp.eq.s32.totalorder %s24, 0
    %p261 = por %p259, %p260
    %s263 = sadd.s32 %s262, 1
    %p266 = scmp.eq.s32.totalorder %s18, 3
    %p267 = scmp.ne.s32.totalorder %s262, %s264
    %p268 = scmp.eq.s32.totalorder %s18, 0
    %p269 = por %p267, %p268
    %p270 = scmp.ne.s32.totalorder %s262, %s264
    %p271 = scmp.eq.s32.totalorder %s23, 3
    %p272 = por %p270, %p271
    %p273 = scmp.ne.s32.totalorder %s264, %s265
    %p274 = scmp.eq.s32.totalorder %s23, 0
    %p275 = por %p273, %p274
    %p276 = scmp.ne.s32.totalorder %s264, %s265
    %p277 = scmp.eq.s32.totalorder %s24, 3
    %p278 = por %p276, %p277
    %p280 = scmp.ne.s32.totalorder %s265, %s279
    %p281 = scmp.eq.s32.totalorder %s24, 0
    %p282 = por %p280, %p281
    %s283 = ssub.s32 %s18, %s25
    %p284 = scmp.eq.s32.totalorder %s283, 0
    %s286 = sadd.s32 %s285, 1
    %s287 = scalar_select %p284, %s285, %s286
    %p290 = pneg %p284
    %p291 = scmp.eq.s32.totalorder %s18, 3
    %p292 = por %p290, %p291
    %p293 = scmp.ne.s32.totalorder %s285, %s288
    %p294 = scmp.eq.s32.totalorder %s18, 0
    %p295 = por %p293, %p294
    %p296 = scmp.ne.s32.totalorder %s285, %s288
    %p297 = scmp.eq.s32.totalorder %s23, 3
    %p298 = por %p296, %p297
    %p299 = scmp.ne.s32.totalorder %s288, %s289
    %p300 = scmp.eq.s32.totalorder %s23, 0
    %p301 = por %p299, %p300
    %p302 = scmp.ne.s32.totalorder %s288, %s289
    %p303 = scmp.eq.s32.totalorder %s24, 3
    %p304 = por %p302, %p303
    %p306 = scmp.ne.s32.totalorder %s289, %s305
    %p307 = scmp.eq.s32.totalorder %s24, 0
    %p308 = por %p306, %p307
    %p309 = scmp.le.s32.totalorder 1, %s18
    %p310 = scmp.lt.s32.totalorder %s18, 5
    %p311 = pnand %p309, %p310
    %p312 = pneg %p311
    // Predicated region
    $region9: #{tpu_custom_call.1} parent=5 // pred_check
      _
    $region10: #{tpu_custom_call.1} parent=5 // pred_check_branch
      %314 = sbr.rel (%p311) target = $region12
    $region11: #{tpu_custom_call.1} parent=5 // pred_region
      %s315 = ssub.s32 %s18, 1
      // Predicated region
      $region13: #{tpu_custom_call.1} parent=11 // pred_check
        %p316 = pneg %p65
      $region14: #{tpu_custom_call.1} parent=11 // pred_check_branch
        %318 = sbr.rel (%p316) target = $region16
      $region15: #{tpu_custom_call.1} parent=11 // pred_region
        _
      $region16: #{tpu_custom_call.1} parent=11 // pred_fallthru
        _
      // Predicated region
      $region17: #{tpu_custom_call.1} parent=11 // pred_check
        %p319 = pneg %p86
      $region18: #{tpu_custom_call.1} parent=11 // pred_check_branch
        %321 = sbr.rel (%p319) target = $region20
      $region19: #{tpu_custom_call.1} parent=11 // pred_region
        _
      $region20: #{tpu_custom_call.1} parent=11 // pred_fallthru
        _
      // Predicated region
      $region21: #{tpu_custom_call.1} parent=11 // pred_check
        %p322 = pneg %p107
      $region22: #{tpu_custom_call.1} parent=11 // pred_check_branch
        %324 = sbr.rel (%p322) target = $region24
      $region23: #{tpu_custom_call.1} parent=11 // pred_region
        _
      $region24: #{tpu_custom_call.1} parent=11 // pred_fallthru
        _
      // Predicated region
      $region25: #{tpu_custom_call.1} parent=11 // pred_check
        %p325 = pneg %p128
      $region26: #{tpu_custom_call.1} parent=11 // pred_check_branch
        %327 = sbr.rel (%p325) target = $region28
      $region27: #{tpu_custom_call.1} parent=11 // pred_region
        _
      $region28: #{tpu_custom_call.1} parent=11 // pred_fallthru
        _
      // Predicated region
      $region29: #{tpu_custom_call.1} parent=11 // pred_check
        %p328 = pneg %p149
      $region30: #{tpu_custom_call.1} parent=11 // pred_check_branch
        %330 = sbr.rel (%p328) target = $region32
      $region31: #{tpu_custom_call.1} parent=11 // pred_region
        _
      $region32: #{tpu_custom_call.1} parent=11 // pred_fallthru
        _
      // Predicated region
      $region33: #{tpu_custom_call.1} parent=11 // pred_check
        %p331 = pneg %p170
      $region34: #{tpu_custom_call.1} parent=11 // pred_check_branch
        %333 = sbr.rel (%p331) target = $region36
      $region35: #{tpu_custom_call.1} parent=11 // pred_region
        _
      $region36: #{tpu_custom_call.1} parent=11 // pred_fallthru
        _
      // Predicated region
      $region37: #{tpu_custom_call.1} parent=11 // pred_check
        %p334 = pneg %p191
      $region38: #{tpu_custom_call.1} parent=11 // pred_check_branch
        %336 = sbr.rel (%p334) target = $region40
      $region39: #{tpu_custom_call.1} parent=11 // pred_region
        _
      $region40: #{tpu_custom_call.1} parent=11 // pred_fallthru
        _
      // Predicated region
      $region41: #{tpu_custom_call.1} parent=11 // pred_check
        %p337 = pneg %p212
      $region42: #{tpu_custom_call.1} parent=11 // pred_check_branch
        %339 = sbr.rel (%p337) target = $region44
      $region43: #{tpu_custom_call.1} parent=11 // pred_region
        _
      $region44: #{tpu_custom_call.1} parent=11 // pred_fallthru
        _
      // Predicated region
      $region45: #{tpu_custom_call.1} parent=11 // pred_check
        %p340 = pneg %p233
      $region46: #{tpu_custom_call.1} parent=11 // pred_check_branch
        %342 = sbr.rel (%p340) target = $region48
      $region47: #{tpu_custom_call.1} parent=11 // pred_region
        _
      $region48: #{tpu_custom_call.1} parent=11 // pred_fallthru
        _
      // Predicated region
      $region49: #{tpu_custom_call.1} parent=11 // pred_check
        %p343 = pneg %p254
      $region50: #{tpu_custom_call.1} parent=11 // pred_check_branch
        %345 = sbr.rel (%p343) target = $region52
      $region51: #{tpu_custom_call.1} parent=11 // pred_region
        _
      $region52: #{tpu_custom_call.1} parent=11 // pred_fallthru
        _
      // Predicated region
      $region53: #{tpu_custom_call.1} parent=11 // pred_check
        %p346 = pneg %p275
      $region54: #{tpu_custom_call.1} parent=11 // pred_check_branch
        %348 = sbr.rel (%p346) target = $region56
      $region55: #{tpu_custom_call.1} parent=11 // pred_region
        _
      $region56: #{tpu_custom_call.1} parent=11 // pred_fallthru
        _
    $region12: #{tpu_custom_call.1} parent=5 // pred_fallthru
      _
    %p349 = scmp.lt.s32.totalorder %s18, 4
    // Predicated region
    $region57: #{tpu_custom_call.1} parent=5 // pred_check
      %p350 = pneg %p349
    $region58: #{tpu_custom_call.1} parent=5 // pred_check_branch
      %352 = sbr.rel (%p350) target = $region60
    $region59: #{tpu_custom_call.1} parent=5 // pred_region
      // Predicated region
      $region61: #{tpu_custom_call.1} parent=59 // pred_check
        %p353 = pneg %p38
      $region62: #{tpu_custom_call.1} parent=59 // pred_check_branch
        %355 = sbr.rel (%p353) target = $region64
      $region63: #{tpu_custom_call.1} parent=59 // pred_region
        %s356 = smul.u32 16, %s18
        %p357 = scmp.lt.s32.totalorder %s356, 63
        %s358 = scalar_select %p357, %s356, 63
        %s359 = smul.addr %s358, 8
        %s360 = scalar_lea.vmem %s0, %s359
        %s361 = smul.u32 16, %s18
      $region64: #{tpu_custom_call.1} parent=59 // pred_fallthru
        _
    $region60: #{tpu_custom_call.1} parent=5 // pred_fallthru
      _
    %p362 = scmp.le.s32.totalorder 1, %s18
    %p363 = scmp.lt.s32.totalorder %s18, 5
    %p364 = pnand %p362, %p363
    %p365 = pneg %p364
    // Predicated region
    $region65: #{tpu_custom_call.1} parent=5 // pred_check
      _
    $region66: #{tpu_custom_call.1} parent=5 // pred_check_branch
      %367 = sbr.rel (%p364) target = $region68
    $region67: #{tpu_custom_call.1} parent=5 // pred_region
      %s368 = ssub.s32 %s18, 1
      %s369 = smul.u32 16, %s23
      %p370 = scmp.lt.s32.totalorder %s369, 63
      %s371 = scalar_select %p370, %s369, 63
      %s372 = smul.addr %s371, 8
      %s373 = scalar_lea.vmem %s0, %s372
      %p374 = pneg %p44
      %p375 = pneg %p41
      %p376 = pneg %p65
      %p377 = pneg %p62
      %p378 = pneg %p86
      %p379 = pneg %p83
      %p380 = pneg %p107
      %p381 = pneg %p104
      %p382 = pneg %p128
      %p383 = pneg %p125
      %p384 = pneg %p149
      %p385 = pneg %p146
      %p386 = pneg %p170
      %p387 = pneg %p167
      %p388 = pneg %p191
      %p389 = pneg %p188
      %p390 = pneg %p212
      %p391 = pneg %p209
      %p392 = pneg %p233
      %p393 = pneg %p230
      %p394 = pneg %p254
      %p395 = pneg %p251
      %p396 = pneg %p275
      %p397 = pneg %p272
      %p398 = pneg %p301
      %p399 = pneg %p298
      %s400 = smul.u32 16, %s23
      %p401 = scmp.lt.s32.totalorder %s400, 63
      %s402 = scalar_select %p401, %s400, 63
      %s403 = smul.addr %s402, 8
      %s404 = scalar_lea.vmem %s12, %s403
      %s405 = smul.u32 16, %s23
      %p406 = scmp.lt.s32.totalorder %s405, 63
      %s407 = scalar_select %p406, %s405, 63
      %s408 = smul.addr %s407, 8
      %s409 = scalar_lea.vmem %s0, %s408
      %s410 = smul.u32 16, %s23
      %s411 = smul.u32 16, %s23
      %p412 = scmp.lt.s32.totalorder %s411, 63
      %s413 = scalar_select %p412, %s411, 63
      %s414 = smul.addr %s413, 8
      %s415 = scalar_lea.vmem %s12, %s414
      %s416 = smul.u32 16, %s23
      %v418 = vld [vmem:[%s409] sm:$0xff]
      %v419 = vld [vmem:[%s409 + $0x8] sm:$0xff]
      %v420 = vld [vmem:[%s409 + $0x10] sm:$0xff]
      %v421 = vld [vmem:[%s409 + $0x18] sm:$0xff]
      %v422 = vld [vmem:[%s409 + $0x20] sm:$0xff]
      %v423 = vld [vmem:[%s409 + $0x28] sm:$0xff]
      %v424 = vld [vmem:[%s409 + $0x30] sm:$0xff]
      %v425 = vld [vmem:[%s409 + $0x38] sm:$0xff]
      %v426 = vld [vmem:[%s409 + $0x40] sm:$0xff]
      %v427 = vld [vmem:[%s409 + $0x48] sm:$0xff]
      %v428 = vld [vmem:[%s409 + $0x50] sm:$0xff]
      %v429 = vld [vmem:[%s409 + $0x58] sm:$0xff]
      %v430 = vld [vmem:[%s409 + $0x60] sm:$0xff]
      %v431 = vld [vmem:[%s409 + $0x68] sm:$0xff]
      %v432 = vld [vmem:[%s409 + $0x70] sm:$0xff]
      %v433 = vld [vmem:[%s409 + $0x78] sm:$0xff]
      %v434 = vpack.c.bf16 %v419, %v418
      %v435 = vpack.c.bf16 %v421, %v420
      %v436 = vpack.c.bf16 %v423, %v422
      %v437 = vpack.c.bf16 %v425, %v424
      %v438 = vpack.c.bf16 %v427, %v426
      %v439 = vpack.c.bf16 %v429, %v428
      %v440 = vpack.c.bf16 %v431, %v430
      %v441 = vpack.c.bf16 %v433, %v432
      %v442 = vld [vmem:[%s2] sm:$0xf]
      %v443 = vld [vmem:[%s2 + $0x4] sm:$0xf]
      %v444 = vld [vmem:[%s2 + $0x8] sm:$0xf]
      %v445 = vld [vmem:[%s2 + $0xc] sm:$0xf]
      %v450 = vunpack.c.l.b16 %v442
      %v451 = vunpack.c.l.b16 %v443
      %v452 = vunpack.c.l.b16 %v444
      %v453 = vunpack.c.l.b16 %v445
      %v454 = vpack.c.b16 %v451, %v450
      %v455 = vpack.c.b16 %v453, %v452
      %vm458 = vcmask 261120
      %v460 = vsel %vm458, %v434, 0
      %v463 = vsel %vm458, %v435, 0
      %v466 = vsel %vm458, %v436, 0
      %v469 = vsel %vm458, %v437, 0
      %v472 = vsel %vm458, %v438, 0
      %v475 = vsel %vm458, %v439, 0
      %v478 = vsel %vm458, %v440, 0
      %v481 = vsel %vm458, %v441, 0
      %483 = vmatpush.bf16.msra.mxu0 0
      %484 = vmatpush.bf16.msra.mxu0 0
      %485 = vmatpush.bf16.msra.mxu0 0
      %486 = vmatpush.bf16.msra.mxu0 0
      %487 = vmatpush.bf16.msra.mxu0 0
      %488 = vmatpush.bf16.msra.mxu0 0
      %489 = vmatpush.bf16.msra.mxu0 %v455
      %490 = vmatpush.bf16.msra.mxu0 %v454
      %491 = vmatmul.bf16.gmra.mxu0 %v460
      %v492 = vpop.f32.mrf.mxu0
      %v493 = vadd.f32 0.0, %v492
      %v494 = vpop.f32.mrf.mxu0
      %v495 = vadd.f32 0.0, %v494
      %496 = vmatmul.bf16.gmra.mxu0 %v463
      %v497 = vpop.f32.mrf.mxu0
      %v498 = vadd.f32 0.0, %v497
      %v499 = vpop.f32.mrf.mxu0
      %v500 = vadd.f32 0.0, %v499
      %501 = vmatmul.bf16.gmra.mxu0 %v466
      %v502 = vpop.f32.mrf.mxu0
      %v503 = vadd.f32 0.0, %v502
      %v504 = vpop.f32.mrf.mxu0
      %v505 = vadd.f32 0.0, %v504
      %506 = vmatmul.bf16.gmra.mxu0 %v469
      %v507 = vpop.f32.mrf.mxu0
      %v508 = vadd.f32 0.0, %v507
      %v509 = vpop.f32.mrf.mxu0
      %v510 = vadd.f32 0.0, %v509
      %511 = vmatmul.bf16.gmra.mxu0 %v472
      %v512 = vpop.f32.mrf.mxu0
      %v513 = vadd.f32 0.0, %v512
      %v514 = vpop.f32.mrf.mxu0
      %v515 = vadd.f32 0.0, %v514
      %516 = vmatmul.bf16.gmra.mxu0 %v475
      %v517 = vpop.f32.mrf.mxu0
      %v518 = vadd.f32 0.0, %v517
      %v519 = vpop.f32.mrf.mxu0
      %v520 = vadd.f32 0.0, %v519
      %521 = vmatmul.bf16.gmra.mxu0 %v478
      %v522 = vpop.f32.mrf.mxu0
      %v523 = vadd.f32 0.0, %v522
      %v524 = vpop.f32.mrf.mxu0
      %v525 = vadd.f32 0.0, %v524
      %526 = vmatmul.bf16.gmra.mxu0 %v481
      %v527 = vpop.f32.mrf.mxu0
      %v528 = vadd.f32 0.0, %v527
      %v529 = vpop.f32.mrf.mxu0
      %v530 = vadd.f32 0.0, %v529
      %531 = vdwg.mxu0
      %v532 = vpack.c.bf16 %v495, %v493
      %v533 = vpack.c.bf16 %v500, %v498
      %v534 = vpack.c.bf16 %v505, %v503
      %v535 = vpack.c.bf16 %v510, %v508
      %v536 = vpack.c.bf16 %v515, %v513
      %v537 = vpack.c.bf16 %v520, %v518
      %v538 = vpack.c.bf16 %v525, %v523
      %v539 = vpack.c.bf16 %v530, %v528
      %v540 = vld [vmem:[%s1] sm:$0xff]
      %v541 = vld [vmem:[%s1 + $0x8] sm:$0xff]
      %v542 = vld [vmem:[%s1 + $0x10] sm:$0xff]
      %v543 = vld [vmem:[%s1 + $0x18] sm:$0xff]
      %v544 = vld [vmem:[%s1 + $0x20] sm:$0xff]
      %v545 = vld [vmem:[%s1 + $0x28] sm:$0xff]
      %v546 = vld [vmem:[%s1 + $0x30] sm:$0xff]
      %v547 = vld [vmem:[%s1 + $0x38] sm:$0xff]
      %v548 = vld [vmem:[%s1 + $0x40] sm:$0xff]
      %v549 = vld [vmem:[%s1 + $0x48] sm:$0xff]
      %v550 = vld [vmem:[%s1 + $0x50] sm:$0xff]
      %v551 = vld [vmem:[%s1 + $0x58] sm:$0xff]
      %v552 = vld [vmem:[%s1 + $0x60] sm:$0xff]
      %v553 = vld [vmem:[%s1 + $0x68] sm:$0xff]
      %v554 = vld [vmem:[%s1 + $0x70] sm:$0xff]
      %v555 = vld [vmem:[%s1 + $0x78] sm:$0xff]
      %564 = vrot.lane.b32.xlu0 %v532, 96
      %v565 = vpop.permute.xlu0 %564
      %566 = vrot.lane.b32.xlu0 %v533, 96
      %v567 = vpop.permute.xlu0 %566
      %568 = vrot.lane.b32.xlu0 %v534, 96
      %v569 = vpop.permute.xlu0 %568
      %570 = vrot.lane.b32.xlu0 %v535, 96
      %v571 = vpop.permute.xlu0 %570
      %572 = vrot.lane.b32.xlu0 %v536, 96
      %v573 = vpop.permute.xlu0 %572
      %574 = vrot.lane.b32.xlu0 %v537, 96
      %v575 = vpop.permute.xlu0 %574
      %576 = vrot.lane.b32.xlu0 %v538, 96
      %v577 = vpop.permute.xlu0 %576
      %578 = vrot.lane.b32.xlu0 %v539, 96
      %v579 = vpop.permute.xlu0 %578
      %v581 = vsel %vm458, %v532, 0
      %v584 = vsel %vm458, %v533, 0
      %v587 = vsel %vm458, %v534, 0
      %v590 = vsel %vm458, %v535, 0
      %v593 = vsel %vm458, %v536, 0
      %v596 = vsel %vm458, %v537, 0
      %v599 = vsel %vm458, %v538, 0
      %v602 = vsel %vm458, %v539, 0
      %v605 = vsel %vm458, %v565, 0
      %v608 = vsel %vm458, %v567, 0
      %v611 = vsel %vm458, %v569, 0
      %v614 = vsel %vm458, %v571, 0
      %v617 = vsel %vm458, %v573, 0
      %v620 = vsel %vm458, %v575, 0
      %v623 = vsel %vm458, %v577, 0
      %v626 = vsel %vm458, %v579, 0
      %628 = vmatpush.bf16.xpose.msra.mxu0 %v626
      %629 = vmatpush.bf16.xpose.msra.mxu0 %v623
      %630 = vmatpush.bf16.xpose.msra.mxu0 %v620
      %631 = vmatpush.bf16.xpose.msra.mxu0 %v617
      %632 = vmatpush.bf16.xpose.msra.mxu0 %v614
      %633 = vmatpush.bf16.xpose.msra.mxu0 %v611
      %634 = vmatpush.bf16.xpose.msra.mxu0 %v608
      %635 = vmatpush.bf16.xpose.msra.mxu0 %v605
      %636 = vmatmul.bf16.gmra.mxu0 %v581
      %v637 = vpop.f32.mrf.mxu0
      %v638 = vadd.f32 %v540, %v637
      %v639 = vpop.f32.mrf.mxu0
      %v640 = vadd.f32 %v541, %v639
      %641 = vmatmul.bf16.gmra.mxu0 %v584
      %v642 = vpop.f32.mrf.mxu0
      %v643 = vadd.f32 %v542, %v642
      %v644 = vpop.f32.mrf.mxu0
      %v645 = vadd.f32 %v543, %v644
      %646 = vmatmul.bf16.gmra.mxu0 %v587
      %v647 = vpop.f32.mrf.mxu0
      %v648 = vadd.f32 %v544, %v647
      %v649 = vpop.f32.mrf.mxu0
      %v650 = vadd.f32 %v545, %v649
      %651 = vmatmul.bf16.gmra.mxu0 %v590
      %v652 = vpop.f32.mrf.mxu0
      %v653 = vadd.f32 %v546, %v652
      %v654 = vpop.f32.mrf.mxu0
      %v655 = vadd.f32 %v547, %v654
      %656 = vmatmul.bf16.gmra.mxu0 %v593
      %v657 = vpop.f32.mrf.mxu0
      %v658 = vadd.f32 %v548, %v657
      %v659 = vpop.f32.mrf.mxu0
      %v660 = vadd.f32 %v549, %v659
      %661 = vmatmul.bf16.gmra.mxu0 %v596
      %v662 = vpop.f32.mrf.mxu0
      %v663 = vadd.f32 %v550, %v662
      %v664 = vpop.f32.mrf.mxu0
      %v665 = vadd.f32 %v551, %v664
      %666 = vmatmul.bf16.gmra.mxu0 %v599
      %v667 = vpop.f32.mrf.mxu0
      %v668 = vadd.f32 %v552, %v667
      %v669 = vpop.f32.mrf.mxu0
      %v670 = vadd.f32 %v553, %v669
      %671 = vmatmul.bf16.gmra.mxu0 %v602
      %v672 = vpop.f32.mrf.mxu0
      %v673 = vadd.f32 %v554, %v672
      %v674 = vpop.f32.mrf.mxu0
      %v675 = vadd.f32 %v555, %v674
      %676 = vdwg.mxu0
      %677 = vmax.xlane.f32.xlu0 %v638
      %v678 = vpop.xlane.xlu0 %677
      %679 = vmax.xlane.f32.xlu0 %v640
      %v680 = vpop.xlane.xlu0 %679
      %681 = vmax.xlane.f32.xlu0 %v643
      %v682 = vpop.xlane.xlu0 %681
      %683 = vmax.xlane.f32.xlu0 %v645
      %v684 = vpop.xlane.xlu0 %683
      %685 = vmax.xlane.f32.xlu0 %v648
      %v686 = vpop.xlane.xlu0 %685
      %687 = vmax.xlane.f32.xlu0 %v650
      %v688 = vpop.xlane.xlu0 %687
      %689 = vmax.xlane.f32.xlu0 %v653
      %v690 = vpop.xlane.xlu0 %689
      %691 = vmax.xlane.f32.xlu0 %v655
      %v692 = vpop.xlane.xlu0 %691
      %693 = vmax.xlane.f32.xlu0 %v658
      %v694 = vpop.xlane.xlu0 %693
      %695 = vmax.xlane.f32.xlu0 %v660
      %v696 = vpop.xlane.xlu0 %695
      %697 = vmax.xlane.f32.xlu0 %v663
      %v698 = vpop.xlane.xlu0 %697
      %699 = vmax.xlane.f32.xlu0 %v665
      %v700 = vpop.xlane.xlu0 %699
      %701 = vmax.xlane.f32.xlu0 %v668
      %v702 = vpop.xlane.xlu0 %701
      %703 = vmax.xlane.f32.xlu0 %v670
      %v704 = vpop.xlane.xlu0 %703
      %705 = vmax.xlane.f32.xlu0 %v673
      %v706 = vpop.xlane.xlu0 %705
      %707 = vmax.xlane.f32.xlu0 %v675
      %v708 = vpop.xlane.xlu0 %707
      %v709 = vsub.f32 %v638, %v678
      %v710 = vsub.f32 %v640, %v680
      %v711 = vsub.f32 %v643, %v682
      %v712 = vsub.f32 %v645, %v684
      %v713 = vsub.f32 %v648, %v686
      %v714 = vsub.f32 %v650, %v688
      %v715 = vsub.f32 %v653, %v690
      %v716 = vsub.f32 %v655, %v692
      %v717 = vsub.f32 %v658, %v694
      %v718 = vsub.f32 %v660, %v696
      %v719 = vsub.f32 %v663, %v698
      %v720 = vsub.f32 %v665, %v700
      %v721 = vsub.f32 %v668, %v702
      %v722 = vsub.f32 %v670, %v704
      %v723 = vsub.f32 %v673, %v706
      %v724 = vsub.f32 %v675, %v708
      %v725 = vmul.f32 %v709, 1.442695
      %v726 = vpow.pop %v725
      %v727 = vmul.f32 %v710, 1.442695
      %v728 = vpow.pop %v727
      %v729 = vmul.f32 %v711, 1.442695
      %v730 = vpow.pop %v729
      %v731 = vmul.f32 %v712, 1.442695
      %v732 = vpow.pop %v731
      %v733 = vmul.f32 %v713, 1.442695
      %v734 = vpow.pop %v733
      %v735 = vmul.f32 %v714, 1.442695
      %v736 = vpow.pop %v735
      %v737 = vmul.f32 %v715, 1.442695
      %v738 = vpow.pop %v737
      %v739 = vmul.f32 %v716, 1.442695
      %v740 = vpow.pop %v739
      %v741 = vmul.f32 %v717, 1.442695
      %v742 = vpow.pop %v741
      %v743 = vmul.f32 %v718, 1.442695
      %v744 = vpow.pop %v743
      %v745 = vmul.f32 %v719, 1.442695
      %v746 = vpow.pop %v745
      %v747 = vmul.f32 %v720, 1.442695
      %v748 = vpow.pop %v747
      %v749 = vmul.f32 %v721, 1.442695
      %v750 = vpow.pop %v749
      %v751 = vmul.f32 %v722, 1.442695
      %v752 = vpow.pop %v751
      %v753 = vmul.f32 %v723, 1.442695
      %v754 = vpow.pop %v753
      %v755 = vmul.f32 %v724, 1.442695
      %v756 = vpow.pop %v755
      %757 = vadd.xlane.f32.xlu0 %v726
      %v758 = vpop.xlane.xlu0 %757
      %759 = vadd.xlane.f32.xlu0 %v728
      %v760 = vpop.xlane.xlu0 %759
      %761 = vadd.xlane.f32.xlu0 %v730
      %v762 = vpop.xlane.xlu0 %761
      %763 = vadd.xlane.f32.xlu0 %v732
      %v764 = vpop.xlane.xlu0 %763
      %765 = vadd.xlane.f32.xlu0 %v734
      %v766 = vpop.xlane.xlu0 %765
      %767 = vadd.xlane.f32.xlu0 %v736
      %v768 = vpop.xlane.xlu0 %767
      %769 = vadd.xlane.f32.xlu0 %v738
      %v770 = vpop.xlane.xlu0 %769
      %771 = vadd.xlane.f32.xlu0 %v740
      %v772 = vpop.xlane.xlu0 %771
      %773 = vadd.xlane.f32.xlu0 %v742
      %v774 = vpop.xlane.xlu0 %773
      %775 = vadd.xlane.f32.xlu0 %v744
      %v776 = vpop.xlane.xlu0 %775
      %777 = vadd.xlane.f32.xlu0 %v746
      %v778 = vpop.xlane.xlu0 %777
      %779 = vadd.xlane.f32.xlu0 %v748
      %v780 = vpop.xlane.xlu0 %779
      %781 = vadd.xlane.f32.xlu0 %v750
      %v782 = vpop.xlane.xlu0 %781
      %783 = vadd.xlane.f32.xlu0 %v752
      %v784 = vpop.xlane.xlu0 %783
      %785 = vadd.xlane.f32.xlu0 %v754
      %v786 = vpop.xlane.xlu0 %785
      %787 = vadd.xlane.f32.xlu0 %v756
      %v788 = vpop.xlane.xlu0 %787
      %v789 = vrcp.pop %v758
      %v790 = vrcp.pop %v760
      %v791 = vrcp.pop %v762
      %v792 = vrcp.pop %v764
      %v793 = vrcp.pop %v766
      %v794 = vrcp.pop %v768
      %v795 = vrcp.pop %v770
      %v796 = vrcp.pop %v772
      %v797 = vrcp.pop %v774
      %v798 = vrcp.pop %v776
      %v799 = vrcp.pop %v778
      %v800 = vrcp.pop %v780
      %v801 = vrcp.pop %v782
      %v802 = vrcp.pop %v784
      %v803 = vrcp.pop %v786
      %v804 = vrcp.pop %v788
      %v805 = vmul.f32 %v726, %v789
      %v806 = vmul.f32 %v728, %v790
      %v807 = vmul.f32 %v730, %v791
      %v808 = vmul.f32 %v732, %v792
      %v809 = vmul.f32 %v734, %v793
      %v810 = vmul.f32 %v736, %v794
      %v811 = vmul.f32 %v738, %v795
      %v812 = vmul.f32 %v740, %v796
      %v813 = vmul.f32 %v742, %v797
      %v814 = vmul.f32 %v744, %v798
      %v815 = vmul.f32 %v746, %v799
      %v816 = vmul.f32 %v748, %v800
      %v817 = vmul.f32 %v750, %v801
      %v818 = vmul.f32 %v752, %v802
      %v819 = vmul.f32 %v754, %v803
      %v820 = vmul.f32 %v756, %v804
      %v821 = vpack.c.bf16 %v806, %v805
      %v822 = vpack.c.bf16 %v808, %v807
      %v823 = vpack.c.bf16 %v810, %v809
      %v824 = vpack.c.bf16 %v812, %v811
      %v825 = vpack.c.bf16 %v814, %v813
      %v826 = vpack.c.bf16 %v816, %v815
      %v827 = vpack.c.bf16 %v818, %v817
      %v828 = vpack.c.bf16 %v820, %v819
      %v829 = vld [vmem:[%s3] sm:$0x1]
      %v831 = vperm.slane %v829, 0
      %833 = vrot.lane.b32.xlu0 %v532, 64
      %v834 = vpop.permute.xlu0 %833
      %835 = vrot.lane.b32.xlu0 %v533, 64
      %v836 = vpop.permute.xlu0 %835
      %837 = vrot.lane.b32.xlu0 %v534, 64
      %v838 = vpop.permute.xlu0 %837
      %839 = vrot.lane.b32.xlu0 %v535, 64
      %v840 = vpop.permute.xlu0 %839
      %841 = vrot.lane.b32.xlu0 %v536, 64
      %v842 = vpop.permute.xlu0 %841
      %843 = vrot.lane.b32.xlu0 %v537, 64
      %v844 = vpop.permute.xlu0 %843
      %845 = vrot.lane.b32.xlu0 %v538, 64
      %v846 = vpop.permute.xlu0 %845
      %847 = vrot.lane.b32.xlu0 %v539, 64
      %v848 = vpop.permute.xlu0 %847
      %857 = vmatpush.bf16.msra.mxu0 %v848
      %858 = vmatpush.bf16.msra.mxu0 %v846
      %859 = vmatpush.bf16.msra.mxu0 %v844
      %860 = vmatpush.bf16.msra.mxu0 %v842
      %861 = vmatpush.bf16.msra.mxu0 %v840
      %862 = vmatpush.bf16.msra.mxu0 %v838
      %863 = vmatpush.bf16.msra.mxu0 %v836
      %864 = vmatpush.bf16.msra.mxu0 %v834
      %865 = vmatmul.bf16.gmra.mxu0 %v821
      %v866 = vpop.f32.mrf.mxu0
      %v867 = vadd.f32 %v831, %v866
      %v868 = vpop.f32.mrf.mxu0
      %v869 = vadd.f32 %v831, %v868
      %870 = vmatmul.bf16.gmra.mxu0 %v822
      %v871 = vpop.f32.mrf.mxu0
      %v872 = vadd.f32 %v831, %v871
      %v873 = vpop.f32.mrf.mxu0
      %v874 = vadd.f32 %v831, %v873
      %875 = vmatmul.bf16.gmra.mxu0 %v823
      %v876 = vpop.f32.mrf.mxu0
      %v877 = vadd.f32 %v831, %v876
      %v878 = vpop.f32.mrf.mxu0
      %v879 = vadd.f32 %v831, %v878
      %880 = vmatmul.bf16.gmra.mxu0 %v824
      %v881 = vpop.f32.mrf.mxu0
      %v882 = vadd.f32 %v831, %v881
      %v883 = vpop.f32.mrf.mxu0
      %v884 = vadd.f32 %v831, %v883
      %885 = vmatmul.bf16.gmra.mxu0 %v825
      %v886 = vpop.f32.mrf.mxu0
      %v887 = vadd.f32 %v831, %v886
      %v888 = vpop.f32.mrf.mxu0
      %v889 = vadd.f32 %v831, %v888
      %890 = vmatmul.bf16.gmra.mxu0 %v826
      %v891 = vpop.f32.mrf.mxu0
      %v892 = vadd.f32 %v831, %v891
      %v893 = vpop.f32.mrf.mxu0
      %v894 = vadd.f32 %v831, %v893
      %895 = vmatmul.bf16.gmra.mxu0 %v827
      %v896 = vpop.f32.mrf.mxu0
      %v897 = vadd.f32 %v831, %v896
      %v898 = vpop.f32.mrf.mxu0
      %v899 = vadd.f32 %v831, %v898
      %900 = vmatmul.bf16.gmra.mxu0 %v828
      %v901 = vpop.f32.mrf.mxu0
      %v902 = vadd.f32 %v831, %v901
      %v903 = vpop.f32.mrf.mxu0
      %v904 = vadd.f32 %v831, %v903
      %905 = vdwg.mxu0
      %v906 = vadd.f32 %v418, %v867
      %v907 = vadd.f32 %v419, %v869
      %v908 = vadd.f32 %v420, %v872
      %v909 = vadd.f32 %v421, %v874
      %v910 = vadd.f32 %v422, %v877
      %v911 = vadd.f32 %v423, %v879
      %v912 = vadd.f32 %v424, %v882
      %v913 = vadd.f32 %v425, %v884
      %v914 = vadd.f32 %v426, %v887
      %v915 = vadd.f32 %v427, %v889
      %v916 = vadd.f32 %v428, %v892
      %v917 = vadd.f32 %v429, %v894
      %v918 = vadd.f32 %v430, %v897
      %v919 = vadd.f32 %v431, %v899
      %v920 = vadd.f32 %v432, %v902
      %v921 = vadd.f32 %v433, %v904
      %v922 = vld [vmem:[%s4] sm:$0x1]
      %v923 = vld [vmem:[%s5] sm:$0x1]
      %v924 = vsel %vm458, %v906, 0.0
      %925 = vadd.xlane.f32.xlu0 %v924
      %v926 = vpop.xlane.xlu0 %925
      %v927 = vsel %vm458, %v907, 0.0
      %928 = vadd.xlane.f32.xlu0 %v927
      %v929 = vpop.xlane.xlu0 %928
      %v930 = vsel %vm458, %v908, 0.0
      %931 = vadd.xlane.f32.xlu0 %v930
      %v932 = vpop.xlane.xlu0 %931
      %v933 = vsel %vm458, %v909, 0.0
      %934 = vadd.xlane.f32.xlu0 %v933
      %v935 = vpop.xlane.xlu0 %934
      %v936 = vsel %vm458, %v910, 0.0
      %937 = vadd.xlane.f32.xlu0 %v936
      %v938 = vpop.xlane.xlu0 %937
      %v939 = vsel %vm458, %v911, 0.0
      %940 = vadd.xlane.f32.xlu0 %v939
      %v941 = vpop.xlane.xlu0 %940
      %v942 = vsel %vm458, %v912, 0.0
      %943 = vadd.xlane.f32.xlu0 %v942
      %v944 = vpop.xlane.xlu0 %943
      %v945 = vsel %vm458, %v913, 0.0
      %946 = vadd.xlane.f32.xlu0 %v945
      %v947 = vpop.xlane.xlu0 %946
      %v948 = vsel %vm458, %v914, 0.0
      %949 = vadd.xlane.f32.xlu0 %v948
      %v950 = vpop.xlane.xlu0 %949
      %v951 = vsel %vm458, %v915, 0.0
      %952 = vadd.xlane.f32.xlu0 %v951
      %v953 = vpop.xlane.xlu0 %952
      %v954 = vsel %vm458, %v916, 0.0
      %955 = vadd.xlane.f32.xlu0 %v954
      %v956 = vpop.xlane.xlu0 %955
      %v957 = vsel %vm458, %v917, 0.0
      %958 = vadd.xlane.f32.xlu0 %v957
      %v959 = vpop.xlane.xlu0 %958
      %v960 = vsel %vm458, %v918, 0.0
      %961 = vadd.xlane.f32.xlu0 %v960
      %v962 = vpop.xlane.xlu0 %961
      %v963 = vsel %vm458, %v919, 0.0
      %964 = vadd.xlane.f32.xlu0 %v963
      %v965 = vpop.xlane.xlu0 %964
      %v966 = vsel %vm458, %v920, 0.0
      %967 = vadd.xlane.f32.xlu0 %v966
      %v968 = vpop.xlane.xlu0 %967
      %v969 = vsel %vm458, %v921, 0.0
      %970 = vadd.xlane.f32.xlu0 %v969
      %v971 = vpop.xlane.xlu0 %970
      %v972 = vrcp.pop 32.0
      %v973 = vmul.f32 32.0, %v972
      %v974 = vsub.f32 1.0, %v973
      %v975 = vmul.f32 %v972, %v974
      %v976 = vadd.f32 %v972, %v975
      %vm977 = vweird.f32 %v972
      %v978 = vsel %vm977, %v972, %v976
      %v979 = vmul.f32 %v926, %v978
      %v980 = vmul.f32 %v929, %v978
      %v981 = vmul.f32 %v932, %v978
      %v982 = vmul.f32 %v935, %v978
      %v983 = vmul.f32 %v938, %v978
      %v984 = vmul.f32 %v941, %v978
      %v985 = vmul.f32 %v944, %v978
      %v986 = vmul.f32 %v947, %v978
      %v987 = vmul.f32 %v950, %v978
      %v988 = vmul.f32 %v953, %v978
      %v989 = vmul.f32 %v956, %v978
      %v990 = vmul.f32 %v959, %v978
      %v991 = vmul.f32 %v962, %v978
      %v992 = vmul.f32 %v965, %v978
      %v993 = vmul.f32 %v968, %v978
      %v994 = vmul.f32 %v971, %v978
      %v995 = vmul.f32 %v906, %v906
      %v996 = vmul.f32 %v907, %v907
      %v997 = vmul.f32 %v908, %v908
      %v998 = vmul.f32 %v909, %v909
      %v999 = vmul.f32 %v910, %v910
      %v1000 = vmul.f32 %v911, %v911
      %v1001 = vmul.f32 %v912, %v912
      %v1002 = vmul.f32 %v913, %v913
      %v1003 = vmul.f32 %v914, %v914
      %v1004 = vmul.f32 %v915, %v915
      %v1005 = vmul.f32 %v916, %v916
      %v1006 = vmul.f32 %v917, %v917
      %v1007 = vmul.f32 %v918, %v918
      %v1008 = vmul.f32 %v919, %v919
      %v1009 = vmul.f32 %v920, %v920
      %v1010 = vmul.f32 %v921, %v921
      %v1011 = vsel %vm458, %v995, 0.0
      %1012 = vadd.xlane.f32.xlu0 %v1011
      %v1013 = vpop.xlane.xlu0 %1012
      %v1014 = vsel %vm458, %v996, 0.0
      %1015 = vadd.xlane.f32.xlu0 %v1014
      %v1016 = vpop.xlane.xlu0 %1015
      %v1017 = vsel %vm458, %v997, 0.0
      %1018 = vadd.xlane.f32.xlu0 %v1017
      %v1019 = vpop.xlane.xlu0 %1018
      %v1020 = vsel %vm458, %v998, 0.0
      %1021 = vadd.xlane.f32.xlu0 %v1020
      %v1022 = vpop.xlane.xlu0 %1021
      %v1023 = vsel %vm458, %v999, 0.0
      %1024 = vadd.xlane.f32.xlu0 %v1023
      %v1025 = vpop.xlane.xlu0 %1024
      %v1026 = vsel %vm458, %v1000, 0.0
      %1027 = vadd.xlane.f32.xlu0 %v1026
      %v1028 = vpop.xlane.xlu0 %1027
      %v1029 = vsel %vm458, %v1001, 0.0
      %1030 = vadd.xlane.f32.xlu0 %v1029
      %v1031 = vpop.xlane.xlu0 %1030
      %v1032 = vsel %vm458, %v1002, 0.0
      %1033 = vadd.xlane.f32.xlu0 %v1032
      %v1034 = vpop.xlane.xlu0 %1033
      %v1035 = vsel %vm458, %v1003, 0.0
      %1036 = vadd.xlane.f32.xlu0 %v1035
      %v1037 = vpop.xlane.xlu0 %1036
      %v1038 = vsel %vm458, %v1004, 0.0
      %1039 = vadd.xlane.f32.xlu0 %v1038
      %v1040 = vpop.xlane.xlu0 %1039
      %v1041 = vsel %vm458, %v1005, 0.0
      %1042 = vadd.xlane.f32.xlu0 %v1041
      %v1043 = vpop.xlane.xlu0 %1042
      %v1044 = vsel %vm458, %v1006, 0.0
      %1045 = vadd.xlane.f32.xlu0 %v1044
      %v1046 = vpop.xlane.xlu0 %1045
      %v1047 = vsel %vm458, %v1007, 0.0
      %1048 = vadd.xlane.f32.xlu0 %v1047
      %v1049 = vpop.xlane.xlu0 %1048
      %v1050 = vsel %vm458, %v1008, 0.0
      %1051 = vadd.xlane.f32.xlu0 %v1050
      %v1052 = vpop.xlane.xlu0 %1051
      %v1053 = vsel %vm458, %v1009, 0.0
      %1054 = vadd.xlane.f32.xlu0 %v1053
      %v1055 = vpop.xlane.xlu0 %1054
      %v1056 = vsel %vm458, %v1010, 0.0
      %1057 = vadd.xlane.f32.xlu0 %v1056
      %v1058 = vpop.xlane.xlu0 %1057
      %v1059 = vmul.f32 %v1013, %v978
      %v1060 = vmul.f32 %v1016, %v978
      %v1061 = vmul.f32 %v1019, %v978
      %v1062 = vmul.f32 %v1022, %v978
      %v1063 = vmul.f32 %v1025, %v978
      %v1064 = vmul.f32 %v1028, %v978
      %v1065 = vmul.f32 %v1031, %v978
      %v1066 = vmul.f32 %v1034, %v978
      %v1067 = vmul.f32 %v1037, %v978
      %v1068 = vmul.f32 %v1040, %v978
      %v1069 = vmul.f32 %v1043, %v978
      %v1070 = vmul.f32 %v1046, %v978
      %v1071 = vmul.f32 %v1049, %v978
      %v1072 = vmul.f32 %v1052, %v978
      %v1073 = vmul.f32 %v1055, %v978
      %v1074 = vmul.f32 %v1058, %v978
      %v1075 = vmul.f32 %v979, %v979
      %v1076 = vmul.f32 %v980, %v980
      %v1077 = vmul.f32 %v981, %v981
      %v1078 = vmul.f32 %v982, %v982
      %v1079 = vmul.f32 %v983, %v983
      %v1080 = vmul.f32 %v984, %v984
      %v1081 = vmul.f32 %v985, %v985
      %v1082 = vmul.f32 %v986, %v986
      %v1083 = vmul.f32 %v987, %v987
      %v1084 = vmul.f32 %v988, %v988
      %v1085 = vmul.f32 %v989, %v989
      %v1086 = vmul.f32 %v990, %v990
      %v1087 = vmul.f32 %v991, %v991
      %v1088 = vmul.f32 %v992, %v992
      %v1089 = vmul.f32 %v993, %v993
      %v1090 = vmul.f32 %v994, %v994
      %v1091 = vsub.f32 %v1059, %v1075
      %v1092 = vsub.f32 %v1060, %v1076
      %v1093 = vsub.f32 %v1061, %v1077
      %v1094 = vsub.f32 %v1062, %v1078
      %v1095 = vsub.f32 %v1063, %v1079
      %v1096 = vsub.f32 %v1064, %v1080
      %v1097 = vsub.f32 %v1065, %v1081
      %v1098 = vsub.f32 %v1066, %v1082
      %v1099 = vsub.f32 %v1067, %v1083
      %v1100 = vsub.f32 %v1068, %v1084
      %v1101 = vsub.f32 %v1069, %v1085
      %v1102 = vsub.f32 %v1070, %v1086
      %v1103 = vsub.f32 %v1071, %v1087
      %v1104 = vsub.f32 %v1072, %v1088
      %v1105 = vsub.f32 %v1073, %v1089
      %v1106 = vsub.f32 %v1074, %v1090
      %v1107 = vadd.f32 %v1091, 1e-05
      %v1108 = vadd.f32 %v1092, 1e-05
      %v1109 = vadd.f32 %v1093, 1e-05
      %v1110 = vadd.f32 %v1094, 1e-05
      %v1111 = vadd.f32 %v1095, 1e-05
      %v1112 = vadd.f32 %v1096, 1e-05
      %v1113 = vadd.f32 %v1097, 1e-05
      %v1114 = vadd.f32 %v1098, 1e-05
      %v1115 = vadd.f32 %v1099, 1e-05
      %v1116 = vadd.f32 %v1100, 1e-05
      %v1117 = vadd.f32 %v1101, 1e-05
      %v1118 = vadd.f32 %v1102, 1e-05
      %v1119 = vadd.f32 %v1103, 1e-05
      %v1120 = vadd.f32 %v1104, 1e-05
      %v1121 = vadd.f32 %v1105, 1e-05
      %v1122 = vadd.f32 %v1106, 1e-05
      %v1123 = vrsqrt.pop %v1107
      %v1124 = vmul.f32 %v1123, %v1107
      %v1125 = vmul.f32 %v1124, %v1123
      %v1126 = vmul.f32 0.5, %v1125
      %v1127 = vsub.f32 1.5, %v1126
      %v1128 = vmul.f32 %v1123, %v1127
      %vm1129 = vweird.f32 %v1107
      %vm1130 = vweird.f32 %v1123
      %vm1131 = vmor %vm1129, %vm1130
      %v1132 = vsel %vm1131, %v1123, %v1128
      %v1133 = vrsqrt.pop %v1108
      %v1134 = vmul.f32 %v1133, %v1108
      %v1135 = vmul.f32 %v1134, %v1133
      %v1136 = vmul.f32 0.5, %v1135
      %v1137 = vsub.f32 1.5, %v1136
      %v1138 = vmul.f32 %v1133, %v1137
      %vm1139 = vweird.f32 %v1108
      %vm1140 = vweird.f32 %v1133
      %vm1141 = vmor %vm1139, %vm1140
      %v1142 = vsel %vm1141, %v1133, %v1138
      %v1143 = vrsqrt.pop %v1109
      %v1144 = vmul.f32 %v1143, %v1109
      %v1145 = vmul.f32 %v1144, %v1143
      %v1146 = vmul.f32 0.5, %v1145
      %v1147 = vsub.f32 1.5, %v1146
      %v1148 = vmul.f32 %v1143, %v1147
      %vm1149 = vweird.f32 %v1109
      %vm1150 = vweird.f32 %v1143
      %vm1151 = vmor %vm1149, %vm1150
      %v1152 = vsel %vm1151, %v1143, %v1148
      %v1153 = vrsqrt.pop %v1110
      %v1154 = vmul.f32 %v1153, %v1110
      %v1155 = vmul.f32 %v1154, %v1153
      %v1156 = vmul.f32 0.5, %v1155
      %v1157 = vsub.f32 1.5, %v1156
      %v1158 = vmul.f32 %v1153, %v1157
      %vm1159 = vweird.f32 %v1110
      %vm1160 = vweird.f32 %v1153
      %vm1161 = vmor %vm1159, %vm1160
      %v1162 = vsel %vm1161, %v1153, %v1158
      %v1163 = vrsqrt.pop %v1111
      %v1164 = vmul.f32 %v1163, %v1111
      %v1165 = vmul.f32 %v1164, %v1163
      %v1166 = vmul.f32 0.5, %v1165
      %v1167 = vsub.f32 1.5, %v1166
      %v1168 = vmul.f32 %v1163, %v1167
      %vm1169 = vweird.f32 %v1111
      %vm1170 = vweird.f32 %v1163
      %vm1171 = vmor %vm1169, %vm1170
      %v1172 = vsel %vm1171, %v1163, %v1168
      %v1173 = vrsqrt.pop %v1112
      %v1174 = vmul.f32 %v1173, %v1112
      %v1175 = vmul.f32 %v1174, %v1173
      %v1176 = vmul.f32 0.5, %v1175
      %v1177 = vsub.f32 1.5, %v1176
      %v1178 = vmul.f32 %v1173, %v1177
      %vm1179 = vweird.f32 %v1112
      %vm1180 = vweird.f32 %v1173
      %vm1181 = vmor %vm1179, %vm1180
      %v1182 = vsel %vm1181, %v1173, %v1178
      %v1183 = vrsqrt.pop %v1113
      %v1184 = vmul.f32 %v1183, %v1113
      %v1185 = vmul.f32 %v1184, %v1183
      %v1186 = vmul.f32 0.5, %v1185
      %v1187 = vsub.f32 1.5, %v1186
      %v1188 = vmul.f32 %v1183, %v1187
      %vm1189 = vweird.f32 %v1113
      %vm1190 = vweird.f32 %v1183
      %vm1191 = vmor %vm1189, %vm1190
      %v1192 = vsel %vm1191, %v1183, %v1188
      %v1193 = vrsqrt.pop %v1114
      %v1194 = vmul.f32 %v1193, %v1114
      %v1195 = vmul.f32 %v1194, %v1193
      %v1196 = vmul.f32 0.5, %v1195
      %v1197 = vsub.f32 1.5, %v1196
      %v1198 = vmul.f32 %v1193, %v1197
      %vm1199 = vweird.f32 %v1114
      %vm1200 = vweird.f32 %v1193
      %vm1201 = vmor %vm1199, %vm1200
      %v1202 = vsel %vm1201, %v1193, %v1198
      %v1203 = vrsqrt.pop %v1115
      %v1204 = vmul.f32 %v1203, %v1115
      %v1205 = vmul.f32 %v1204, %v1203
      %v1206 = vmul.f32 0.5, %v1205
      %v1207 = vsub.f32 1.5, %v1206
      %v1208 = vmul.f32 %v1203, %v1207
      %vm1209 = vweird.f32 %v1115
      %vm1210 = vweird.f32 %v1203
      %vm1211 = vmor %vm1209, %vm1210
      %v1212 = vsel %vm1211, %v1203, %v1208
      %v1213 = vrsqrt.pop %v1116
      %v1214 = vmul.f32 %v1213, %v1116
      %v1215 = vmul.f32 %v1214, %v1213
      %v1216 = vmul.f32 0.5, %v1215
      %v1217 = vsub.f32 1.5, %v1216
      %v1218 = vmul.f32 %v1213, %v1217
      %vm1219 = vweird.f32 %v1116
      %vm1220 = vweird.f32 %v1213
      %vm1221 = vmor %vm1219, %vm1220
      %v1222 = vsel %vm1221, %v1213, %v1218
      %v1223 = vrsqrt.pop %v1117
      %v1224 = vmul.f32 %v1223, %v1117
      %v1225 = vmul.f32 %v1224, %v1223
      %v1226 = vmul.f32 0.5, %v1225
      %v1227 = vsub.f32 1.5, %v1226
      %v1228 = vmul.f32 %v1223, %v1227
      %vm1229 = vweird.f32 %v1117
      %vm1230 = vweird.f32 %v1223
      %vm1231 = vmor %vm1229, %vm1230
      %v1232 = vsel %vm1231, %v1223, %v1228
      %v1233 = vrsqrt.pop %v1118
      %v1234 = vmul.f32 %v1233, %v1118
      %v1235 = vmul.f32 %v1234, %v1233
      %v1236 = vmul.f32 0.5, %v1235
      %v1237 = vsub.f32 1.5, %v1236
      %v1238 = vmul.f32 %v1233, %v1237
      %vm1239 = vweird.f32 %v1118
      %vm1240 = vweird.f32 %v1233
      %vm1241 = vmor %vm1239, %vm1240
      %v1242 = vsel %vm1241, %v1233, %v1238
      %v1243 = vrsqrt.pop %v1119
      %v1244 = vmul.f32 %v1243, %v1119
      %v1245 = vmul.f32 %v1244, %v1243
      %v1246 = vmul.f32 0.5, %v1245
      %v1247 = vsub.f32 1.5, %v1246
      %v1248 = vmul.f32 %v1243, %v1247
      %vm1249 = vweird.f32 %v1119
      %vm1250 = vweird.f32 %v1243
      %vm1251 = vmor %vm1249, %vm1250
      %v1252 = vsel %vm1251, %v1243, %v1248
      %v1253 = vrsqrt.pop %v1120
      %v1254 = vmul.f32 %v1253, %v1120
      %v1255 = vmul.f32 %v1254, %v1253
      %v1256 = vmul.f32 0.5, %v1255
      %v1257 = vsub.f32 1.5, %v1256
      %v1258 = vmul.f32 %v1253, %v1257
      %vm1259 = vweird.f32 %v1120
      %vm1260 = vweird.f32 %v1253
      %vm1261 = vmor %vm1259, %vm1260
      %v1262 = vsel %vm1261, %v1253, %v1258
      %v1263 = vrsqrt.pop %v1121
      %v1264 = vmul.f32 %v1263, %v1121
      %v1265 = vmul.f32 %v1264, %v1263
      %v1266 = vmul.f32 0.5, %v1265
      %v1267 = vsub.f32 1.5, %v1266
      %v1268 = vmul.f32 %v1263, %v1267
      %vm1269 = vweird.f32 %v1121
      %vm1270 = vweird.f32 %v1263
      %vm1271 = vmor %vm1269, %vm1270
      %v1272 = vsel %vm1271, %v1263, %v1268
      %v1273 = vrsqrt.pop %v1122
      %v1274 = vmul.f32 %v1273, %v1122
      %v1275 = vmul.f32 %v1274, %v1273
      %v1276 = vmul.f32 0.5, %v1275
      %v1277 = vsub.f32 1.5, %v1276
      %v1278 = vmul.f32 %v1273, %v1277
      %vm1279 = vweird.f32 %v1122
      %vm1280 = vweird.f32 %v1273
      %vm1281 = vmor %vm1279, %vm1280
      %v1282 = vsel %vm1281, %v1273, %v1278
      %v1283 = vsub.f32 %v906, %v979
      %v1284 = vsub.f32 %v907, %v980
      %v1285 = vsub.f32 %v908, %v981
      %v1286 = vsub.f32 %v909, %v982
      %v1287 = vsub.f32 %v910, %v983
      %v1288 = vsub.f32 %v911, %v984
      %v1289 = vsub.f32 %v912, %v985
      %v1290 = vsub.f32 %v913, %v986
      %v1291 = vsub.f32 %v914, %v987
      %v1292 = vsub.f32 %v915, %v988
      %v1293 = vsub.f32 %v916, %v989
      %v1294 = vsub.f32 %v917, %v990
      %v1295 = vsub.f32 %v918, %v991
      %v1296 = vsub.f32 %v919, %v992
      %v1297 = vsub.f32 %v920, %v993
      %v1298 = vsub.f32 %v921, %v994
      %v1299 = vmul.f32 %v1283, %v1132
      %v1300 = vmul.f32 %v1284, %v1142
      %v1301 = vmul.f32 %v1285, %v1152
      %v1302 = vmul.f32 %v1286, %v1162
      %v1303 = vmul.f32 %v1287, %v1172
      %v1304 = vmul.f32 %v1288, %v1182
      %v1305 = vmul.f32 %v1289, %v1192
      %v1306 = vmul.f32 %v1290, %v1202
      %v1307 = vmul.f32 %v1291, %v1212
      %v1308 = vmul.f32 %v1292, %v1222
      %v1309 = vmul.f32 %v1293, %v1232
      %v1310 = vmul.f32 %v1294, %v1242
      %v1311 = vmul.f32 %v1295, %v1252
      %v1312 = vmul.f32 %v1296, %v1262
      %v1313 = vmul.f32 %v1297, %v1272
      %v1314 = vmul.f32 %v1298, %v1282
      %v1316 = vperm.slane %v922, 0
      %v1318 = vmul.f32 %v1299, %v1316
      %v1319 = vmul.f32 %v1300, %v1316
      %v1320 = vmul.f32 %v1301, %v1316
      %v1321 = vmul.f32 %v1302, %v1316
      %v1322 = vmul.f32 %v1303, %v1316
      %v1323 = vmul.f32 %v1304, %v1316
      %v1324 = vmul.f32 %v1305, %v1316
      %v1325 = vmul.f32 %v1306, %v1316
      %v1326 = vmul.f32 %v1307, %v1316
      %v1327 = vmul.f32 %v1308, %v1316
      %v1328 = vmul.f32 %v1309, %v1316
      %v1329 = vmul.f32 %v1310, %v1316
      %v1330 = vmul.f32 %v1311, %v1316
      %v1331 = vmul.f32 %v1312, %v1316
      %v1332 = vmul.f32 %v1313, %v1316
      %v1333 = vmul.f32 %v1314, %v1316
      %v1335 = vperm.slane %v923, 0
      %v1337 = vadd.f32 %v1318, %v1335
      %v1338 = vadd.f32 %v1319, %v1335
      %v1339 = vadd.f32 %v1320, %v1335
      %v1340 = vadd.f32 %v1321, %v1335
      %v1341 = vadd.f32 %v1322, %v1335
      %v1342 = vadd.f32 %v1323, %v1335
      %v1343 = vadd.f32 %v1324, %v1335
      %v1344 = vadd.f32 %v1325, %v1335
      %v1345 = vadd.f32 %v1326, %v1335
      %v1346 = vadd.f32 %v1327, %v1335
      %v1347 = vadd.f32 %v1328, %v1335
      %v1348 = vadd.f32 %v1329, %v1335
      %v1349 = vadd.f32 %v1330, %v1335
      %v1350 = vadd.f32 %v1331, %v1335
      %v1351 = vadd.f32 %v1332, %v1335
      %v1352 = vadd.f32 %v1333, %v1335
      %v1353 = vpack.c.bf16 %v1338, %v1337
      %v1354 = vpack.c.bf16 %v1340, %v1339
      %v1355 = vpack.c.bf16 %v1342, %v1341
      %v1356 = vpack.c.bf16 %v1344, %v1343
      %v1357 = vpack.c.bf16 %v1346, %v1345
      %v1358 = vpack.c.bf16 %v1348, %v1347
      %v1359 = vpack.c.bf16 %v1350, %v1349
      %v1360 = vpack.c.bf16 %v1352, %v1351
      %v1361 = vld [vmem:[%s6] sm:$0xf]
      %v1362 = vld [vmem:[%s6 + $0x4] sm:$0xf]
      %v1363 = vld [vmem:[%s6 + $0x8] sm:$0xf]
      %v1364 = vld [vmem:[%s6 + $0xc] sm:$0xf]
      %v1365 = vld [vmem:[%s7] sm:$0x1]
      %v1367 = vperm.slane %v1365, 0
      %v1373 = vunpack.c.l.b16 %v1361
      %v1374 = vunpack.c.l.b16 %v1362
      %v1375 = vunpack.c.l.b16 %v1363
      %v1376 = vunpack.c.l.b16 %v1364
      %v1377 = vpack.c.b16 %v1374, %v1373
      %v1378 = vpack.c.b16 %v1376, %v1375
      %v1382 = vsel %vm458, %v1353, 0
      %v1385 = vsel %vm458, %v1354, 0
      %v1388 = vsel %vm458, %v1355, 0
      %v1391 = vsel %vm458, %v1356, 0
      %v1394 = vsel %vm458, %v1357, 0
      %v1397 = vsel %vm458, %v1358, 0
      %v1400 = vsel %vm458, %v1359, 0
      %v1403 = vsel %vm458, %v1360, 0
      %1405 = vmatpush.bf16.msra.mxu0 0
      %1406 = vmatpush.bf16.msra.mxu0 0
      %1407 = vmatpush.bf16.msra.mxu0 0
      %1408 = vmatpush.bf16.msra.mxu0 0
      %1409 = vmatpush.bf16.msra.mxu0 0
      %1410 = vmatpush.bf16.msra.mxu0 0
      %1411 = vmatpush.bf16.msra.mxu0 %v1378
      %1412 = vmatpush.bf16.msra.mxu0 %v1377
      %1413 = vmatmul.bf16.gmra.mxu0 %v1382
      %v1414 = vpop.f32.mrf.mxu0
      %v1415 = vadd.f32 %v1367, %v1414
      %v1416 = vpop.f32.mrf.mxu0
      %v1417 = vadd.f32 %v1367, %v1416
      %1418 = vmatmul.bf16.gmra.mxu0 %v1385
      %v1419 = vpop.f32.mrf.mxu0
      %v1420 = vadd.f32 %v1367, %v1419
      %v1421 = vpop.f32.mrf.mxu0
      %v1422 = vadd.f32 %v1367, %v1421
      %1423 = vmatmul.bf16.gmra.mxu0 %v1388
      %v1424 = vpop.f32.mrf.mxu0
      %v1425 = vadd.f32 %v1367, %v1424
      %v1426 = vpop.f32.mrf.mxu0
      %v1427 = vadd.f32 %v1367, %v1426
      %1428 = vmatmul.bf16.gmra.mxu0 %v1391
      %v1429 = vpop.f32.mrf.mxu0
      %v1430 = vadd.f32 %v1367, %v1429
      %v1431 = vpop.f32.mrf.mxu0
      %v1432 = vadd.f32 %v1367, %v1431
      %1433 = vmatmul.bf16.gmra.mxu0 %v1394
      %v1434 = vpop.f32.mrf.mxu0
      %v1435 = vadd.f32 %v1367, %v1434
      %v1436 = vpop.f32.mrf.mxu0
      %v1437 = vadd.f32 %v1367, %v1436
      %1438 = vmatmul.bf16.gmra.mxu0 %v1397
      %v1439 = vpop.f32.mrf.mxu0
      %v1440 = vadd.f32 %v1367, %v1439
      %v1441 = vpop.f32.mrf.mxu0
      %v1442 = vadd.f32 %v1367, %v1441
      %1443 = vmatmul.bf16.gmra.mxu0 %v1400
      %v1444 = vpop.f32.mrf.mxu0
      %v1445 = vadd.f32 %v1367, %v1444
      %v1446 = vpop.f32.mrf.mxu0
      %v1447 = vadd.f32 %v1367, %v1446
      %1448 = vmatmul.bf16.gmra.mxu0 %v1403
      %v1449 = vpop.f32.mrf.mxu0
      %v1450 = vadd.f32 %v1367, %v1449
      %v1451 = vpop.f32.mrf.mxu0
      %v1452 = vadd.f32 %v1367, %v1451
      %1453 = vdwg.mxu0
      %v1454 = vmax.f32 %v1415, 0.0
      %v1455 = vmax.f32 %v1417, 0.0
      %v1456 = vmax.f32 %v1420, 0.0
      %v1457 = vmax.f32 %v1422, 0.0
      %v1458 = vmax.f32 %v1425, 0.0
      %v1459 = vmax.f32 %v1427, 0.0
      %v1460 = vmax.f32 %v1430, 0.0
      %v1461 = vmax.f32 %v1432, 0.0
      %v1462 = vmax.f32 %v1435, 0.0
      %v1463 = vmax.f32 %v1437, 0.0
      %v1464 = vmax.f32 %v1440, 0.0
      %v1465 = vmax.f32 %v1442, 0.0
      %v1466 = vmax.f32 %v1445, 0.0
      %v1467 = vmax.f32 %v1447, 0.0
      %v1468 = vmax.f32 %v1450, 0.0
      %v1469 = vmax.f32 %v1452, 0.0
      %v1470 = vpack.c.bf16 %v1455, %v1454
      %v1471 = vpack.c.bf16 %v1457, %v1456
      %v1472 = vpack.c.bf16 %v1459, %v1458
      %v1473 = vpack.c.bf16 %v1461, %v1460
      %v1474 = vpack.c.bf16 %v1463, %v1462
      %v1475 = vpack.c.bf16 %v1465, %v1464
      %v1476 = vpack.c.bf16 %v1467, %v1466
      %v1477 = vpack.c.bf16 %v1469, %v1468
      %v1478 = vld [vmem:[%s8] sm:$0xf]
      %v1479 = vld [vmem:[%s8 + $0x4] sm:$0xf]
      %v1480 = vld [vmem:[%s8 + $0x8] sm:$0xf]
      %v1481 = vld [vmem:[%s8 + $0xc] sm:$0xf]
      %v1482 = vld [vmem:[%s8 + $0x10] sm:$0xf]
      %v1483 = vld [vmem:[%s8 + $0x14] sm:$0xf]
      %v1484 = vld [vmem:[%s8 + $0x18] sm:$0xf]
      %v1485 = vld [vmem:[%s8 + $0x1c] sm:$0xf]
      %v1486 = vld [vmem:[%s8 + $0x20] sm:$0xf]
      %v1487 = vld [vmem:[%s8 + $0x24] sm:$0xf]
      %v1488 = vld [vmem:[%s8 + $0x28] sm:$0xf]
      %v1489 = vld [vmem:[%s8 + $0x2c] sm:$0xf]
      %v1490 = vld [vmem:[%s8 + $0x30] sm:$0xf]
      %v1491 = vld [vmem:[%s8 + $0x34] sm:$0xf]
      %v1492 = vld [vmem:[%s8 + $0x38] sm:$0xf]
      %v1493 = vld [vmem:[%s8 + $0x3c] sm:$0xf]
      %v1494 = vld [vmem:[%s9] sm:$0x1]
      %v1496 = vperm.slane %v1494, 0
      %v1514 = vunpack.c.l.b16 %v1478
      %v1515 = vunpack.c.l.b16 %v1479
      %v1516 = vunpack.c.l.b16 %v1480
      %v1517 = vunpack.c.l.b16 %v1481
      %v1518 = vunpack.c.l.b16 %v1482
      %v1519 = vunpack.c.l.b16 %v1483
      %v1520 = vunpack.c.l.b16 %v1484
      %v1521 = vunpack.c.l.b16 %v1485
      %v1522 = vunpack.c.l.b16 %v1486
      %v1523 = vunpack.c.l.b16 %v1487
      %v1524 = vunpack.c.l.b16 %v1488
      %v1525 = vunpack.c.l.b16 %v1489
      %v1526 = vunpack.c.l.b16 %v1490
      %v1527 = vunpack.c.l.b16 %v1491
      %v1528 = vunpack.c.l.b16 %v1492
      %v1529 = vunpack.c.l.b16 %v1493
      %v1530 = vpack.c.b16 %v1515, %v1514
      %v1531 = vpack.c.b16 %v1517, %v1516
      %v1532 = vpack.c.b16 %v1519, %v1518
      %v1533 = vpack.c.b16 %v1521, %v1520
      %v1534 = vpack.c.b16 %v1523, %v1522
      %v1535 = vpack.c.b16 %v1525, %v1524
      %v1536 = vpack.c.b16 %v1527, %v1526
      %v1537 = vpack.c.b16 %v1529, %v1528
      %1546 = vmatpush.bf16.msra.mxu0 %v1537
      %1547 = vmatpush.bf16.msra.mxu0 %v1536
      %1548 = vmatpush.bf16.msra.mxu0 %v1535
      %1549 = vmatpush.bf16.msra.mxu0 %v1534
      %1550 = vmatpush.bf16.msra.mxu0 %v1533
      %1551 = vmatpush.bf16.msra.mxu0 %v1532
      %1552 = vmatpush.bf16.msra.mxu0 %v1531
      %1553 = vmatpush.bf16.msra.mxu0 %v1530
      %1554 = vmatmul.bf16.gmra.mxu0 %v1470
      %v1555 = vpop.f32.mrf.mxu0
      %v1556 = vadd.f32 %v1496, %v1555
      %v1557 = vpop.f32.mrf.mxu0
      %v1558 = vadd.f32 %v1496, %v1557
      %1559 = vmatmul.bf16.gmra.mxu0 %v1471
      %v1560 = vpop.f32.mrf.mxu0
      %v1561 = vadd.f32 %v1496, %v1560
      %v1562 = vpop.f32.mrf.mxu0
      %v1563 = vadd.f32 %v1496, %v1562
      %1564 = vmatmul.bf16.gmra.mxu0 %v1472
      %v1565 = vpop.f32.mrf.mxu0
      %v1566 = vadd.f32 %v1496, %v1565
      %v1567 = vpop.f32.mrf.mxu0
      %v1568 = vadd.f32 %v1496, %v1567
      %1569 = vmatmul.bf16.gmra.mxu0 %v1473
      %v1570 = vpop.f32.mrf.mxu0
      %v1571 = vadd.f32 %v1496, %v1570
      %v1572 = vpop.f32.mrf.mxu0
      %v1573 = vadd.f32 %v1496, %v1572
      %1574 = vmatmul.bf16.gmra.mxu0 %v1474
      %v1575 = vpop.f32.mrf.mxu0
      %v1576 = vadd.f32 %v1496, %v1575
      %v1577 = vpop.f32.mrf.mxu0
      %v1578 = vadd.f32 %v1496, %v1577
      %1579 = vmatmul.bf16.gmra.mxu0 %v1475
      %v1580 = vpop.f32.mrf.mxu0
      %v1581 = vadd.f32 %v1496, %v1580
      %v1582 = vpop.f32.mrf.mxu0
      %v1583 = vadd.f32 %v1496, %v1582
      %1584 = vmatmul.bf16.gmra.mxu0 %v1476
      %v1585 = vpop.f32.mrf.mxu0
      %v1586 = vadd.f32 %v1496, %v1585
      %v1587 = vpop.f32.mrf.mxu0
      %v1588 = vadd.f32 %v1496, %v1587
      %1589 = vmatmul.bf16.gmra.mxu0 %v1477
      %v1590 = vpop.f32.mrf.mxu0
      %v1591 = vadd.f32 %v1496, %v1590
      %v1592 = vpop.f32.mrf.mxu0
      %v1593 = vadd.f32 %v1496, %v1592
      %1594 = vdwg.mxu0
      %v1595 = vadd.f32 %v1337, %v1556
      %v1596 = vadd.f32 %v1338, %v1558
      %v1597 = vadd.f32 %v1339, %v1561
      %v1598 = vadd.f32 %v1340, %v1563
      %v1599 = vadd.f32 %v1341, %v1566
      %v1600 = vadd.f32 %v1342, %v1568
      %v1601 = vadd.f32 %v1343, %v1571
      %v1602 = vadd.f32 %v1344, %v1573
      %v1603 = vadd.f32 %v1345, %v1576
      %v1604 = vadd.f32 %v1346, %v1578
      %v1605 = vadd.f32 %v1347, %v1581
      %v1606 = vadd.f32 %v1348, %v1583
      %v1607 = vadd.f32 %v1349, %v1586
      %v1608 = vadd.f32 %v1350, %v1588
      %v1609 = vadd.f32 %v1351, %v1591
      %v1610 = vadd.f32 %v1352, %v1593
      %v1611 = vld [vmem:[%s10] sm:$0x1]
      %v1612 = vld [vmem:[%s11] sm:$0x1]
      %v1613 = vsel %vm458, %v1595, 0.0
      %1614 = vadd.xlane.f32.xlu0 %v1613
      %v1615 = vpop.xlane.xlu0 %1614
      %v1616 = vsel %vm458, %v1596, 0.0
      %1617 = vadd.xlane.f32.xlu0 %v1616
      %v1618 = vpop.xlane.xlu0 %1617
      %v1619 = vsel %vm458, %v1597, 0.0
      %1620 = vadd.xlane.f32.xlu0 %v1619
      %v1621 = vpop.xlane.xlu0 %1620
      %v1622 = vsel %vm458, %v1598, 0.0
      %1623 = vadd.xlane.f32.xlu0 %v1622
      %v1624 = vpop.xlane.xlu0 %1623
      %v1625 = vsel %vm458, %v1599, 0.0
      %1626 = vadd.xlane.f32.xlu0 %v1625
      %v1627 = vpop.xlane.xlu0 %1626
      %v1628 = vsel %vm458, %v1600, 0.0
      %1629 = vadd.xlane.f32.xlu0 %v1628
      %v1630 = vpop.xlane.xlu0 %1629
      %v1631 = vsel %vm458, %v1601, 0.0
      %1632 = vadd.xlane.f32.xlu0 %v1631
      %v1633 = vpop.xlane.xlu0 %1632
      %v1634 = vsel %vm458, %v1602, 0.0
      %1635 = vadd.xlane.f32.xlu0 %v1634
      %v1636 = vpop.xlane.xlu0 %1635
      %v1637 = vsel %vm458, %v1603, 0.0
      %1638 = vadd.xlane.f32.xlu0 %v1637
      %v1639 = vpop.xlane.xlu0 %1638
      %v1640 = vsel %vm458, %v1604, 0.0
      %1641 = vadd.xlane.f32.xlu0 %v1640
      %v1642 = vpop.xlane.xlu0 %1641
      %v1643 = vsel %vm458, %v1605, 0.0
      %1644 = vadd.xlane.f32.xlu0 %v1643
      %v1645 = vpop.xlane.xlu0 %1644
      %v1646 = vsel %vm458, %v1606, 0.0
      %1647 = vadd.xlane.f32.xlu0 %v1646
      %v1648 = vpop.xlane.xlu0 %1647
      %v1649 = vsel %vm458, %v1607, 0.0
      %1650 = vadd.xlane.f32.xlu0 %v1649
      %v1651 = vpop.xlane.xlu0 %1650
      %v1652 = vsel %vm458, %v1608, 0.0
      %1653 = vadd.xlane.f32.xlu0 %v1652
      %v1654 = vpop.xlane.xlu0 %1653
      %v1655 = vsel %vm458, %v1609, 0.0
      %1656 = vadd.xlane.f32.xlu0 %v1655
      %v1657 = vpop.xlane.xlu0 %1656
      %v1658 = vsel %vm458, %v1610, 0.0
      %1659 = vadd.xlane.f32.xlu0 %v1658
      %v1660 = vpop.xlane.xlu0 %1659
      %v1661 = vmul.f32 %v1615, %v978
      %v1662 = vmul.f32 %v1618, %v978
      %v1663 = vmul.f32 %v1621, %v978
      %v1664 = vmul.f32 %v1624, %v978
      %v1665 = vmul.f32 %v1627, %v978
      %v1666 = vmul.f32 %v1630, %v978
      %v1667 = vmul.f32 %v1633, %v978
      %v1668 = vmul.f32 %v1636, %v978
      %v1669 = vmul.f32 %v1639, %v978
      %v1670 = vmul.f32 %v1642, %v978
      %v1671 = vmul.f32 %v1645, %v978
      %v1672 = vmul.f32 %v1648, %v978
      %v1673 = vmul.f32 %v1651, %v978
      %v1674 = vmul.f32 %v1654, %v978
      %v1675 = vmul.f32 %v1657, %v978
      %v1676 = vmul.f32 %v1660, %v978
      %v1677 = vmul.f32 %v1595, %v1595
      %v1678 = vmul.f32 %v1596, %v1596
      %v1679 = vmul.f32 %v1597, %v1597
      %v1680 = vmul.f32 %v1598, %v1598
      %v1681 = vmul.f32 %v1599, %v1599
      %v1682 = vmul.f32 %v1600, %v1600
      %v1683 = vmul.f32 %v1601, %v1601
      %v1684 = vmul.f32 %v1602, %v1602
      %v1685 = vmul.f32 %v1603, %v1603
      %v1686 = vmul.f32 %v1604, %v1604
      %v1687 = vmul.f32 %v1605, %v1605
      %v1688 = vmul.f32 %v1606, %v1606
      %v1689 = vmul.f32 %v1607, %v1607
      %v1690 = vmul.f32 %v1608, %v1608
      %v1691 = vmul.f32 %v1609, %v1609
      %v1692 = vmul.f32 %v1610, %v1610
      %v1693 = vsel %vm458, %v1677, 0.0
      %1694 = vadd.xlane.f32.xlu0 %v1693
      %v1695 = vpop.xlane.xlu0 %1694
      %v1696 = vsel %vm458, %v1678, 0.0
      %1697 = vadd.xlane.f32.xlu0 %v1696
      %v1698 = vpop.xlane.xlu0 %1697
      %v1699 = vsel %vm458, %v1679, 0.0
      %1700 = vadd.xlane.f32.xlu0 %v1699
      %v1701 = vpop.xlane.xlu0 %1700
      %v1702 = vsel %vm458, %v1680, 0.0
      %1703 = vadd.xlane.f32.xlu0 %v1702
      %v1704 = vpop.xlane.xlu0 %1703
      %v1705 = vsel %vm458, %v1681, 0.0
      %1706 = vadd.xlane.f32.xlu0 %v1705
      %v1707 = vpop.xlane.xlu0 %1706
      %v1708 = vsel %vm458, %v1682, 0.0
      %1709 = vadd.xlane.f32.xlu0 %v1708
      %v1710 = vpop.xlane.xlu0 %1709
      %v1711 = vsel %vm458, %v1683, 0.0
      %1712 = vadd.xlane.f32.xlu0 %v1711
      %v1713 = vpop.xlane.xlu0 %1712
      %v1714 = vsel %vm458, %v1684, 0.0
      %1715 = vadd.xlane.f32.xlu0 %v1714
      %v1716 = vpop.xlane.xlu0 %1715
      %v1717 = vsel %vm458, %v1685, 0.0
      %1718 = vadd.xlane.f32.xlu0 %v1717
      %v1719 = vpop.xlane.xlu0 %1718
      %v1720 = vsel %vm458, %v1686, 0.0
      %1721 = vadd.xlane.f32.xlu0 %v1720
      %v1722 = vpop.xlane.xlu0 %1721
      %v1723 = vsel %vm458, %v1687, 0.0
      %1724 = vadd.xlane.f32.xlu0 %v1723
      %v1725 = vpop.xlane.xlu0 %1724
      %v1726 = vsel %vm458, %v1688, 0.0
      %1727 = vadd.xlane.f32.xlu0 %v1726
      %v1728 = vpop.xlane.xlu0 %1727
      %v1729 = vsel %vm458, %v1689, 0.0
      %1730 = vadd.xlane.f32.xlu0 %v1729
      %v1731 = vpop.xlane.xlu0 %1730
      %v1732 = vsel %vm458, %v1690, 0.0
      %1733 = vadd.xlane.f32.xlu0 %v1732
      %v1734 = vpop.xlane.xlu0 %1733
      %v1735 = vsel %vm458, %v1691, 0.0
      %1736 = vadd.xlane.f32.xlu0 %v1735
      %v1737 = vpop.xlane.xlu0 %1736
      %v1738 = vsel %vm458, %v1692, 0.0
      %1739 = vadd.xlane.f32.xlu0 %v1738
      %v1740 = vpop.xlane.xlu0 %1739
      %v1741 = vmul.f32 %v1695, %v978
      %v1742 = vmul.f32 %v1698, %v978
      %v1743 = vmul.f32 %v1701, %v978
      %v1744 = vmul.f32 %v1704, %v978
      %v1745 = vmul.f32 %v1707, %v978
      %v1746 = vmul.f32 %v1710, %v978
      %v1747 = vmul.f32 %v1713, %v978
      %v1748 = vmul.f32 %v1716, %v978
      %v1749 = vmul.f32 %v1719, %v978
      %v1750 = vmul.f32 %v1722, %v978
      %v1751 = vmul.f32 %v1725, %v978
      %v1752 = vmul.f32 %v1728, %v978
      %v1753 = vmul.f32 %v1731, %v978
      %v1754 = vmul.f32 %v1734, %v978
      %v1755 = vmul.f32 %v1737, %v978
      %v1756 = vmul.f32 %v1740, %v978
      %v1757 = vmul.f32 %v1661, %v1661
      %v1758 = vmul.f32 %v1662, %v1662
      %v1759 = vmul.f32 %v1663, %v1663
      %v1760 = vmul.f32 %v1664, %v1664
      %v1761 = vmul.f32 %v1665, %v1665
      %v1762 = vmul.f32 %v1666, %v1666
      %v1763 = vmul.f32 %v1667, %v1667
      %v1764 = vmul.f32 %v1668, %v1668
      %v1765 = vmul.f32 %v1669, %v1669
      %v1766 = vmul.f32 %v1670, %v1670
      %v1767 = vmul.f32 %v1671, %v1671
      %v1768 = vmul.f32 %v1672, %v1672
      %v1769 = vmul.f32 %v1673, %v1673
      %v1770 = vmul.f32 %v1674, %v1674
      %v1771 = vmul.f32 %v1675, %v1675
      %v1772 = vmul.f32 %v1676, %v1676
      %v1773 = vsub.f32 %v1741, %v1757
      %v1774 = vsub.f32 %v1742, %v1758
      %v1775 = vsub.f32 %v1743, %v1759
      %v1776 = vsub.f32 %v1744, %v1760
      %v1777 = vsub.f32 %v1745, %v1761
      %v1778 = vsub.f32 %v1746, %v1762
      %v1779 = vsub.f32 %v1747, %v1763
      %v1780 = vsub.f32 %v1748, %v1764
      %v1781 = vsub.f32 %v1749, %v1765
      %v1782 = vsub.f32 %v1750, %v1766
      %v1783 = vsub.f32 %v1751, %v1767
      %v1784 = vsub.f32 %v1752, %v1768
      %v1785 = vsub.f32 %v1753, %v1769
      %v1786 = vsub.f32 %v1754, %v1770
      %v1787 = vsub.f32 %v1755, %v1771
      %v1788 = vsub.f32 %v1756, %v1772
      %v1789 = vadd.f32 %v1773, 1e-05
      %v1790 = vadd.f32 %v1774, 1e-05
      %v1791 = vadd.f32 %v1775, 1e-05
      %v1792 = vadd.f32 %v1776, 1e-05
      %v1793 = vadd.f32 %v1777, 1e-05
      %v1794 = vadd.f32 %v1778, 1e-05
      %v1795 = vadd.f32 %v1779, 1e-05
      %v1796 = vadd.f32 %v1780, 1e-05
      %v1797 = vadd.f32 %v1781, 1e-05
      %v1798 = vadd.f32 %v1782, 1e-05
      %v1799 = vadd.f32 %v1783, 1e-05
      %v1800 = vadd.f32 %v1784, 1e-05
      %v1801 = vadd.f32 %v1785, 1e-05
      %v1802 = vadd.f32 %v1786, 1e-05
      %v1803 = vadd.f32 %v1787, 1e-05
      %v1804 = vadd.f32 %v1788, 1e-05
      %v1805 = vrsqrt.pop %v1789
      %v1806 = vmul.f32 %v1805, %v1789
      %v1807 = vmul.f32 %v1806, %v1805
      %v1808 = vmul.f32 0.5, %v1807
      %v1809 = vsub.f32 1.5, %v1808
      %v1810 = vmul.f32 %v1805, %v1809
      %vm1811 = vweird.f32 %v1789
      %vm1812 = vweird.f32 %v1805
      %vm1813 = vmor %vm1811, %vm1812
      %v1814 = vsel %vm1813, %v1805, %v1810
      %v1815 = vrsqrt.pop %v1790
      %v1816 = vmul.f32 %v1815, %v1790
      %v1817 = vmul.f32 %v1816, %v1815
      %v1818 = vmul.f32 0.5, %v1817
      %v1819 = vsub.f32 1.5, %v1818
      %v1820 = vmul.f32 %v1815, %v1819
      %vm1821 = vweird.f32 %v1790
      %vm1822 = vweird.f32 %v1815
      %vm1823 = vmor %vm1821, %vm1822
      %v1824 = vsel %vm1823, %v1815, %v1820
      %v1825 = vrsqrt.pop %v1791
      %v1826 = vmul.f32 %v1825, %v1791
      %v1827 = vmul.f32 %v1826, %v1825
      %v1828 = vmul.f32 0.5, %v1827
      %v1829 = vsub.f32 1.5, %v1828
      %v1830 = vmul.f32 %v1825, %v1829
      %vm1831 = vweird.f32 %v1791
      %vm1832 = vweird.f32 %v1825
      %vm1833 = vmor %vm1831, %vm1832
      %v1834 = vsel %vm1833, %v1825, %v1830
      %v1835 = vrsqrt.pop %v1792
      %v1836 = vmul.f32 %v1835, %v1792
      %v1837 = vmul.f32 %v1836, %v1835
      %v1838 = vmul.f32 0.5, %v1837
      %v1839 = vsub.f32 1.5, %v1838
      %v1840 = vmul.f32 %v1835, %v1839
      %vm1841 = vweird.f32 %v1792
      %vm1842 = vweird.f32 %v1835
      %vm1843 = vmor %vm1841, %vm1842
      %v1844 = vsel %vm1843, %v1835, %v1840
      %v1845 = vrsqrt.pop %v1793
      %v1846 = vmul.f32 %v1845, %v1793
      %v1847 = vmul.f32 %v1846, %v1845
      %v1848 = vmul.f32 0.5, %v1847
      %v1849 = vsub.f32 1.5, %v1848
      %v1850 = vmul.f32 %v1845, %v1849
      %vm1851 = vweird.f32 %v1793
      %vm1852 = vweird.f32 %v1845
      %vm1853 = vmor %vm1851, %vm1852
      %v1854 = vsel %vm1853, %v1845, %v1850
      %v1855 = vrsqrt.pop %v1794
      %v1856 = vmul.f32 %v1855, %v1794
      %v1857 = vmul.f32 %v1856, %v1855
      %v1858 = vmul.f32 0.5, %v1857
      %v1859 = vsub.f32 1.5, %v1858
      %v1860 = vmul.f32 %v1855, %v1859
      %vm1861 = vweird.f32 %v1794
      %vm1862 = vweird.f32 %v1855
      %vm1863 = vmor %vm1861, %vm1862
      %v1864 = vsel %vm1863, %v1855, %v1860
      %v1865 = vrsqrt.pop %v1795
      %v1866 = vmul.f32 %v1865, %v1795
      %v1867 = vmul.f32 %v1866, %v1865
      %v1868 = vmul.f32 0.5, %v1867
      %v1869 = vsub.f32 1.5, %v1868
      %v1870 = vmul.f32 %v1865, %v1869
      %vm1871 = vweird.f32 %v1795
      %vm1872 = vweird.f32 %v1865
      %vm1873 = vmor %vm1871, %vm1872
      %v1874 = vsel %vm1873, %v1865, %v1870
      %v1875 = vrsqrt.pop %v1796
      %v1876 = vmul.f32 %v1875, %v1796
      %v1877 = vmul.f32 %v1876, %v1875
      %v1878 = vmul.f32 0.5, %v1877
      %v1879 = vsub.f32 1.5, %v1878
      %v1880 = vmul.f32 %v1875, %v1879
      %vm1881 = vweird.f32 %v1796
      %vm1882 = vweird.f32 %v1875
      %vm1883 = vmor %vm1881, %vm1882
      %v1884 = vsel %vm1883, %v1875, %v1880
      %v1885 = vrsqrt.pop %v1797
      %v1886 = vmul.f32 %v1885, %v1797
      %v1887 = vmul.f32 %v1886, %v1885
      %v1888 = vmul.f32 0.5, %v1887
      %v1889 = vsub.f32 1.5, %v1888
      %v1890 = vmul.f32 %v1885, %v1889
      %vm1891 = vweird.f32 %v1797
      %vm1892 = vweird.f32 %v1885
      %vm1893 = vmor %vm1891, %vm1892
      %v1894 = vsel %vm1893, %v1885, %v1890
      %v1895 = vrsqrt.pop %v1798
      %v1896 = vmul.f32 %v1895, %v1798
      %v1897 = vmul.f32 %v1896, %v1895
      %v1898 = vmul.f32 0.5, %v1897
      %v1899 = vsub.f32 1.5, %v1898
      %v1900 = vmul.f32 %v1895, %v1899
      %vm1901 = vweird.f32 %v1798
      %vm1902 = vweird.f32 %v1895
      %vm1903 = vmor %vm1901, %vm1902
      %v1904 = vsel %vm1903, %v1895, %v1900
      %v1905 = vrsqrt.pop %v1799
      %v1906 = vmul.f32 %v1905, %v1799
      %v1907 = vmul.f32 %v1906, %v1905
      %v1908 = vmul.f32 0.5, %v1907
      %v1909 = vsub.f32 1.5, %v1908
      %v1910 = vmul.f32 %v1905, %v1909
      %vm1911 = vweird.f32 %v1799
      %vm1912 = vweird.f32 %v1905
      %vm1913 = vmor %vm1911, %vm1912
      %v1914 = vsel %vm1913, %v1905, %v1910
      %v1915 = vrsqrt.pop %v1800
      %v1916 = vmul.f32 %v1915, %v1800
      %v1917 = vmul.f32 %v1916, %v1915
      %v1918 = vmul.f32 0.5, %v1917
      %v1919 = vsub.f32 1.5, %v1918
      %v1920 = vmul.f32 %v1915, %v1919
      %vm1921 = vweird.f32 %v1800
      %vm1922 = vweird.f32 %v1915
      %vm1923 = vmor %vm1921, %vm1922
      %v1924 = vsel %vm1923, %v1915, %v1920
      %v1925 = vrsqrt.pop %v1801
      %v1926 = vmul.f32 %v1925, %v1801
      %v1927 = vmul.f32 %v1926, %v1925
      %v1928 = vmul.f32 0.5, %v1927
      %v1929 = vsub.f32 1.5, %v1928
      %v1930 = vmul.f32 %v1925, %v1929
      %vm1931 = vweird.f32 %v1801
      %vm1932 = vweird.f32 %v1925
      %vm1933 = vmor %vm1931, %vm1932
      %v1934 = vsel %vm1933, %v1925, %v1930
      %v1935 = vrsqrt.pop %v1802
      %v1936 = vmul.f32 %v1935, %v1802
      %v1937 = vmul.f32 %v1936, %v1935
      %v1938 = vmul.f32 0.5, %v1937
      %v1939 = vsub.f32 1.5, %v1938
      %v1940 = vmul.f32 %v1935, %v1939
      %vm1941 = vweird.f32 %v1802
      %vm1942 = vweird.f32 %v1935
      %vm1943 = vmor %vm1941, %vm1942
      %v1944 = vsel %vm1943, %v1935, %v1940
      %v1945 = vrsqrt.pop %v1803
      %v1946 = vmul.f32 %v1945, %v1803
      %v1947 = vmul.f32 %v1946, %v1945
      %v1948 = vmul.f32 0.5, %v1947
      %v1949 = vsub.f32 1.5, %v1948
      %v1950 = vmul.f32 %v1945, %v1949
      %vm1951 = vweird.f32 %v1803
      %vm1952 = vweird.f32 %v1945
      %vm1953 = vmor %vm1951, %vm1952
      %v1954 = vsel %vm1953, %v1945, %v1950
      %v1955 = vrsqrt.pop %v1804
      %v1956 = vmul.f32 %v1955, %v1804
      %v1957 = vmul.f32 %v1956, %v1955
      %v1958 = vmul.f32 0.5, %v1957
      %v1959 = vsub.f32 1.5, %v1958
      %v1960 = vmul.f32 %v1955, %v1959
      %vm1961 = vweird.f32 %v1804
      %vm1962 = vweird.f32 %v1955
      %vm1963 = vmor %vm1961, %vm1962
      %v1964 = vsel %vm1963, %v1955, %v1960
      %v1965 = vsub.f32 %v1595, %v1661
      %v1966 = vsub.f32 %v1596, %v1662
      %v1967 = vsub.f32 %v1597, %v1663
      %v1968 = vsub.f32 %v1598, %v1664
      %v1969 = vsub.f32 %v1599, %v1665
      %v1970 = vsub.f32 %v1600, %v1666
      %v1971 = vsub.f32 %v1601, %v1667
      %v1972 = vsub.f32 %v1602, %v1668
      %v1973 = vsub.f32 %v1603, %v1669
      %v1974 = vsub.f32 %v1604, %v1670
      %v1975 = vsub.f32 %v1605, %v1671
      %v1976 = vsub.f32 %v1606, %v1672
      %v1977 = vsub.f32 %v1607, %v1673
      %v1978 = vsub.f32 %v1608, %v1674
      %v1979 = vsub.f32 %v1609, %v1675
      %v1980 = vsub.f32 %v1610, %v1676
      %v1981 = vmul.f32 %v1965, %v1814
      %v1982 = vmul.f32 %v1966, %v1824
      %v1983 = vmul.f32 %v1967, %v1834
      %v1984 = vmul.f32 %v1968, %v1844
      %v1985 = vmul.f32 %v1969, %v1854
      %v1986 = vmul.f32 %v1970, %v1864
      %v1987 = vmul.f32 %v1971, %v1874
      %v1988 = vmul.f32 %v1972, %v1884
      %v1989 = vmul.f32 %v1973, %v1894
      %v1990 = vmul.f32 %v1974, %v1904
      %v1991 = vmul.f32 %v1975, %v1914
      %v1992 = vmul.f32 %v1976, %v1924
      %v1993 = vmul.f32 %v1977, %v1934
      %v1994 = vmul.f32 %v1978, %v1944
      %v1995 = vmul.f32 %v1979, %v1954
      %v1996 = vmul.f32 %v1980, %v1964
      %v1998 = vperm.slane %v1611, 0
      %v2000 = vmul.f32 %v1981, %v1998
      %v2001 = vmul.f32 %v1982, %v1998
      %v2002 = vmul.f32 %v1983, %v1998
      %v2003 = vmul.f32 %v1984, %v1998
      %v2004 = vmul.f32 %v1985, %v1998
      %v2005 = vmul.f32 %v1986, %v1998
      %v2006 = vmul.f32 %v1987, %v1998
      %v2007 = vmul.f32 %v1988, %v1998
      %v2008 = vmul.f32 %v1989, %v1998
      %v2009 = vmul.f32 %v1990, %v1998
      %v2010 = vmul.f32 %v1991, %v1998
      %v2011 = vmul.f32 %v1992, %v1998
      %v2012 = vmul.f32 %v1993, %v1998
      %v2013 = vmul.f32 %v1994, %v1998
      %v2014 = vmul.f32 %v1995, %v1998
      %v2015 = vmul.f32 %v1996, %v1998
      %v2017 = vperm.slane %v1612, 0
      %v2019 = vadd.f32 %v2000, %v2017
      %v2020 = vadd.f32 %v2001, %v2017
      %v2021 = vadd.f32 %v2002, %v2017
      %v2022 = vadd.f32 %v2003, %v2017
      %v2023 = vadd.f32 %v2004, %v2017
      %v2024 = vadd.f32 %v2005, %v2017
      %v2025 = vadd.f32 %v2006, %v2017
      %v2026 = vadd.f32 %v2007, %v2017
      %v2027 = vadd.f32 %v2008, %v2017
      %v2028 = vadd.f32 %v2009, %v2017
      %v2029 = vadd.f32 %v2010, %v2017
      %v2030 = vadd.f32 %v2011, %v2017
      %v2031 = vadd.f32 %v2012, %v2017
      %v2032 = vadd.f32 %v2013, %v2017
      %v2033 = vadd.f32 %v2014, %v2017
      %v2034 = vadd.f32 %v2015, %v2017
      %2035 = vst.msk [vmem:[%s415] sm:$0xff] %vm458, %v2019
      %2036 = vst.msk [vmem:[%s415 + $0x8] sm:$0xff] %vm458, %v2020
      %2037 = vst.msk [vmem:[%s415 + $0x10] sm:$0xff] %vm458, %v2021
      %2038 = vst.msk [vmem:[%s415 + $0x18] sm:$0xff] %vm458, %v2022
      %2039 = vst.msk [vmem:[%s415 + $0x20] sm:$0xff] %vm458, %v2023
      %2040 = vst.msk [vmem:[%s415 + $0x28] sm:$0xff] %vm458, %v2024
      %2041 = vst.msk [vmem:[%s415 + $0x30] sm:$0xff] %vm458, %v2025
      %2042 = vst.msk [vmem:[%s415 + $0x38] sm:$0xff] %vm458, %v2026
      %2043 = vst.msk [vmem:[%s415 + $0x40] sm:$0xff] %vm458, %v2027
      %2044 = vst.msk [vmem:[%s415 + $0x48] sm:$0xff] %vm458, %v2028
      %2045 = vst.msk [vmem:[%s415 + $0x50] sm:$0xff] %vm458, %v2029
      %2046 = vst.msk [vmem:[%s415 + $0x58] sm:$0xff] %vm458, %v2030
      %2047 = vst.msk [vmem:[%s415 + $0x60] sm:$0xff] %vm458, %v2031
      %2048 = vst.msk [vmem:[%s415 + $0x68] sm:$0xff] %vm458, %v2032
      %2049 = vst.msk [vmem:[%s415 + $0x70] sm:$0xff] %vm458, %v2033
      %2050 = vst.msk [vmem:[%s415 + $0x78] sm:$0xff] %vm458, %v2034
      %s2051 = smul.u32 16, %s23
      %p2052 = scmp.lt.s32.totalorder %s2051, 63
      %s2053 = scalar_select %p2052, %s2051, 63
      %s2054 = smul.addr %s2053, 8
      %s2055 = scalar_lea.vmem %s12, %s2054
      // Predicated region
      $region69: #{tpu_custom_call.1} parent=67 // pred_check
        %p2056 = pneg %p298
      $region70: #{tpu_custom_call.1} parent=67 // pred_check_branch
        %2058 = sbr.rel (%p2056) target = $region72
      $region71: #{tpu_custom_call.1} parent=67 // pred_region
        %s2059 = smul.u32 16, %s23
      $region72: #{tpu_custom_call.1} parent=67 // pred_fallthru
        _
    $region68: #{tpu_custom_call.1} parent=5 // pred_fallthru
      _
    %p2060 = scmp.le.s32.totalorder 2, %s18
    // Predicated region
    $region73: #{tpu_custom_call.1} parent=5 // pred_check
      %p2061 = pneg %p2060
    $region74: #{tpu_custom_call.1} parent=5 // pred_check_branch
      %2063 = sbr.rel (%p2061) target = $region76
    $region75: #{tpu_custom_call.1} parent=5 // pred_region
      %s2064 = ssub.s32 %s18, 2
      // Predicated region
      $region77: #{tpu_custom_call.1} parent=75 // pred_check
        %p2065 = pneg %p304
      $region78: #{tpu_custom_call.1} parent=75 // pred_check_branch
        %2067 = sbr.rel (%p2065) target = $region80
      $region79: #{tpu_custom_call.1} parent=75 // pred_region
        %s2068 = smul.u32 16, %s24
        %p2069 = scmp.lt.s32.totalorder %s2068, 63
        %s2070 = scalar_select %p2069, %s2068, 63
        %s2071 = smul.addr %s2070, 8
        %s2072 = scalar_lea.vmem %s12, %s2071
      $region80: #{tpu_custom_call.1} parent=75 // pred_fallthru
        _
    $region76: #{tpu_custom_call.1} parent=5 // pred_fallthru
      _
  $region6: #{tpu_custom_call.1} parent=0 // loop_footer
    %s22 = sadd.s32 1, %s18
  $region7: #{tpu_custom_call.1} parent=0 // loop_footer_branch
    %17 = sbr.rel target = $region3
  $region8: #{tpu_custom_call.1} parent=0 // loop_exit
    _

</llo_original>
